<compile_context>
chip_gen: v7x
topology: tpu7x:2x2x1
jax: 0.10.0
libtpu: 0.0.40
codegen_flags: <defaults>
</compile_context>

<pallas_src>
import functools
import math

import jax
import jax.numpy as jnp
from jax.experimental import pallas as pl
from jax.experimental.pallas import tpu as pltpu

OUT_DIM = {2: 39, 4: 35, 6: 31}
OUT_DIM_108 = {4: 47}
OUT_DIM_64 = {2: 29, 4: 25, 6: 21}

TILE_ROWS = 256  # row tile (B*OH*OW) for the conv-as-matmul kernel


def _round_up(x, m):
    return (x + m - 1) // m * m


# ---------------------------------------------------------------------------
# Kernels
# ---------------------------------------------------------------------------
def _linear_relu_kernel(x_ref, w_ref, b_ref, o_ref):
    """One row-tile of relu(x @ w + b).  Conv layers are lowered to this via
    im2col so the MXU sees a dense (TILE_ROWS, K) x (K, OC) matmul."""
    y = jnp.dot(x_ref[...], w_ref[...], preferred_element_type=jnp.float32)
    o_ref[...] = jnp.maximum(y + b_ref[...], 0.0)


def _fc_ln_tanh_kernel(h_ref, w_ref, b_ref, g_ref, beta_ref, o_ref, acc_ref,
                       *, eps, output_logits):
    """K-tiled accumulation of h @ w; bias + LayerNorm + tanh fused into the
    final reduction step (accumulator lives in f32 VMEM scratch)."""
    k = pl.program_id(0)

    @pl.when(k == 0)
    def _():
        acc_ref[...] = jnp.zeros_like(acc_ref)

    acc_ref[...] += jnp.dot(h_ref[...], w_ref[...],
                            preferred_element_type=jnp.float32)

    @pl.when(k == pl.num_programs(0) - 1)
    def _():
        y = acc_ref[...] + b_ref[...]
        mu = jnp.mean(y, axis=-1, keepdims=True)
        var = jnp.mean(jnp.square(y - mu), axis=-1, keepdims=True)
        yn = (y - mu) * jax.lax.rsqrt(var + eps)
        z = yn * g_ref[...] + beta_ref[...]
        o_ref[...] = z if output_logits else jnp.tanh(z)


# ---------------------------------------------------------------------------
# Pallas wrappers
# ---------------------------------------------------------------------------
def _linear_relu(x, w, b):
    """relu(x @ w + b), rows tiled over a 'parallel' grid, weights VMEM-resident."""
    n, k = x.shape
    oc = w.shape[1]
    n_pad = _round_up(n, TILE_ROWS)
    if n_pad != n:  # zero rows are harmless; sliced off below
        x = jnp.pad(x, ((0, n_pad - n), (0, 0)))
    out = pl.pallas_call(
        _linear_relu_kernel,
        out_shape=jax.ShapeDtypeStruct((n_pad, oc), jnp.float32),
        grid=(n_pad // TILE_ROWS,),
        in_specs=[
            pl.BlockSpec((TILE_ROWS, k), lambda i: (i, 0)),
            pl.BlockSpec((k, oc), lambda i: (0, 0)),   # resident weight
            pl.BlockSpec((1, oc), lambda i: (0, 0)),   # resident bias
        ],
        out_specs=pl.BlockSpec((TILE_ROWS, oc), lambda i: (i, 0)),
        compiler_params=pltpu.CompilerParams(
            dimension_semantics=("parallel",)),
    )(x, w, b)
    return out[:n]


def _fc_layernorm_tanh(h, w, b, gamma, beta, *, eps=1e-5, output_logits=False,
                       tile_k=3456):
    """tanh(LayerNorm(h @ w + b)) with the contraction dim K tiled (pipelined)."""
    bsz, kdim = h.shape
    f = w.shape[1]
    tile_k = min(tile_k, _round_up(kdim, 128))       # lane-aligned K tiles
    n_k = pl.cdiv(kdim, tile_k)
    k_pad = n_k * tile_k
    if k_pad != kdim:  # zero-pad K: contributes nothing to the dot product
        h = jnp.pad(h, ((0, 0), (0, k_pad - kdim)))
        w = jnp.pad(w, ((0, k_pad - kdim), (0, 0)))
    kernel = functools.partial(_fc_ln_tanh_kernel, eps=eps,
                               output_logits=output_logits)
    return pl.pallas_call(
        kernel,
        out_shape=jax.ShapeDtypeStruct((bsz, f), jnp.float32),
        grid=(n_k,),
        in_specs=[
            pl.BlockSpec((bsz, tile_k), lambda j: (0, j)),
            pl.BlockSpec((tile_k, f), lambda j: (j, 0)),
            pl.BlockSpec((1, f), lambda j: (0, 0)),
            pl.BlockSpec((1, f), lambda j: (0, 0)),
            pl.BlockSpec((1, f), lambda j: (0, 0)),
        ],
        out_specs=pl.BlockSpec((bsz, f), lambda j: (0, 0)),
        scratch_shapes=[pltpu.VMEM((bsz, f), jnp.float32)],
        compiler_params=pltpu.CompilerParams(
            dimension_semantics=("arbitrary",)),
    )(h, w, b, gamma, beta)


# ---------------------------------------------------------------------------
# JAX-side data movement (layout / patch extraction only, no FLOPs)
# ---------------------------------------------------------------------------
def _im2col(x, ksize, stride):
    """(B, H, W, C) -> (B, OH, OW, ksize*ksize*C); patch order (kh, kw, c)."""
    b, h, w, c = x.shape
    oh = (h - ksize) // stride + 1
    ow = (w - ksize) // stride + 1
    cols = []
    for kh in range(ksize):
        for kw in range(ksize):
            cols.append(jax.lax.slice(
                x,
                (0, kh, kw, 0),
                (b, kh + (oh - 1) * stride + 1, kw + (ow - 1) * stride + 1, c),
                (1, stride, stride, 1)))
    return jnp.concatenate(cols, axis=-1), oh, ow


def encoder_forward(obs, params, *, output_logits=False):
    """Pallas-backed Encoder.forward (inference path)."""
    bsz = obs.shape[0]
    # if obs.max() > 1.0: obs = obs / 255.   (data-dependent branch -> select)
    scale = jnp.where(jnp.max(obs) > 1.0, 1.0 / 255.0, 1.0).astype(jnp.float32)
    x = obs.astype(jnp.float32) * scale
    x = jnp.transpose(x, (0, 2, 3, 1))  # NCHW -> NHWC (channels on lane axis)
    for i, (w, b) in enumerate(params["convs"]):
        stride = 2 if i == 0 else 1
        xc, oh, ow = _im2col(x, 3, stride)
        kdim = xc.shape[-1]
        rows = _linear_relu(xc.reshape(bsz * oh * ow, kdim),
                            w.reshape(kdim, -1), b)
        x = rows.reshape(bsz, oh, ow, -1)
    h_flat = x.reshape(bsz, -1)  # NHWC flatten; fc weight rows use same order
    return _fc_layernorm_tanh(h_flat, params["wfc"], params["bfc"],
                              params["gamma"], params["beta"],
                              output_logits=output_logits)


# ---------------------------------------------------------------------------
# Params (PyTorch-default init: uniform +/- 1/sqrt(fan_in); LN = ones/zeros)
# ---------------------------------------------------------------------------
def init_encoder_params(key, obs_shape, feature_dim, num_layers=2,
                        num_filters=32):
    c, _, w_img = obs_shape
    if w_img == 108:
        out_dim = OUT_DIM_108[num_layers]
    elif w_img == 64:
        out_dim = OUT_DIM_64[num_layers]
    else:
        out_dim = OUT_DIM[num_layers]
    convs = []
    in_c = c
    for _ in range(num_layers):
        key, k_w, k_b = jax.random.split(key, 3)
        bound = 1.0 / math.sqrt(in_c * 3 * 3)
        wc = jax.random.uniform(k_w, (3, 3, in_c, num_filters), jnp.float32,
                                -bound, bound)
        bc = jax.random.uniform(k_b, (1, num_filters), jnp.float32,
                                -bound, bound)
        convs.append((wc, bc))
        in_c = num_filters
    key, k_w, k_b = jax.random.split(key, 3)
    fc_in = num_filters * out_dim * out_dim
    bound = 1.0 / math.sqrt(fc_in)
    wfc = jax.random.uniform(k_w, (fc_in, feature_dim), jnp.float32,
                             -bound, bound)
    bfc = jax.random.uniform(k_b, (1, feature_dim), jnp.float32, -bound, bound)
    return {"convs": convs, "wfc": wfc, "bfc": bfc,
            "gamma": jnp.ones((1, feature_dim), jnp.float32),
            "beta": jnp.zeros((1, feature_dim), jnp.float32)}


# ---------------------------------------------------------------------------
# Pure-JAX reference (same weight layout) for correctness checking
# ---------------------------------------------------------------------------
def encoder_reference(obs, params, *, output_logits=False, eps=1e-5):
    hp = jax.lax.Precision.HIGHEST
    scale = jnp.where(jnp.max(obs) > 1.0, 1.0 / 255.0, 1.0).astype(jnp.float32)
    x = jnp.transpose(obs.astype(jnp.float32) * scale, (0, 2, 3, 1))
    for i, (w, b) in enumerate(params["convs"]):
        stride = 2 if i == 0 else 1
        dn = jax.lax.conv_dimension_numbers(x.shape, w.shape,
                                            ("NHWC", "HWIO", "NHWC"))
        x = jax.lax.conv_general_dilated(x, w, (stride, stride), "VALID",
                                         dimension_numbers=dn, precision=hp)
        x = jnp.maximum(x + b.reshape(1, 1, 1, -1), 0.0)
    h = x.reshape(x.shape[0], -1)
    y = jnp.dot(h, params["wfc"], precision=hp) + params["bfc"]
    mu = jnp.mean(y, axis=-1, keepdims=True)
    var = jnp.mean(jnp.square(y - mu), axis=-1, keepdims=True)
    z = (y - mu) * jax.lax.rsqrt(var + eps) * params["gamma"] + params["beta"]
    return z if output_logits else jnp.tanh(z)


if __name__ == "__main__":
    # Smallest module-consistent shapes: 64x64 pixels (OUT_DIM_64[2] = 29),
    # 2 conv layers, 32 filters, feature_dim 50 (paper default), batch 2.
    batch, obs_shape, feature_dim, num_layers = 2, (9, 64, 64), 50, 2

    key = jax.random.PRNGKey(0)
    k_obs, k_par = jax.random.split(key)
    # Raw pixel range [0, 255] so the /255 normalization branch is exercised.
    obs = jax.random.uniform(k_obs, (batch,) + obs_shape, jnp.float32,
                             0.0, 255.0)
    params = init_encoder_params(k_par, obs_shape, feature_dim, num_layers)

    fwd = jax.jit(encoder_forward)
    out = jax.block_until_ready(fwd(obs, params))

    ref = encoder_reference(obs, params)
    assert out.shape == (batch, feature_dim), out.shape
    assert jnp.allclose(out, ref, atol=1e-3, rtol=1e-3), \
        float(jnp.max(jnp.abs(out - ref)))

    print("KERNEL_OK")
</pallas_src>

<mosaic_0001>
module attributes {stable_mosaic.version = 11 : i64} {
  func.func @_linear_relu_kernel(%arg0: i32, %arg1: memref<256x81xf32, #tpu.memory_space<vmem>>, %arg2: memref<81x32xf32, #tpu.memory_space<vmem>>, %arg3: memref<1x32xf32, #tpu.memory_space<vmem>>, %arg4: memref<256x32xf32, #tpu.memory_space<vmem>>) attributes {dimension_semantics = [#tpu.dimension_semantics<parallel>], iteration_bounds = array<i64: 8>, scalar_prefetch = 0 : i64, scratch_operands = 0 : i64, tpu.core_type = #tpu.core_type<tc>, window_params = [{transform_indices = @transform_0, window_bounds = array<i64: 256, 81>}, {pipeline_mode = #tpu.pipeline_mode<synchronous>, transform_indices = @transform_1, window_bounds = array<i64: 81, 32>}, {pipeline_mode = #tpu.pipeline_mode<synchronous>, transform_indices = @transform_2, window_bounds = array<i64: 1, 32>}, {transform_indices = @transform_3, window_bounds = array<i64: 256, 32>}]} {
    %c0 = arith.constant 0 : index
    %c0_0 = arith.constant 0 : index
    %0 = vector.load %arg1[%c0, %c0_0] : memref<256x81xf32, #tpu.memory_space<vmem>>, vector<256x81xf32>
    %c0_1 = arith.constant 0 : index
    %c0_2 = arith.constant 0 : index
    %1 = vector.load %arg2[%c0_1, %c0_2] : memref<81x32xf32, #tpu.memory_space<vmem>>, vector<81x32xf32>
    %cst = arith.constant dense<0.000000e+00> : vector<256x32xf32>
    %2 = tpu.matmul %0, %1, %cst {dimension_numbers = #tpu.dot_dimension_numbers<[1], [0], [0], [1], [0, 0, 1, 1], [], []>} : vector<256x81xf32>, vector<81x32xf32>, vector<256x32xf32> -> vector<256x32xf32>
    %c0_3 = arith.constant 0 : index
    %c0_4 = arith.constant 0 : index
    %3 = vector.load %arg3[%c0_3, %c0_4] : memref<1x32xf32, #tpu.memory_space<vmem>>, vector<1x32xf32>
    %4 = vector.broadcast %3 : vector<1x32xf32> to vector<256x32xf32>
    %5 = arith.addf %2, %4 : vector<256x32xf32>
    %cst_5 = arith.constant 0.000000e+00 : f32
    %6 = vector.broadcast %cst_5 : f32 to vector<256x32xf32>
    %7 = arith.maximumf %5, %6 : vector<256x32xf32>
    %c0_6 = arith.constant 0 : index
    %c0_7 = arith.constant 0 : index
    %8 = vector.load %arg4[%c0_6, %c0_7] : memref<256x32xf32, #tpu.memory_space<vmem>>, vector<256x32xf32>
    tpu.vector_store %arg4[%c0_6, %c0_7], %7 {strides = array<i32>} : memref<256x32xf32, #tpu.memory_space<vmem>>, vector<256x32xf32>,
    return
  }
  func.func @transform_0(%arg0: i32) -> (i32, i32) {
    %c0_i32 = arith.constant 0 : i32
    %c0_i32_0 = arith.constant 0 : i32
    return %arg0, %c0_i32 : i32, i32
  }
  func.func @transform_1(%arg0: i32) -> (i32, i32) {
    %c0_i32 = arith.constant 0 : i32
    %c0_i32_0 = arith.constant 0 : i32
    %c0_i32_1 = arith.constant 0 : i32
    return %c0_i32, %c0_i32_0 : i32, i32
  }
  func.func @transform_2(%arg0: i32) -> (i32, i32) {
    %c0_i32 = arith.constant 0 : i32
    %c0_i32_0 = arith.constant 0 : i32
    %c0_i32_1 = arith.constant 0 : i32
    return %c0_i32, %c0_i32_0 : i32, i32
  }
  func.func @transform_3(%arg0: i32) -> (i32, i32) {
    %c0_i32 = arith.constant 0 : i32
    %c0_i32_0 = arith.constant 0 : i32
    return %arg0, %c0_i32 : i32, i32
  }
}

module attributes {stable_mosaic.version = 11 : i64} {
  func.func @_linear_relu_kernel(%arg0: i32, %arg1: memref<256x288xf32, #tpu.memory_space<vmem>>, %arg2: memref<288x32xf32, #tpu.memory_space<vmem>>, %arg3: memref<1x32xf32, #tpu.memory_space<vmem>>, %arg4: memref<256x32xf32, #tpu.memory_space<vmem>>) attributes {dimension_semantics = [#tpu.dimension_semantics<parallel>], iteration_bounds = array<i64: 7>, scalar_prefetch = 0 : i64, scratch_operands = 0 : i64, tpu.core_type = #tpu.core_type<tc>, window_params = [{transform_indices = @transform_0, window_bounds = array<i64: 256, 288>}, {pipeline_mode = #tpu.pipeline_mode<synchronous>, transform_indices = @transform_1, window_bounds = array<i64: 288, 32>}, {pipeline_mode = #tpu.pipeline_mode<synchronous>, transform_indices = @transform_2, window_bounds = array<i64: 1, 32>}, {transform_indices = @transform_3, window_bounds = array<i64: 256, 32>}]} {
    %c0 = arith.constant 0 : index
    %c0_0 = arith.constant 0 : index
    %0 = vector.load %arg1[%c0, %c0_0] : memref<256x288xf32, #tpu.memory_space<vmem>>, vector<256x288xf32>
    %c0_1 = arith.constant 0 : index
    %c0_2 = arith.constant 0 : index
    %1 = vector.load %arg2[%c0_1, %c0_2] : memref<288x32xf32, #tpu.memory_space<vmem>>, vector<288x32xf32>
    %cst = arith.constant dense<0.000000e+00> : vector<256x32xf32>
    %2 = tpu.matmul %0, %1, %cst {dimension_numbers = #tpu.dot_dimension_numbers<[1], [0], [0], [1], [0, 0, 1, 1], [], []>} : vector<256x288xf32>, vector<288x32xf32>, vector<256x32xf32> -> vector<256x32xf32>
    %c0_3 = arith.constant 0 : index
    %c0_4 = arith.constant 0 : index
    %3 = vector.load %arg3[%c0_3, %c0_4] : memref<1x32xf32, #tpu.memory_space<vmem>>, vector<1x32xf32>
    %4 = vector.broadcast %3 : vector<1x32xf32> to vector<256x32xf32>
    %5 = arith.addf %2, %4 : vector<256x32xf32>
    %cst_5 = arith.constant 0.000000e+00 : f32
    %6 = vector.broadcast %cst_5 : f32 to vector<256x32xf32>
    %7 = arith.maximumf %5, %6 : vector<256x32xf32>
    %c0_6 = arith.constant 0 : index
    %c0_7 = arith.constant 0 : index
    %8 = vector.load %arg4[%c0_6, %c0_7] : memref<256x32xf32, #tpu.memory_space<vmem>>, vector<256x32xf32>
    tpu.vector_store %arg4[%c0_6, %c0_7], %7 {strides = array<i32>} : memref<256x32xf32, #tpu.memory_space<vmem>>, vector<256x32xf32>,
    return
  }
  func.func @transform_0(%arg0: i32) -> (i32, i32) {
    %c0_i32 = arith.constant 0 : i32
    %c0_i32_0 = arith.constant 0 : i32
    return %arg0, %c0_i32 : i32, i32
  }
  func.func @transform_1(%arg0: i32) -> (i32, i32) {
    %c0_i32 = arith.constant 0 : i32
    %c0_i32_0 = arith.constant 0 : i32
    %c0_i32_1 = arith.constant 0 : i32
    return %c0_i32, %c0_i32_0 : i32, i32
  }
  func.func @transform_2(%arg0: i32) -> (i32, i32) {
    %c0_i32 = arith.constant 0 : i32
    %c0_i32_0 = arith.constant 0 : i32
    %c0_i32_1 = arith.constant 0 : i32
    return %c0_i32, %c0_i32_0 : i32, i32
  }
  func.func @transform_3(%arg0: i32) -> (i32, i32) {
    %c0_i32 = arith.constant 0 : i32
    %c0_i32_0 = arith.constant 0 : i32
    return %arg0, %c0_i32 : i32, i32
  }
}

module attributes {stable_mosaic.version = 11 : i64} {
  func.func @_fc_ln_tanh_kernel(%arg0: i32, %arg1: memref<2x3456xf32, #tpu.memory_space<vmem>>, %arg2: memref<3456x50xf32, #tpu.memory_space<vmem>>, %arg3: memref<1x50xf32, #tpu.memory_space<vmem>>, %arg4: memref<1x50xf32, #tpu.memory_space<vmem>>, %arg5: memref<1x50xf32, #tpu.memory_space<vmem>>, %arg6: memref<2x50xf32, #tpu.memory_space<vmem>>, %arg7: memref<2x50xf32, #tpu.memory_space<vmem>>) attributes {dimension_semantics = [#tpu.dimension_semantics<arbitrary>], iteration_bounds = array<i64: 8>, scalar_prefetch = 0 : i64, scratch_operands = 1 : i64, tpu.core_type = #tpu.core_type<tc>, window_params = [{transform_indices = @transform_0, window_bounds = array<i64: 2, 3456>}, {transform_indices = @transform_1, window_bounds = array<i64: 3456, 50>}, {pipeline_mode = #tpu.pipeline_mode<synchronous>, transform_indices = @transform_2, window_bounds = array<i64: 1, 50>}, {pipeline_mode = #tpu.pipeline_mode<synchronous>, transform_indices = @transform_3, window_bounds = array<i64: 1, 50>}, {pipeline_mode = #tpu.pipeline_mode<synchronous>, transform_indices = @transform_4, window_bounds = array<i64: 1, 50>}, {pipeline_mode = #tpu.pipeline_mode<synchronous>, transform_indices = @transform_5, window_bounds = array<i64: 2, 50>}]} {
    %c0_i32 = arith.constant 0 : i32
    %0 = arith.cmpi eq, %arg0, %c0_i32 : i32
    %1 = arith.extui %0 : i1 to i32
    %c0_i32_0 = arith.constant 0 : i32
    %2 = arith.cmpi ne, %1, %c0_i32_0 : i32
    scf.if %2 {
      %cst_9 = arith.constant 0.000000e+00 : f32
      %12 = vector.broadcast %cst_9 : f32 to vector<2x50xf32>
      %c0_10 = arith.constant 0 : index
      %c0_11 = arith.constant 0 : index
      %13 = vector.load %arg7[%c0_10, %c0_11] : memref<2x50xf32, #tpu.memory_space<vmem>>, vector<2x50xf32>
      tpu.vector_store %arg7[%c0_10, %c0_11], %12 {strides = array<i32>} : memref<2x50xf32, #tpu.memory_space<vmem>>, vector<2x50xf32>,
    } else {
    }
    %c0 = arith.constant 0 : index
    %c0_1 = arith.constant 0 : index
    %3 = vector.load %arg7[%c0, %c0_1] : memref<2x50xf32, #tpu.memory_space<vmem>>, vector<2x50xf32>
    %c0_2 = arith.constant 0 : index
    %c0_3 = arith.constant 0 : index
    %4 = vector.load %arg1[%c0_2, %c0_3] : memref<2x3456xf32, #tpu.memory_space<vmem>>, vector<2x3456xf32>
    %c0_4 = arith.constant 0 : index
    %c0_5 = arith.constant 0 : index
    %5 = vector.load %arg2[%c0_4, %c0_5] : memref<3456x50xf32, #tpu.memory_space<vmem>>, vector<3456x50xf32>
    %cst = arith.constant dense<0.000000e+00> : vector<2x50xf32>
    %6 = tpu.matmul %4, %5, %cst {dimension_numbers = #tpu.dot_dimension_numbers<[1], [0], [0], [1], [0, 0, 1, 1], [], []>} : vector<2x3456xf32>, vector<3456x50xf32>, vector<2x50xf32> -> vector<2x50xf32>
    %7 = arith.addf %3, %6 : vector<2x50xf32>
    %c0_6 = arith.constant 0 : index
    %c0_7 = arith.constant 0 : index
    %8 = vector.load %arg7[%c0_6, %c0_7] : memref<2x50xf32, #tpu.memory_space<vmem>>, vector<2x50xf32>
    tpu.vector_store %arg7[%c0_6, %c0_7], %7 {strides = array<i32>} : memref<2x50xf32, #tpu.memory_space<vmem>>, vector<2x50xf32>,
    %c7_i32 = arith.constant 7 : i32
    %9 = arith.cmpi eq, %arg0, %c7_i32 : i32
    %10 = arith.extui %9 : i1 to i32
    %c0_i32_8 = arith.constant 0 : i32
    %11 = arith.cmpi ne, %10, %c0_i32_8 : i32
    scf.if %11 {
      %c0_9 = arith.constant 0 : index
      %c0_10 = arith.constant 0 : index
      %12 = vector.load %arg7[%c0_9, %c0_10] : memref<2x50xf32, #tpu.memory_space<vmem>>, vector<2x50xf32>
      %c0_11 = arith.constant 0 : index
      %c0_12 = arith.constant 0 : index
      %13 = vector.load %arg3[%c0_11, %c0_12] : memref<1x50xf32, #tpu.memory_space<vmem>>, vector<1x50xf32>
      %14 = vector.broadcast %13 : vector<1x50xf32> to vector<2x50xf32>
      %15 = arith.addf %12, %14 : vector<2x50xf32>
      %cst_13 = arith.constant dense<0.000000e+00> : vector<2xf32>
      %16 = vector.multi_reduction <add>, %15, %cst_13 [1] : vector<2x50xf32> to vector<2xf32>
      %17 = vector.shape_cast %16 : vector<2xf32> to vector<2x1xf32>
      %cst_14 = arith.constant 5.000000e+01 : f32
      %18 = vector.broadcast %cst_14 : f32 to vector<2x1xf32>
      %19 = arith.divf %17, %18 : vector<2x1xf32>
      %20 = vector.broadcast %19 : vector<2x1xf32> to vector<2x50xf32>
      %21 = arith.subf %15, %20 : vector<2x50xf32>
      %22 = arith.mulf %21, %21 : vector<2x50xf32>
      %cst_15 = arith.constant dense<0.000000e+00> : vector<2xf32>
      %23 = vector.multi_reduction <add>, %22, %cst_15 [1] : vector<2x50xf32> to vector<2xf32>
      %24 = vector.shape_cast %23 : vector<2xf32> to vector<2x1xf32>
      %cst_16 = arith.constant 5.000000e+01 : f32
      %25 = vector.broadcast %cst_16 : f32 to vector<2x1xf32>
      %26 = arith.divf %24, %25 : vector<2x1xf32>
      %27 = vector.broadcast %19 : vector<2x1xf32> to vector<2x50xf32>
      %28 = arith.subf %15, %27 : vector<2x50xf32>
      %cst_17 = arith.constant 9.99999974E-6 : f32
      %29 = vector.broadcast %cst_17 : f32 to vector<2x1xf32>
      %30 = arith.addf %26, %29 : vector<2x1xf32>
      %31 = math.rsqrt %30 : vector<2x1xf32>
      %32 = vector.broadcast %31 : vector<2x1xf32> to vector<2x50xf32>
      %33 = arith.mulf %28, %32 : vector<2x50xf32>
      %c0_18 = arith.constant 0 : index
      %c0_19 = arith.constant 0 : index
      %34 = vector.load %arg4[%c0_18, %c0_19] : memref<1x50xf32, #tpu.memory_space<vmem>>, vector<1x50xf32>
      %35 = vector.broadcast %34 : vector<1x50xf32> to vector<2x50xf32>
      %36 = arith.mulf %33, %35 : vector<2x50xf32>
      %c0_20 = arith.constant 0 : index
      %c0_21 = arith.constant 0 : index
      %37 = vector.load %arg5[%c0_20, %c0_21] : memref<1x50xf32, #tpu.memory_space<vmem>>, vector<1x50xf32>
      %38 = vector.broadcast %37 : vector<1x50xf32> to vector<2x50xf32>
      %39 = arith.addf %36, %38 : vector<2x50xf32>
      %40 = math.tanh %39 : vector<2x50xf32>
      %c0_22 = arith.constant 0 : index
      %c0_23 = arith.constant 0 : index
      %41 = vector.load %arg6[%c0_22, %c0_23] : memref<2x50xf32, #tpu.memory_space<vmem>>, vector<2x50xf32>
      tpu.vector_store %arg6[%c0_22, %c0_23], %40 {strides = array<i32>} : memref<2x50xf32, #tpu.memory_space<vmem>>, vector<2x50xf32>,
    } else {
    }
    return
  }
  func.func @transform_0(%arg0: i32) -> (i32, i32) {
    %c0_i32 = arith.constant 0 : i32
    %c0_i32_0 = arith.constant 0 : i32
    return %c0_i32, %arg0 : i32, i32
  }
  func.func @transform_1(%arg0: i32) -> (i32, i32) {
    %c0_i32 = arith.constant 0 : i32
    %c0_i32_0 = arith.constant 0 : i32
    return %arg0, %c0_i32 : i32, i32
  }
  func.func @transform_2(%arg0: i32) -> (i32, i32) {
    %c0_i32 = arith.constant 0 : i32
    %c0_i32_0 = arith.constant 0 : i32
    %c0_i32_1 = arith.constant 0 : i32
    return %c0_i32, %c0_i32_0 : i32, i32
  }
  func.func @transform_3(%arg0: i32) -> (i32, i32) {
    %c0_i32 = arith.constant 0 : i32
    %c0_i32_0 = arith.constant 0 : i32
    %c0_i32_1 = arith.constant 0 : i32
    return %c0_i32, %c0_i32_0 : i32, i32
  }
  func.func @transform_4(%arg0: i32) -> (i32, i32) {
    %c0_i32 = arith.constant 0 : i32
    %c0_i32_0 = arith.constant 0 : i32
    %c0_i32_1 = arith.constant 0 : i32
    return %c0_i32, %c0_i32_0 : i32, i32
  }
  func.func @transform_5(%arg0: i32) -> (i32, i32) {
    %c0_i32 = arith.constant 0 : i32
    %c0_i32_0 = arith.constant 0 : i32
    %c0_i32_1 = arith.constant 0 : i32
    return %c0_i32, %c0_i32_0 : i32, i32
  }
}

</mosaic_0001>

<llo_original>
// kernel: encoder_forward.3
$region0: #{encoder_forward.3}
  #allocation0 [shape = 'u32[]', space=smem, size = 0x4, offset = 0x4, fixed_abs, tag = 'smem constant byte address 0x4 - core index']
  #allocation1 [shape = 'u32[144,128]{1,0:T(1,128)}', space=vmem, size = 0x12000, scoped, tag = 'internal scratch']
  %s0 = inlined_call_operand.vmem [shape: f32[2048,81], index: 0, kind: input, shape index: {}]
  %s1 = inlined_call_operand.vmem [shape: f32[81,32], index: 1, kind: input, shape index: {}]
  %s2 = inlined_call_operand.vmem [shape: f32[1,32], index: 2, kind: input, shape index: {}]
  %s3 = inlined_call_operand.vmem [shape: f32[2048,32], index: 3, kind: output, shape index: {}]
  %s4 = sld [smem:[#allocation0]]
  $region45: #{encoder_forward.3} parent=0
    _
  %s6 = ssub.s32 1, %s4
  %s7 = scalar_select 0, %s6, %s4
  loop: start=0, step=1, limit=10
  $region2: #{encoder_forward.3} parent=0 // loop_pre_header
    _
  $region3: #{encoder_forward.3} parent=0 // loop_header
    %s9 = sphi 0, %s13
    %p10 = scmp.ge.s32.totalorder %s9, 10
    %s19 = sphi 0, %s21
    %s22 = sphi 0, %s19
    %s23 = sphi 0, %s22
    %s39 = sphi 0, %s23
    %s43 = sphi 0, %s43
    %s45 = sphi 0, %s43
    %s46 = sphi 0, %s45
    %s60 = sphi 0, %s46
    %s64 = sphi 0, %s64
    %s66 = sphi 0, %s64
    %s67 = sphi 0, %s66
    %s81 = sphi 0, %s67
    %s87 = sphi 0, %s89
    %s90 = sphi 0, %s87
    %s91 = sphi 0, %s90
    %s107 = sphi 0, %s91
  $region4: #{encoder_forward.3} parent=0 // loop_header_branch
    %12 = sbr.rel (%p10) target = $region8
  $region5: #{encoder_forward.3} parent=0 // loop_body
    %s14 = ssub.s32 %s9, 1
    %s15 = ssub.s32 %s9, 2
    %s16 = sadd.s32 %s9, 1
    %s17 = ssub.s32 %s9, %s16
    %p18 = scmp.eq.s32.totalorder %s17, 0
    %s20 = sadd.s32 %s19, 1
    %s21 = scalar_select %p18, %s19, %s20
    %p24 = pneg %p18
    %p25 = scmp.eq.s32.totalorder %s9, 7
    %p26 = por %p24, %p25
    %p27 = scmp.ne.s32.totalorder %s19, %s22
    %p28 = scmp.eq.s32.totalorder %s9, 0
    %p29 = por %p27, %p28
    %p30 = scmp.ne.s32.totalorder %s19, %s22
    %p31 = scmp.eq.s32.totalorder %s14, 7
    %p32 = por %p30, %p31
    %p33 = scmp.ne.s32.totalorder %s22, %s23
    %p34 = scmp.eq.s32.totalorder %s14, 0
    %p35 = por %p33, %p34
    %p36 = scmp.ne.s32.totalorder %s22, %s23
    %p37 = scmp.eq.s32.totalorder %s15, 7
    %p38 = por %p36, %p37
    %p40 = scmp.ne.s32.totalorder %s23, %s39
    %p41 = scmp.eq.s32.totalorder %s15, 0
    %p42 = por %p40, %p41
    %s44 = sadd.s32 %s43, 1
    %p47 = scmp.eq.s32.totalorder %s9, 7
    %p48 = scmp.ne.s32.totalorder %s43, %s45
    %p49 = scmp.eq.s32.totalorder %s9, 0
    %p50 = por %p48, %p49
    %p51 = scmp.ne.s32.totalorder %s43, %s45
    %p52 = scmp.eq.s32.totalorder %s14, 7
    %p53 = por %p51, %p52
    %p54 = scmp.ne.s32.totalorder %s45, %s46
    %p55 = scmp.eq.s32.totalorder %s14, 0
    %p56 = por %p54, %p55
    %p57 = scmp.ne.s32.totalorder %s45, %s46
    %p58 = scmp.eq.s32.totalorder %s15, 7
    %p59 = por %p57, %p58
    %p61 = scmp.ne.s32.totalorder %s46, %s60
    %p62 = scmp.eq.s32.totalorder %s15, 0
    %p63 = por %p61, %p62
    %s65 = sadd.s32 %s64, 1
    %p68 = scmp.eq.s32.totalorder %s9, 7
    %p69 = scmp.ne.s32.totalorder %s64, %s66
    %p70 = scmp.eq.s32.totalorder %s9, 0
    %p71 = por %p69, %p70
    %p72 = scmp.ne.s32.totalorder %s64, %s66
    %p73 = scmp.eq.s32.totalorder %s14, 7
    %p74 = por %p72, %p73
    %p75 = scmp.ne.s32.totalorder %s66, %s67
    %p76 = scmp.eq.s32.totalorder %s14, 0
    %p77 = por %p75, %p76
    %p78 = scmp.ne.s32.totalorder %s66, %s67
    %p79 = scmp.eq.s32.totalorder %s15, 7
    %p80 = por %p78, %p79
    %p82 = scmp.ne.s32.totalorder %s67, %s81
    %p83 = scmp.eq.s32.totalorder %s15, 0
    %p84 = por %p82, %p83
    %s85 = ssub.s32 %s9, %s16
    %p86 = scmp.eq.s32.totalorder %s85, 0
    %s88 = sadd.s32 %s87, 1
    %s89 = scalar_select %p86, %s87, %s88
    %p92 = pneg %p86
    %p93 = scmp.eq.s32.totalorder %s9, 7
    %p94 = por %p92, %p93
    %p95 = scmp.ne.s32.totalorder %s87, %s90
    %p96 = scmp.eq.s32.totalorder %s9, 0
    %p97 = por %p95, %p96
    %p98 = scmp.ne.s32.totalorder %s87, %s90
    %p99 = scmp.eq.s32.totalorder %s14, 7
    %p100 = por %p98, %p99
    %p101 = scmp.ne.s32.totalorder %s90, %s91
    %p102 = scmp.eq.s32.totalorder %s14, 0
    %p103 = por %p101, %p102
    %p104 = scmp.ne.s32.totalorder %s90, %s91
    %p105 = scmp.eq.s32.totalorder %s15, 7
    %p106 = por %p104, %p105
    %p108 = scmp.ne.s32.totalorder %s91, %s107
    %p109 = scmp.eq.s32.totalorder %s15, 0
    %p110 = por %p108, %p109
    %p111 = scmp.le.s32.totalorder 1, %s9
    %p112 = scmp.lt.s32.totalorder %s9, 9
    %p113 = pnand %p111, %p112
    %p114 = pneg %p113
    // Predicated region
    $region9: #{encoder_forward.3} parent=5 // pred_check
      _
    $region10: #{encoder_forward.3} parent=5 // pred_check_branch
      %116 = sbr.rel (%p113) target = $region12
    $region11: #{encoder_forward.3} parent=5 // pred_region
      %s117 = ssub.s32 %s9, 1
      // Predicated region
      $region13: #{encoder_forward.3} parent=11 // pred_check
        %p118 = pneg %p56
      $region14: #{encoder_forward.3} parent=11 // pred_check_branch
        %120 = sbr.rel (%p118) target = $region16
      $region15: #{encoder_forward.3} parent=11 // pred_region
        _
      $region16: #{encoder_forward.3} parent=11 // pred_fallthru
        _
      // Predicated region
      $region17: #{encoder_forward.3} parent=11 // pred_check
        %p121 = pneg %p77
      $region18: #{encoder_forward.3} parent=11 // pred_check_branch
        %123 = sbr.rel (%p121) target = $region20
      $region19: #{encoder_forward.3} parent=11 // pred_region
        _
      $region20: #{encoder_forward.3} parent=11 // pred_fallthru
        _
    $region12: #{encoder_forward.3} parent=5 // pred_fallthru
      _
    %p124 = scmp.lt.s32.totalorder %s9, 8
    // Predicated region
    $region21: #{encoder_forward.3} parent=5 // pred_check
      %p125 = pneg %p124
    $region22: #{encoder_forward.3} parent=5 // pred_check_branch
      %127 = sbr.rel (%p125) target = $region24
    $region23: #{encoder_forward.3} parent=5 // pred_region
      // Predicated region
      $region25: #{encoder_forward.3} parent=23 // pred_check
        %p128 = pneg %p29
      $region26: #{encoder_forward.3} parent=23 // pred_check_branch
        %130 = sbr.rel (%p128) target = $region28
      $region27: #{encoder_forward.3} parent=23 // pred_region
        %s131 = smul.u32 32, %s9
        %p132 = scmp.lt.s32.totalorder %s131, 255
        %s133 = scalar_select %p132, %s131, 255
        %s134 = smul.addr %s133, 8
        %s135 = scalar_lea.vmem %s0, %s134
        %s136 = smul.u32 32, %s9
      $region28: #{encoder_forward.3} parent=23 // pred_fallthru
        _
    $region24: #{encoder_forward.3} parent=5 // pred_fallthru
      _
    %p137 = scmp.le.s32.totalorder 1, %s9
    %p138 = scmp.lt.s32.totalorder %s9, 9
    %p139 = pnand %p137, %p138
    %p140 = pneg %p139
    // Predicated region
    $region29: #{encoder_forward.3} parent=5 // pred_check
      _
    $region30: #{encoder_forward.3} parent=5 // pred_check_branch
      %142 = sbr.rel (%p139) target = $region32
    $region31: #{encoder_forward.3} parent=5 // pred_region
      %s143 = ssub.s32 %s9, 1
      %s144 = smul.u32 32, %s14
      %p145 = scmp.lt.s32.totalorder %s144, 255
      %s146 = scalar_select %p145, %s144, 255
      %s147 = smul.addr %s146, 8
      %s148 = scalar_lea.vmem %s0, %s147
      %p149 = pneg %p35
      %p150 = pneg %p32
      %p151 = pneg %p56
      %p152 = pneg %p53
      %p153 = pneg %p77
      %p154 = pneg %p74
      %p155 = pneg %p103
      %p156 = pneg %p100
      %s157 = smul.u32 32, %s14
      %p158 = scmp.lt.s32.totalorder %s157, 255
      %s159 = scalar_select %p158, %s157, 255
      %s160 = smul.addr %s159, 8
      %s161 = scalar_lea.vmem %s3, %s160
      %s162 = smul.u32 32, %s14
      %p163 = scmp.lt.s32.totalorder %s162, 255
      %s164 = scalar_select %p163, %s162, 255
      %s165 = smul.addr %s164, 8
      %s166 = scalar_lea.vmem %s0, %s165
      %s167 = smul.u32 32, %s14
      %s168 = smul.u32 32, %s14
      %p169 = scmp.lt.s32.totalorder %s168, 255
      %s170 = scalar_select %p169, %s168, 255
      %s171 = smul.addr %s170, 8
      %s172 = scalar_lea.vmem %s3, %s171
      %s173 = smul.u32 32, %s14
      %v174 = vld [vmem:[%s166] sm:$0xff]
      %v175 = vld [vmem:[%s166 + $0x8] sm:$0xff]
      %v176 = vld [vmem:[%s166 + $0x10] sm:$0xff]
      %v177 = vld [vmem:[%s166 + $0x18] sm:$0xff]
      %v178 = vld [vmem:[%s166 + $0x20] sm:$0xff]
      %v179 = vld [vmem:[%s166 + $0x28] sm:$0xff]
      %v180 = vld [vmem:[%s166 + $0x30] sm:$0xff]
      %v181 = vld [vmem:[%s166 + $0x38] sm:$0xff]
      %v182 = vld [vmem:[%s166 + $0x40] sm:$0xff]
      %v183 = vld [vmem:[%s166 + $0x48] sm:$0xff]
      %v184 = vld [vmem:[%s166 + $0x50] sm:$0xff]
      %v185 = vld [vmem:[%s166 + $0x58] sm:$0xff]
      %v186 = vld [vmem:[%s166 + $0x60] sm:$0xff]
      %v187 = vld [vmem:[%s166 + $0x68] sm:$0xff]
      %v188 = vld [vmem:[%s166 + $0x70] sm:$0xff]
      %v189 = vld [vmem:[%s166 + $0x78] sm:$0xff]
      %v190 = vld [vmem:[%s166 + $0x80] sm:$0xff]
      %v191 = vld [vmem:[%s166 + $0x88] sm:$0xff]
      %v192 = vld [vmem:[%s166 + $0x90] sm:$0xff]
      %v193 = vld [vmem:[%s166 + $0x98] sm:$0xff]
      %v194 = vld [vmem:[%s166 + $0xa0] sm:$0xff]
      %v195 = vld [vmem:[%s166 + $0xa8] sm:$0xff]
      %v196 = vld [vmem:[%s166 + $0xb0] sm:$0xff]
      %v197 = vld [vmem:[%s166 + $0xb8] sm:$0xff]
      %v198 = vld [vmem:[%s166 + $0xc0] sm:$0xff]
      %v199 = vld [vmem:[%s166 + $0xc8] sm:$0xff]
      %v200 = vld [vmem:[%s166 + $0xd0] sm:$0xff]
      %v201 = vld [vmem:[%s166 + $0xd8] sm:$0xff]
      %v202 = vld [vmem:[%s166 + $0xe0] sm:$0xff]
      %v203 = vld [vmem:[%s166 + $0xe8] sm:$0xff]
      %v204 = vld [vmem:[%s166 + $0xf0] sm:$0xff]
      %v205 = vld [vmem:[%s166 + $0xf8] sm:$0xff]
      %v206 = vld [vmem:[%s1] sm:$0xff]
      %v207 = vld [vmem:[%s1 + $0x8] sm:$0xff]
      %v208 = vld [vmem:[%s1 + $0x10] sm:$0xff]
      %v209 = vld [vmem:[%s1 + $0x18] sm:$0xff]
      %v210 = vld [vmem:[%s1 + $0x20] sm:$0xff]
      %v211 = vld [vmem:[%s1 + $0x28] sm:$0xff]
      %v212 = vld [vmem:[%s1 + $0x30] sm:$0xff]
      %v213 = vld [vmem:[%s1 + $0x38] sm:$0xff]
      %v214 = vld [vmem:[%s1 + $0x40] sm:$0xff]
      %v215 = vld [vmem:[%s1 + $0x48] sm:$0xff]
      %v216 = vld [vmem:[%s1 + $0x50] sm:$0x1]
      %v217 = vld [vmem:[%s2] sm:$0x1]
      %v219 = vlaneseq
      %v220 = vshrl.u32 %v219, 7
      %v221 = vsub.s32 0, %v220
      %v222 = vrot.slane %v217, %v221
      %vm224 = vcmask 662528
      %v226 = vsel %vm224, %v174, 0
      %v229 = vsel %vm224, %v175, 0
      %v232 = vsel %vm224, %v176, 0
      %v235 = vsel %vm224, %v177, 0
      %v238 = vsel %vm224, %v178, 0
      %v241 = vsel %vm224, %v179, 0
      %v244 = vsel %vm224, %v180, 0
      %v247 = vsel %vm224, %v181, 0
      %v250 = vsel %vm224, %v182, 0
      %v253 = vsel %vm224, %v183, 0
      %v256 = vsel %vm224, %v184, 0
      %v259 = vsel %vm224, %v185, 0
      %v262 = vsel %vm224, %v186, 0
      %v265 = vsel %vm224, %v187, 0
      %v268 = vsel %vm224, %v188, 0
      %v271 = vsel %vm224, %v189, 0
      %v274 = vsel %vm224, %v190, 0
      %v277 = vsel %vm224, %v191, 0
      %v280 = vsel %vm224, %v192, 0
      %v283 = vsel %vm224, %v193, 0
      %v286 = vsel %vm224, %v194, 0
      %v289 = vsel %vm224, %v195, 0
      %v292 = vsel %vm224, %v196, 0
      %v295 = vsel %vm224, %v197, 0
      %v298 = vsel %vm224, %v198, 0
      %v301 = vsel %vm224, %v199, 0
      %v304 = vsel %vm224, %v200, 0
      %v307 = vsel %vm224, %v201, 0
      %v310 = vsel %vm224, %v202, 0
      %v313 = vsel %vm224, %v203, 0
      %v316 = vsel %vm224, %v204, 0
      %v319 = vsel %vm224, %v205, 0
      %vm321 = vcmask 1040384
      %v323 = vsel %vm321, %v216, 0
      %325 = vmatprep.subr.mxu0 0.0
      %326 = vmatpush1.msra.mxu0 %v206
      %327 = vmatprep.subr.mxu0 0.0
      %328 = vmatpush1.msra.mxu0 %v207
      %329 = vmatprep.subr.mxu0 0.0
      %330 = vmatpush1.msra.mxu0 %v208
      %331 = vmatprep.subr.mxu0 0.0
      %332 = vmatpush1.msra.mxu0 %v209
      %333 = vmatprep.subr.mxu0 0.0
      %334 = vmatpush1.msra.mxu0 %v210
      %335 = vmatprep.subr.mxu0 0.0
      %336 = vmatpush1.msra.mxu0 %v211
      %337 = vmatprep.subr.mxu0 0.0
      %338 = vmatpush1.msra.mxu0 %v212
      %339 = vmatprep.subr.mxu0 0.0
      %340 = vmatpush1.msra.mxu0 %v213
      %341 = vmatprep.subr.mxu0 0.0
      %342 = vmatpush1.msra.mxu0 %v214
      %343 = vmatprep.subr.mxu0 0.0
      %344 = vmatpush1.msra.mxu0 %v215
      %345 = vmatprep.subr.mxu0 0.0
      %346 = vmatpush1.msra.mxu0 %v323
      %347 = vmatprep.subr.mxu0 0.0
      %348 = vmatpush1.msra.mxu0 0.0
      %349 = vmatprep.subr.mxu0 0.0
      %350 = vmatpush1.msra.mxu0 0.0
      %351 = vmatprep.subr.mxu0 0.0
      %352 = vmatpush1.msra.mxu0 0.0
      %353 = vmatprep.subr.mxu0 0.0
      %354 = vmatpush1.msra.mxu0 0.0
      %355 = vmatprep.subr.mxu0 0.0
      %356 = vmatpush1.msra.mxu0 0.0
      %357 = vmatprep.subr.mxu0 0.0
      %358 = vmatpush1.msra.mxu0 0.0
      %359 = vmatprep.subr.mxu0 0.0
      %360 = vmatpush1.msra.mxu0 0.0
      %361 = vmatprep.subr.mxu0 0.0
      %362 = vmatpush1.msra.mxu0 0.0
      %363 = vmatprep.subr.mxu0 0.0
      %364 = vmatpush1.msra.mxu0 0.0
      %365 = vmatprep.subr.mxu0 0.0
      %366 = vmatpush1.msra.mxu0 0.0
      %367 = vmatprep.subr.mxu0 0.0
      %368 = vmatpush1.msra.mxu0 0.0
      %369 = vmatprep.subr.mxu0 0.0
      %370 = vmatpush1.msra.mxu0 0.0
      %371 = vmatprep.subr.mxu0 0.0
      %372 = vmatpush1.msra.mxu0 0.0
      %373 = vmatprep.subr.mxu0 0.0
      %374 = vmatpush1.msra.mxu0 0.0
      %375 = vmatprep.subr.mxu0 0.0
      %376 = vmatpush1.msra.mxu0 0.0
      %377 = vmatprep.subr.mxu0 0.0
      %378 = vmatpush1.msra.mxu0 0.0
      %379 = vmatprep.subr.mxu0 0.0
      %380 = vmatpush1.msra.mxu0 0.0
      %381 = vmatprep.subr.mxu0 0.0
      %382 = vmatpush1.msra.mxu0 0.0
      %383 = vmatprep.subr.mxu0 0.0
      %384 = vmatpush1.msra.mxu0 0.0
      %385 = vmatprep.subr.mxu0 0.0
      %386 = vmatpush1.msra.mxu0 0.0
      %387 = vmatprep.subr.mxu0 0.0
      %388 = vmatpush1.msra.mxu0 0.0
      %389 = vmatprep.mubr.f32.mxu0 0.0
      %390 = vmatmul.mubr.f32.gmra.mrb[0].mxu0 %v226
      %v391 = vpop.f32.mrb[0].mxu0
      %v392 = vadd.f32 %v222, %v391
      %v393 = vpop.f32.mrb[0].mxu0
      %394 = vmatprep.mubr.f32.mxu0 0.0
      %395 = vmatmul.mubr.f32.gmra.mrb[0].mxu0 %v229
      %v396 = vpop.f32.mrb[0].mxu0
      %v397 = vadd.f32 %v222, %v396
      %v398 = vpop.f32.mrb[0].mxu0
      %399 = vmatprep.mubr.f32.mxu0 0.0
      %400 = vmatmul.mubr.f32.gmra.mrb[0].mxu0 %v232
      %v401 = vpop.f32.mrb[0].mxu0
      %v402 = vadd.f32 %v222, %v401
      %v403 = vpop.f32.mrb[0].mxu0
      %404 = vmatprep.mubr.f32.mxu0 0.0
      %405 = vmatmul.mubr.f32.gmra.mrb[0].mxu0 %v235
      %v406 = vpop.f32.mrb[0].mxu0
      %v407 = vadd.f32 %v222, %v406
      %v408 = vpop.f32.mrb[0].mxu0
      %409 = vmatprep.mubr.f32.mxu0 0.0
      %410 = vmatmul.mubr.f32.gmra.mrb[0].mxu0 %v238
      %v411 = vpop.f32.mrb[0].mxu0
      %v412 = vadd.f32 %v222, %v411
      %v413 = vpop.f32.mrb[0].mxu0
      %414 = vmatprep.mubr.f32.mxu0 0.0
      %415 = vmatmul.mubr.f32.gmra.mrb[0].mxu0 %v241
      %v416 = vpop.f32.mrb[0].mxu0
      %v417 = vadd.f32 %v222, %v416
      %v418 = vpop.f32.mrb[0].mxu0
      %419 = vmatprep.mubr.f32.mxu0 0.0
      %420 = vmatmul.mubr.f32.gmra.mrb[0].mxu0 %v244
      %v421 = vpop.f32.mrb[0].mxu0
      %v422 = vadd.f32 %v222, %v421
      %v423 = vpop.f32.mrb[0].mxu0
      %424 = vmatprep.mubr.f32.mxu0 0.0
      %425 = vmatmul.mubr.f32.gmra.mrb[0].mxu0 %v247
      %v426 = vpop.f32.mrb[0].mxu0
      %v427 = vadd.f32 %v222, %v426
      %v428 = vpop.f32.mrb[0].mxu0
      %429 = vmatprep.mubr.f32.mxu0 0.0
      %430 = vmatmul.mubr.f32.gmra.mrb[0].mxu0 %v250
      %v431 = vpop.f32.mrb[0].mxu0
      %v432 = vadd.f32 %v222, %v431
      %v433 = vpop.f32.mrb[0].mxu0
      %434 = vmatprep.mubr.f32.mxu0 0.0
      %435 = vmatmul.mubr.f32.gmra.mrb[0].mxu0 %v253
      %v436 = vpop.f32.mrb[0].mxu0
      %v437 = vadd.f32 %v222, %v436
      %v438 = vpop.f32.mrb[0].mxu0
      %439 = vmatprep.mubr.f32.mxu0 0.0
      %440 = vmatmul.mubr.f32.gmra.mrb[0].mxu0 %v256
      %v441 = vpop.f32.mrb[0].mxu0
      %v442 = vadd.f32 %v222, %v441
      %v443 = vpop.f32.mrb[0].mxu0
      %444 = vmatprep.mubr.f32.mxu0 0.0
      %445 = vmatmul.mubr.f32.gmra.mrb[0].mxu0 %v259
      %v446 = vpop.f32.mrb[0].mxu0
      %v447 = vadd.f32 %v222, %v446
      %v448 = vpop.f32.mrb[0].mxu0
      %449 = vmatprep.mubr.f32.mxu0 0.0
      %450 = vmatmul.mubr.f32.gmra.mrb[0].mxu0 %v262
      %v451 = vpop.f32.mrb[0].mxu0
      %v452 = vadd.f32 %v222, %v451
      %v453 = vpop.f32.mrb[0].mxu0
      %454 = vmatprep.mubr.f32.mxu0 0.0
      %455 = vmatmul.mubr.f32.gmra.mrb[0].mxu0 %v265
      %v456 = vpop.f32.mrb[0].mxu0
      %v457 = vadd.f32 %v222, %v456
      %v458 = vpop.f32.mrb[0].mxu0
      %459 = vmatprep.mubr.f32.mxu0 0.0
      %460 = vmatmul.mubr.f32.gmra.mrb[0].mxu0 %v268
      %v461 = vpop.f32.mrb[0].mxu0
      %v462 = vadd.f32 %v222, %v461
      %v463 = vpop.f32.mrb[0].mxu0
      %464 = vmatprep.mubr.f32.mxu0 0.0
      %465 = vmatmul.mubr.f32.gmra.mrb[0].mxu0 %v271
      %v466 = vpop.f32.mrb[0].mxu0
      %v467 = vadd.f32 %v222, %v466
      %v468 = vpop.f32.mrb[0].mxu0
      %469 = vmatprep.mubr.f32.mxu0 0.0
      %470 = vmatmul.mubr.f32.gmra.mrb[0].mxu0 %v274
      %v471 = vpop.f32.mrb[0].mxu0
      %v472 = vadd.f32 %v222, %v471
      %v473 = vpop.f32.mrb[0].mxu0
      %474 = vmatprep.mubr.f32.mxu0 0.0
      %475 = vmatmul.mubr.f32.gmra.mrb[0].mxu0 %v277
      %v476 = vpop.f32.mrb[0].mxu0
      %v477 = vadd.f32 %v222, %v476
      %v478 = vpop.f32.mrb[0].mxu0
      %479 = vmatprep.mubr.f32.mxu0 0.0
      %480 = vmatmul.mubr.f32.gmra.mrb[0].mxu0 %v280
      %v481 = vpop.f32.mrb[0].mxu0
      %v482 = vadd.f32 %v222, %v481
      %v483 = vpop.f32.mrb[0].mxu0
      %484 = vmatprep.mubr.f32.mxu0 0.0
      %485 = vmatmul.mubr.f32.gmra.mrb[0].mxu0 %v283
      %v486 = vpop.f32.mrb[0].mxu0
      %v487 = vadd.f32 %v222, %v486
      %v488 = vpop.f32.mrb[0].mxu0
      %489 = vmatprep.mubr.f32.mxu0 0.0
      %490 = vmatmul.mubr.f32.gmra.mrb[0].mxu0 %v286
      %v491 = vpop.f32.mrb[0].mxu0
      %v492 = vadd.f32 %v222, %v491
      %v493 = vpop.f32.mrb[0].mxu0
      %494 = vmatprep.mubr.f32.mxu0 0.0
      %495 = vmatmul.mubr.f32.gmra.mrb[0].mxu0 %v289
      %v496 = vpop.f32.mrb[0].mxu0
      %v497 = vadd.f32 %v222, %v496
      %v498 = vpop.f32.mrb[0].mxu0
      %499 = vmatprep.mubr.f32.mxu0 0.0
      %500 = vmatmul.mubr.f32.gmra.mrb[0].mxu0 %v292
      %v501 = vpop.f32.mrb[0].mxu0
      %v502 = vadd.f32 %v222, %v501
      %v503 = vpop.f32.mrb[0].mxu0
      %504 = vmatprep.mubr.f32.mxu0 0.0
      %505 = vmatmul.mubr.f32.gmra.mrb[0].mxu0 %v295
      %v506 = vpop.f32.mrb[0].mxu0
      %v507 = vadd.f32 %v222, %v506
      %v508 = vpop.f32.mrb[0].mxu0
      %509 = vmatprep.mubr.f32.mxu0 0.0
      %510 = vmatmul.mubr.f32.gmra.mrb[0].mxu0 %v298
      %v511 = vpop.f32.mrb[0].mxu0
      %v512 = vadd.f32 %v222, %v511
      %v513 = vpop.f32.mrb[0].mxu0
      %514 = vmatprep.mubr.f32.mxu0 0.0
      %515 = vmatmul.mubr.f32.gmra.mrb[0].mxu0 %v301
      %v516 = vpop.f32.mrb[0].mxu0
      %v517 = vadd.f32 %v222, %v516
      %v518 = vpop.f32.mrb[0].mxu0
      %519 = vmatprep.mubr.f32.mxu0 0.0
      %520 = vmatmul.mubr.f32.gmra.mrb[0].mxu0 %v304
      %v521 = vpop.f32.mrb[0].mxu0
      %v522 = vadd.f32 %v222, %v521
      %v523 = vpop.f32.mrb[0].mxu0
      %524 = vmatprep.mubr.f32.mxu0 0.0
      %525 = vmatmul.mubr.f32.gmra.mrb[0].mxu0 %v307
      %v526 = vpop.f32.mrb[0].mxu0
      %v527 = vadd.f32 %v222, %v526
      %v528 = vpop.f32.mrb[0].mxu0
      %529 = vmatprep.mubr.f32.mxu0 0.0
      %530 = vmatmul.mubr.f32.gmra.mrb[0].mxu0 %v310
      %v531 = vpop.f32.mrb[0].mxu0
      %v532 = vadd.f32 %v222, %v531
      %v533 = vpop.f32.mrb[0].mxu0
      %534 = vmatprep.mubr.f32.mxu0 0.0
      %535 = vmatmul.mubr.f32.gmra.mrb[0].mxu0 %v313
      %v536 = vpop.f32.mrb[0].mxu0
      %v537 = vadd.f32 %v222, %v536
      %v538 = vpop.f32.mrb[0].mxu0
      %539 = vmatprep.mubr.f32.mxu0 0.0
      %540 = vmatmul.mubr.f32.gmra.mrb[0].mxu0 %v316
      %v541 = vpop.f32.mrb[0].mxu0
      %v542 = vadd.f32 %v222, %v541
      %v543 = vpop.f32.mrb[0].mxu0
      %544 = vmatprep.mubr.f32.mxu0 0.0
      %545 = vmatmul.mubr.f32.gmra.mrb[0].mxu0 %v319
      %v546 = vpop.f32.mrb[0].mxu0
      %v547 = vadd.f32 %v222, %v546
      %v548 = vpop.f32.mrb[0].mxu0
      %549 = vdwg.mxu0
      %v550 = vmax.f32 %v392, 0.0
      %v551 = vmax.f32 %v397, 0.0
      %v552 = vmax.f32 %v402, 0.0
      %v553 = vmax.f32 %v407, 0.0
      %v554 = vmax.f32 %v412, 0.0
      %v555 = vmax.f32 %v417, 0.0
      %v556 = vmax.f32 %v422, 0.0
      %v557 = vmax.f32 %v427, 0.0
      %v558 = vmax.f32 %v432, 0.0
      %v559 = vmax.f32 %v437, 0.0
      %v560 = vmax.f32 %v442, 0.0
      %v561 = vmax.f32 %v447, 0.0
      %v562 = vmax.f32 %v452, 0.0
      %v563 = vmax.f32 %v457, 0.0
      %v564 = vmax.f32 %v462, 0.0
      %v565 = vmax.f32 %v467, 0.0
      %v566 = vmax.f32 %v472, 0.0
      %v567 = vmax.f32 %v477, 0.0
      %v568 = vmax.f32 %v482, 0.0
      %v569 = vmax.f32 %v487, 0.0
      %v570 = vmax.f32 %v492, 0.0
      %v571 = vmax.f32 %v497, 0.0
      %v572 = vmax.f32 %v502, 0.0
      %v573 = vmax.f32 %v507, 0.0
      %v574 = vmax.f32 %v512, 0.0
      %v575 = vmax.f32 %v517, 0.0
      %v576 = vmax.f32 %v522, 0.0
      %v577 = vmax.f32 %v527, 0.0
      %v578 = vmax.f32 %v532, 0.0
      %v579 = vmax.f32 %v537, 0.0
      %v580 = vmax.f32 %v542, 0.0
      %v581 = vmax.f32 %v547, 0.0
      %vm582 = vcmask 261120
      %583 = vst.msk [vmem:[%s172] sm:$0xff] %vm582, %v550
      %584 = vst.msk [vmem:[%s172 + $0x8] sm:$0xff] %vm582, %v551
      %585 = vst.msk [vmem:[%s172 + $0x10] sm:$0xff] %vm582, %v552
      %586 = vst.msk [vmem:[%s172 + $0x18] sm:$0xff] %vm582, %v553
      %587 = vst.msk [vmem:[%s172 + $0x20] sm:$0xff] %vm582, %v554
      %588 = vst.msk [vmem:[%s172 + $0x28] sm:$0xff] %vm582, %v555
      %589 = vst.msk [vmem:[%s172 + $0x30] sm:$0xff] %vm582, %v556
      %590 = vst.msk [vmem:[%s172 + $0x38] sm:$0xff] %vm582, %v557
      %591 = vst.msk [vmem:[%s172 + $0x40] sm:$0xff] %vm582, %v558
      %592 = vst.msk [vmem:[%s172 + $0x48] sm:$0xff] %vm582, %v559
      %593 = vst.msk [vmem:[%s172 + $0x50] sm:$0xff] %vm582, %v560
      %594 = vst.msk [vmem:[%s172 + $0x58] sm:$0xff] %vm582, %v561
      %595 = vst.msk [vmem:[%s172 + $0x60] sm:$0xff] %vm582, %v562
      %596 = vst.msk [vmem:[%s172 + $0x68] sm:$0xff] %vm582, %v563
      %597 = vst.msk [vmem:[%s172 + $0x70] sm:$0xff] %vm582, %v564
      %598 = vst.msk [vmem:[%s172 + $0x78] sm:$0xff] %vm582, %v565
      %599 = vst.msk [vmem:[%s172 + $0x80] sm:$0xff] %vm582, %v566
      %600 = vst.msk [vmem:[%s172 + $0x88] sm:$0xff] %vm582, %v567
      %601 = vst.msk [vmem:[%s172 + $0x90] sm:$0xff] %vm582, %v568
      %602 = vst.msk [vmem:[%s172 + $0x98] sm:$0xff] %vm582, %v569
      %603 = vst.msk [vmem:[%s172 + $0xa0] sm:$0xff] %vm582, %v570
      %604 = vst.msk [vmem:[%s172 + $0xa8] sm:$0xff] %vm582, %v571
      %605 = vst.msk [vmem:[%s172 + $0xb0] sm:$0xff] %vm582, %v572
      %606 = vst.msk [vmem:[%s172 + $0xb8] sm:$0xff] %vm582, %v573
      %607 = vst.msk [vmem:[%s172 + $0xc0] sm:$0xff] %vm582, %v574
      %608 = vst.msk [vmem:[%s172 + $0xc8] sm:$0xff] %vm582, %v575
      %609 = vst.msk [vmem:[%s172 + $0xd0] sm:$0xff] %vm582, %v576
      %610 = vst.msk [vmem:[%s172 + $0xd8] sm:$0xff] %vm582, %v577
      %611 = vst.msk [vmem:[%s172 + $0xe0] sm:$0xff] %vm582, %v578
      %612 = vst.msk [vmem:[%s172 + $0xe8] sm:$0xff] %vm582, %v579
      %613 = vst.msk [vmem:[%s172 + $0xf0] sm:$0xff] %vm582, %v580
      %614 = vst.msk [vmem:[%s172 + $0xf8] sm:$0xff] %vm582, %v581
      %s615 = smul.u32 32, %s14
      %p616 = scmp.lt.s32.totalorder %s615, 255
      %s617 = scalar_select %p616, %s615, 255
      %s618 = smul.addr %s617, 8
      %s619 = scalar_lea.vmem %s3, %s618
      // Predicated region
      $region33: #{encoder_forward.3} parent=31 // pred_check
        %p620 = pneg %p100
      $region34: #{encoder_forward.3} parent=31 // pred_check_branch
        %622 = sbr.rel (%p620) target = $region36
      $region35: #{encoder_forward.3} parent=31 // pred_region
        %s623 = smul.u32 32, %s14
      $region36: #{encoder_forward.3} parent=31 // pred_fallthru
        _
    $region32: #{encoder_forward.3} parent=5 // pred_fallthru
      _
    %p624 = scmp.le.s32.totalorder 2, %s9
    // Predicated region
    $region37: #{encoder_forward.3} parent=5 // pred_check
      %p625 = pneg %p624
    $region38: #{encoder_forward.3} parent=5 // pred_check_branch
      %627 = sbr.rel (%p625) target = $region40
    $region39: #{encoder_forward.3} parent=5 // pred_region
      %s628 = ssub.s32 %s9, 2
      // Predicated region
      $region41: #{encoder_forward.3} parent=39 // pred_check
        %p629 = pneg %p106
      $region42: #{encoder_forward.3} parent=39 // pred_check_branch
        %631 = sbr.rel (%p629) target = $region44
      $region43: #{encoder_forward.3} parent=39 // pred_region
        %s632 = smul.u32 32, %s15
        %p633 = scmp.lt.s32.totalorder %s632, 255
        %s634 = scalar_select %p633, %s632, 255
        %s635 = smul.addr %s634, 8
        %s636 = scalar_lea.vmem %s3, %s635
      $region44: #{encoder_forward.3} parent=39 // pred_fallthru
        _
    $region40: #{encoder_forward.3} parent=5 // pred_fallthru
      _
  $region6: #{encoder_forward.3} parent=0 // loop_footer
    %s13 = sadd.s32 1, %s9
  $region7: #{encoder_forward.3} parent=0 // loop_footer_branch
    %8 = sbr.rel target = $region3
  $region8: #{encoder_forward.3} parent=0 // loop_exit
    _

// kernel: encoder_forward.4
$region0: #{encoder_forward.4}
  #allocation0 [shape = 'u32[]', space=smem, size = 0x4, offset = 0x4, fixed_abs, tag = 'smem constant byte address 0x4 - core index']
  #allocation1 [shape = 'u32[144,128]{1,0:T(1,128)}', space=vmem, size = 0x12000, scoped, tag = 'internal scratch']
  %s0 = inlined_call_operand.vmem [shape: f32[1792,288], index: 0, kind: input, shape index: {}]
  %s1 = inlined_call_operand.vmem [shape: f32[288,32], index: 1, kind: input, shape index: {}]
  %s2 = inlined_call_operand.vmem [shape: f32[1,32], index: 2, kind: input, shape index: {}]
  %s3 = inlined_call_operand.vmem [shape: f32[1792,32], index: 3, kind: output, shape index: {}]
  %s4 = sld [smem:[#allocation0]]
  $region45: #{encoder_forward.4} parent=0
    _
  %s6 = ssub.s32 1, %s4
  %s7 = scalar_select 0, %s6, %s4
  loop: start=0, step=1, limit=9
  $region2: #{encoder_forward.4} parent=0 // loop_pre_header
    _
  $region3: #{encoder_forward.4} parent=0 // loop_header
    %s9 = sphi 0, %s13
    %p10 = scmp.ge.s32.totalorder %s9, 9
    %s19 = sphi 0, %s21
    %s22 = sphi 0, %s19
    %s23 = sphi 0, %s22
    %s39 = sphi 0, %s23
    %s43 = sphi 0, %s43
    %s45 = sphi 0, %s43
    %s46 = sphi 0, %s45
    %s60 = sphi 0, %s46
    %s64 = sphi 0, %s64
    %s66 = sphi 0, %s64
    %s67 = sphi 0, %s66
    %s81 = sphi 0, %s67
    %s87 = sphi 0, %s89
    %s90 = sphi 0, %s87
    %s91 = sphi 0, %s90
    %s107 = sphi 0, %s91
  $region4: #{encoder_forward.4} parent=0 // loop_header_branch
    %12 = sbr.rel (%p10) target = $region8
  $region5: #{encoder_forward.4} parent=0 // loop_body
    %s14 = ssub.s32 %s9, 1
    %s15 = ssub.s32 %s9, 2
    %s16 = sadd.s32 %s9, 1
    %s17 = ssub.s32 %s9, %s16
    %p18 = scmp.eq.s32.totalorder %s17, 0
    %s20 = sadd.s32 %s19, 1
    %s21 = scalar_select %p18, %s19, %s20
    %p24 = pneg %p18
    %p25 = scmp.eq.s32.totalorder %s9, 6
    %p26 = por %p24, %p25
    %p27 = scmp.ne.s32.totalorder %s19, %s22
    %p28 = scmp.eq.s32.totalorder %s9, 0
    %p29 = por %p27, %p28
    %p30 = scmp.ne.s32.totalorder %s19, %s22
    %p31 = scmp.eq.s32.totalorder %s14, 6
    %p32 = por %p30, %p31
    %p33 = scmp.ne.s32.totalorder %s22, %s23
    %p34 = scmp.eq.s32.totalorder %s14, 0
    %p35 = por %p33, %p34
    %p36 = scmp.ne.s32.totalorder %s22, %s23
    %p37 = scmp.eq.s32.totalorder %s15, 6
    %p38 = por %p36, %p37
    %p40 = scmp.ne.s32.totalorder %s23, %s39
    %p41 = scmp.eq.s32.totalorder %s15, 0
    %p42 = por %p40, %p41
    %s44 = sadd.s32 %s43, 1
    %p47 = scmp.eq.s32.totalorder %s9, 6
    %p48 = scmp.ne.s32.totalorder %s43, %s45
    %p49 = scmp.eq.s32.totalorder %s9, 0
    %p50 = por %p48, %p49
    %p51 = scmp.ne.s32.totalorder %s43, %s45
    %p52 = scmp.eq.s32.totalorder %s14, 6
    %p53 = por %p51, %p52
    %p54 = scmp.ne.s32.totalorder %s45, %s46
    %p55 = scmp.eq.s32.totalorder %s14, 0
    %p56 = por %p54, %p55
    %p57 = scmp.ne.s32.totalorder %s45, %s46
    %p58 = scmp.eq.s32.totalorder %s15, 6
    %p59 = por %p57, %p58
    %p61 = scmp.ne.s32.totalorder %s46, %s60
    %p62 = scmp.eq.s32.totalorder %s15, 0
    %p63 = por %p61, %p62
    %s65 = sadd.s32 %s64, 1
    %p68 = scmp.eq.s32.totalorder %s9, 6
    %p69 = scmp.ne.s32.totalorder %s64, %s66
    %p70 = scmp.eq.s32.totalorder %s9, 0
    %p71 = por %p69, %p70
    %p72 = scmp.ne.s32.totalorder %s64, %s66
    %p73 = scmp.eq.s32.totalorder %s14, 6
    %p74 = por %p72, %p73
    %p75 = scmp.ne.s32.totalorder %s66, %s67
    %p76 = scmp.eq.s32.totalorder %s14, 0
    %p77 = por %p75, %p76
    %p78 = scmp.ne.s32.totalorder %s66, %s67
    %p79 = scmp.eq.s32.totalorder %s15, 6
    %p80 = por %p78, %p79
    %p82 = scmp.ne.s32.totalorder %s67, %s81
    %p83 = scmp.eq.s32.totalorder %s15, 0
    %p84 = por %p82, %p83
    %s85 = ssub.s32 %s9, %s16
    %p86 = scmp.eq.s32.totalorder %s85, 0
    %s88 = sadd.s32 %s87, 1
    %s89 = scalar_select %p86, %s87, %s88
    %p92 = pneg %p86
    %p93 = scmp.eq.s32.totalorder %s9, 6
    %p94 = por %p92, %p93
    %p95 = scmp.ne.s32.totalorder %s87, %s90
    %p96 = scmp.eq.s32.totalorder %s9, 0
    %p97 = por %p95, %p96
    %p98 = scmp.ne.s32.totalorder %s87, %s90
    %p99 = scmp.eq.s32.totalorder %s14, 6
    %p100 = por %p98, %p99
    %p101 = scmp.ne.s32.totalorder %s90, %s91
    %p102 = scmp.eq.s32.totalorder %s14, 0
    %p103 = por %p101, %p102
    %p104 = scmp.ne.s32.totalorder %s90, %s91
    %p105 = scmp.eq.s32.totalorder %s15, 6
    %p106 = por %p104, %p105
    %p108 = scmp.ne.s32.totalorder %s91, %s107
    %p109 = scmp.eq.s32.totalorder %s15, 0
    %p110 = por %p108, %p109
    %p111 = scmp.le.s32.totalorder 1, %s9
    %p112 = scmp.lt.s32.totalorder %s9, 8
    %p113 = pnand %p111, %p112
    %p114 = pneg %p113
    // Predicated region
    $region9: #{encoder_forward.4} parent=5 // pred_check
      _
    $region10: #{encoder_forward.4} parent=5 // pred_check_branch
      %116 = sbr.rel (%p113) target = $region12
    $region11: #{encoder_forward.4} parent=5 // pred_region
      %s117 = ssub.s32 %s9, 1
      // Predicated region
      $region13: #{encoder_forward.4} parent=11 // pred_check
        %p118 = pneg %p56
      $region14: #{encoder_forward.4} parent=11 // pred_check_branch
        %120 = sbr.rel (%p118) target = $region16
      $region15: #{encoder_forward.4} parent=11 // pred_region
        _
      $region16: #{encoder_forward.4} parent=11 // pred_fallthru
        _
      // Predicated region
      $region17: #{encoder_forward.4} parent=11 // pred_check
        %p121 = pneg %p77
      $region18: #{encoder_forward.4} parent=11 // pred_check_branch
        %123 = sbr.rel (%p121) target = $region20
      $region19: #{encoder_forward.4} parent=11 // pred_region
        _
      $region20: #{encoder_forward.4} parent=11 // pred_fallthru
        _
    $region12: #{encoder_forward.4} parent=5 // pred_fallthru
      _
    %p124 = scmp.lt.s32.totalorder %s9, 7
    // Predicated region
    $region21: #{encoder_forward.4} parent=5 // pred_check
      %p125 = pneg %p124
    $region22: #{encoder_forward.4} parent=5 // pred_check_branch
      %127 = sbr.rel (%p125) target = $region24
    $region23: #{encoder_forward.4} parent=5 // pred_region
      // Predicated region
      $region25: #{encoder_forward.4} parent=23 // pred_check
        %p128 = pneg %p29
      $region26: #{encoder_forward.4} parent=23 // pred_check_branch
        %130 = sbr.rel (%p128) target = $region28
      $region27: #{encoder_forward.4} parent=23 // pred_region
        %s131 = smul.u32 32, %s9
        %p132 = scmp.lt.s32.totalorder %s131, 223
        %s133 = scalar_select %p132, %s131, 223
        %s134 = smul.addr %s133, 3
        %s135 = smul.addr %s134, 8
        %s136 = scalar_lea.vmem %s0, %s135
        %s137 = smul.u32 32, %s9
      $region28: #{encoder_forward.4} parent=23 // pred_fallthru
        _
    $region24: #{encoder_forward.4} parent=5 // pred_fallthru
      _
    %p138 = scmp.le.s32.totalorder 1, %s9
    %p139 = scmp.lt.s32.totalorder %s9, 8
    %p140 = pnand %p138, %p139
    %p141 = pneg %p140
    // Predicated region
    $region29: #{encoder_forward.4} parent=5 // pred_check
      _
    $region30: #{encoder_forward.4} parent=5 // pred_check_branch
      %143 = sbr.rel (%p140) target = $region32
    $region31: #{encoder_forward.4} parent=5 // pred_region
      %s144 = ssub.s32 %s9, 1
      %s145 = smul.u32 32, %s14
      %p146 = scmp.lt.s32.totalorder %s145, 223
      %s147 = scalar_select %p146, %s145, 223
      %s148 = smul.addr %s147, 3
      %s149 = smul.addr %s148, 8
      %s150 = scalar_lea.vmem %s0, %s149
      %p151 = pneg %p35
      %p152 = pneg %p32
      %p153 = pneg %p56
      %p154 = pneg %p53
      %p155 = pneg %p77
      %p156 = pneg %p74
      %p157 = pneg %p103
      %p158 = pneg %p100
      %s159 = smul.u32 32, %s14
      %p160 = scmp.lt.s32.totalorder %s159, 223
      %s161 = scalar_select %p160, %s159, 223
      %s162 = smul.addr %s161, 8
      %s163 = scalar_lea.vmem %s3, %s162
      %s164 = smul.u32 32, %s14
      %p165 = scmp.lt.s32.totalorder %s164, 223
      %s166 = scalar_select %p165, %s164, 223
      %s167 = smul.addr %s166, 3
      %s168 = smul.addr %s167, 8
      %s169 = scalar_lea.vmem %s0, %s168
      %s170 = smul.u32 32, %s14
      %s171 = smul.u32 32, %s14
      %p172 = scmp.lt.s32.totalorder %s171, 223
      %s173 = scalar_select %p172, %s171, 223
      %s174 = smul.addr %s173, 8
      %s175 = scalar_lea.vmem %s3, %s174
      %s176 = smul.u32 32, %s14
      %v177 = vld [vmem:[%s169] sm:$0xff]
      %v178 = vld [vmem:[%s169 + $0x8] sm:$0xff]
      %v179 = vld [vmem:[%s169 + $0x10] sm:$0xff]
      %v180 = vld [vmem:[%s169 + $0x18] sm:$0xff]
      %v181 = vld [vmem:[%s169 + $0x20] sm:$0xff]
      %v182 = vld [vmem:[%s169 + $0x28] sm:$0xff]
      %v183 = vld [vmem:[%s169 + $0x30] sm:$0xff]
      %v184 = vld [vmem:[%s169 + $0x38] sm:$0xff]
      %v185 = vld [vmem:[%s169 + $0x40] sm:$0xff]
      %v186 = vld [vmem:[%s169 + $0x48] sm:$0xff]
      %v187 = vld [vmem:[%s169 + $0x50] sm:$0xff]
      %v188 = vld [vmem:[%s169 + $0x58] sm:$0xff]
      %v189 = vld [vmem:[%s169 + $0x60] sm:$0xff]
      %v190 = vld [vmem:[%s169 + $0x68] sm:$0xff]
      %v191 = vld [vmem:[%s169 + $0x70] sm:$0xff]
      %v192 = vld [vmem:[%s169 + $0x78] sm:$0xff]
      %v193 = vld [vmem:[%s169 + $0x80] sm:$0xff]
      %v194 = vld [vmem:[%s169 + $0x88] sm:$0xff]
      %v195 = vld [vmem:[%s169 + $0x90] sm:$0xff]
      %v196 = vld [vmem:[%s169 + $0x98] sm:$0xff]
      %v197 = vld [vmem:[%s169 + $0xa0] sm:$0xff]
      %v198 = vld [vmem:[%s169 + $0xa8] sm:$0xff]
      %v199 = vld [vmem:[%s169 + $0xb0] sm:$0xff]
      %v200 = vld [vmem:[%s169 + $0xb8] sm:$0xff]
      %v201 = vld [vmem:[%s169 + $0xc0] sm:$0xff]
      %v202 = vld [vmem:[%s169 + $0xc8] sm:$0xff]
      %v203 = vld [vmem:[%s169 + $0xd0] sm:$0xff]
      %v204 = vld [vmem:[%s169 + $0xd8] sm:$0xff]
      %v205 = vld [vmem:[%s169 + $0xe0] sm:$0xff]
      %v206 = vld [vmem:[%s169 + $0xe8] sm:$0xff]
      %v207 = vld [vmem:[%s169 + $0xf0] sm:$0xff]
      %v208 = vld [vmem:[%s169 + $0xf8] sm:$0xff]
      %v209 = vld [vmem:[%s169 + $0x100] sm:$0xff]
      %v210 = vld [vmem:[%s169 + $0x108] sm:$0xff]
      %v211 = vld [vmem:[%s169 + $0x110] sm:$0xff]
      %v212 = vld [vmem:[%s169 + $0x118] sm:$0xff]
      %v213 = vld [vmem:[%s169 + $0x120] sm:$0xff]
      %v214 = vld [vmem:[%s169 + $0x128] sm:$0xff]
      %v215 = vld [vmem:[%s169 + $0x130] sm:$0xff]
      %v216 = vld [vmem:[%s169 + $0x138] sm:$0xff]
      %v217 = vld [vmem:[%s169 + $0x140] sm:$0xff]
      %v218 = vld [vmem:[%s169 + $0x148] sm:$0xff]
      %v219 = vld [vmem:[%s169 + $0x150] sm:$0xff]
      %v220 = vld [vmem:[%s169 + $0x158] sm:$0xff]
      %v221 = vld [vmem:[%s169 + $0x160] sm:$0xff]
      %v222 = vld [vmem:[%s169 + $0x168] sm:$0xff]
      %v223 = vld [vmem:[%s169 + $0x170] sm:$0xff]
      %v224 = vld [vmem:[%s169 + $0x178] sm:$0xff]
      %v225 = vld [vmem:[%s169 + $0x180] sm:$0xff]
      %v226 = vld [vmem:[%s169 + $0x188] sm:$0xff]
      %v227 = vld [vmem:[%s169 + $0x190] sm:$0xff]
      %v228 = vld [vmem:[%s169 + $0x198] sm:$0xff]
      %v229 = vld [vmem:[%s169 + $0x1a0] sm:$0xff]
      %v230 = vld [vmem:[%s169 + $0x1a8] sm:$0xff]
      %v231 = vld [vmem:[%s169 + $0x1b0] sm:$0xff]
      %v232 = vld [vmem:[%s169 + $0x1b8] sm:$0xff]
      %v233 = vld [vmem:[%s169 + $0x1c0] sm:$0xff]
      %v234 = vld [vmem:[%s169 + $0x1c8] sm:$0xff]
      %v235 = vld [vmem:[%s169 + $0x1d0] sm:$0xff]
      %v236 = vld [vmem:[%s169 + $0x1d8] sm:$0xff]
      %v237 = vld [vmem:[%s169 + $0x1e0] sm:$0xff]
      %v238 = vld [vmem:[%s169 + $0x1e8] sm:$0xff]
      %v239 = vld [vmem:[%s169 + $0x1f0] sm:$0xff]
      %v240 = vld [vmem:[%s169 + $0x1f8] sm:$0xff]
      %v241 = vld [vmem:[%s169 + $0x200] sm:$0xff]
      %v242 = vld [vmem:[%s169 + $0x208] sm:$0xff]
      %v243 = vld [vmem:[%s169 + $0x210] sm:$0xff]
      %v244 = vld [vmem:[%s169 + $0x218] sm:$0xff]
      %v245 = vld [vmem:[%s169 + $0x220] sm:$0xff]
      %v246 = vld [vmem:[%s169 + $0x228] sm:$0xff]
      %v247 = vld [vmem:[%s169 + $0x230] sm:$0xff]
      %v248 = vld [vmem:[%s169 + $0x238] sm:$0xff]
      %v249 = vld [vmem:[%s169 + $0x240] sm:$0xff]
      %v250 = vld [vmem:[%s169 + $0x248] sm:$0xff]
      %v251 = vld [vmem:[%s169 + $0x250] sm:$0xff]
      %v252 = vld [vmem:[%s169 + $0x258] sm:$0xff]
      %v253 = vld [vmem:[%s169 + $0x260] sm:$0xff]
      %v254 = vld [vmem:[%s169 + $0x268] sm:$0xff]
      %v255 = vld [vmem:[%s169 + $0x270] sm:$0xff]
      %v256 = vld [vmem:[%s169 + $0x278] sm:$0xff]
      %v257 = vld [vmem:[%s169 + $0x280] sm:$0xff]
      %v258 = vld [vmem:[%s169 + $0x288] sm:$0xff]
      %v259 = vld [vmem:[%s169 + $0x290] sm:$0xff]
      %v260 = vld [vmem:[%s169 + $0x298] sm:$0xff]
      %v261 = vld [vmem:[%s169 + $0x2a0] sm:$0xff]
      %v262 = vld [vmem:[%s169 + $0x2a8] sm:$0xff]
      %v263 = vld [vmem:[%s169 + $0x2b0] sm:$0xff]
      %v264 = vld [vmem:[%s169 + $0x2b8] sm:$0xff]
      %v265 = vld [vmem:[%s169 + $0x2c0] sm:$0xff]
      %v266 = vld [vmem:[%s169 + $0x2c8] sm:$0xff]
      %v267 = vld [vmem:[%s169 + $0x2d0] sm:$0xff]
      %v268 = vld [vmem:[%s169 + $0x2d8] sm:$0xff]
      %v269 = vld [vmem:[%s169 + $0x2e0] sm:$0xff]
      %v270 = vld [vmem:[%s169 + $0x2e8] sm:$0xff]
      %v271 = vld [vmem:[%s169 + $0x2f0] sm:$0xff]
      %v272 = vld [vmem:[%s169 + $0x2f8] sm:$0xff]
      %v273 = vld [vmem:[%s1] sm:$0xff]
      %v274 = vld [vmem:[%s1 + $0x8] sm:$0xff]
      %v275 = vld [vmem:[%s1 + $0x10] sm:$0xff]
      %v276 = vld [vmem:[%s1 + $0x18] sm:$0xff]
      %v277 = vld [vmem:[%s1 + $0x20] sm:$0xff]
      %v278 = vld [vmem:[%s1 + $0x28] sm:$0xff]
      %v279 = vld [vmem:[%s1 + $0x30] sm:$0xff]
      %v280 = vld [vmem:[%s1 + $0x38] sm:$0xff]
      %v281 = vld [vmem:[%s1 + $0x40] sm:$0xff]
      %v282 = vld [vmem:[%s1 + $0x48] sm:$0xff]
      %v283 = vld [vmem:[%s1 + $0x50] sm:$0xff]
      %v284 = vld [vmem:[%s1 + $0x58] sm:$0xff]
      %v285 = vld [vmem:[%s1 + $0x60] sm:$0xff]
      %v286 = vld [vmem:[%s1 + $0x68] sm:$0xff]
      %v287 = vld [vmem:[%s1 + $0x70] sm:$0xff]
      %v288 = vld [vmem:[%s1 + $0x78] sm:$0xff]
      %v289 = vld [vmem:[%s1 + $0x80] sm:$0xff]
      %v290 = vld [vmem:[%s1 + $0x88] sm:$0xff]
      %v291 = vld [vmem:[%s1 + $0x90] sm:$0xff]
      %v292 = vld [vmem:[%s1 + $0x98] sm:$0xff]
      %v293 = vld [vmem:[%s1 + $0xa0] sm:$0xff]
      %v294 = vld [vmem:[%s1 + $0xa8] sm:$0xff]
      %v295 = vld [vmem:[%s1 + $0xb0] sm:$0xff]
      %v296 = vld [vmem:[%s1 + $0xb8] sm:$0xff]
      %v297 = vld [vmem:[%s1 + $0xc0] sm:$0xff]
      %v298 = vld [vmem:[%s1 + $0xc8] sm:$0xff]
      %v299 = vld [vmem:[%s1 + $0xd0] sm:$0xff]
      %v300 = vld [vmem:[%s1 + $0xd8] sm:$0xff]
      %v301 = vld [vmem:[%s1 + $0xe0] sm:$0xff]
      %v302 = vld [vmem:[%s1 + $0xe8] sm:$0xff]
      %v303 = vld [vmem:[%s1 + $0xf0] sm:$0xff]
      %v304 = vld [vmem:[%s1 + $0xf8] sm:$0xff]
      %v305 = vld [vmem:[%s1 + $0x100] sm:$0xff]
      %v306 = vld [vmem:[%s1 + $0x108] sm:$0xff]
      %v307 = vld [vmem:[%s1 + $0x110] sm:$0xff]
      %v308 = vld [vmem:[%s1 + $0x118] sm:$0xff]
      %v309 = vld [vmem:[%s2] sm:$0x1]
      %v311 = vlaneseq
      %v312 = vshrl.u32 %v311, 7
      %v313 = vsub.s32 0, %v312
      %v314 = vrot.slane %v309, %v313
      %vm316 = vcmask 261120
      %v318 = vsel %vm316, %v179, 0
      %v321 = vsel %vm316, %v182, 0
      %v324 = vsel %vm316, %v185, 0
      %v327 = vsel %vm316, %v188, 0
      %v330 = vsel %vm316, %v191, 0
      %v333 = vsel %vm316, %v194, 0
      %v336 = vsel %vm316, %v197, 0
      %v339 = vsel %vm316, %v200, 0
      %v342 = vsel %vm316, %v203, 0
      %v345 = vsel %vm316, %v206, 0
      %v348 = vsel %vm316, %v209, 0
      %v351 = vsel %vm316, %v212, 0
      %v354 = vsel %vm316, %v215, 0
      %v357 = vsel %vm316, %v218, 0
      %v360 = vsel %vm316, %v221, 0
      %v363 = vsel %vm316, %v224, 0
      %v366 = vsel %vm316, %v227, 0
      %v369 = vsel %vm316, %v230, 0
      %v372 = vsel %vm316, %v233, 0
      %v375 = vsel %vm316, %v236, 0
      %v378 = vsel %vm316, %v239, 0
      %v381 = vsel %vm316, %v242, 0
      %v384 = vsel %vm316, %v245, 0
      %v387 = vsel %vm316, %v248, 0
      %v390 = vsel %vm316, %v251, 0
      %v393 = vsel %vm316, %v254, 0
      %v396 = vsel %vm316, %v257, 0
      %v399 = vsel %vm316, %v260, 0
      %v402 = vsel %vm316, %v263, 0
      %v405 = vsel %vm316, %v266, 0
      %v408 = vsel %vm316, %v269, 0
      %v411 = vsel %vm316, %v272, 0
      %413 = vmatprep.subr.mxu0 0.0
      %414 = vmatpush1.msra.mxu0 %v273
      %415 = vmatprep.subr.mxu0 0.0
      %416 = vmatpush1.msra.mxu0 %v274
      %417 = vmatprep.subr.mxu0 0.0
      %418 = vmatpush1.msra.mxu0 %v275
      %419 = vmatprep.subr.mxu0 0.0
      %420 = vmatpush1.msra.mxu0 %v276
      %421 = vmatprep.subr.mxu0 0.0
      %422 = vmatpush1.msra.mxu0 %v277
      %423 = vmatprep.subr.mxu0 0.0
      %424 = vmatpush1.msra.mxu0 %v278
      %425 = vmatprep.subr.mxu0 0.0
      %426 = vmatpush1.msra.mxu0 %v279
      %427 = vmatprep.subr.mxu0 0.0
      %428 = vmatpush1.msra.mxu0 %v280
      %429 = vmatprep.subr.mxu0 0.0
      %430 = vmatpush1.msra.mxu0 %v281
      %431 = vmatprep.subr.mxu0 0.0
      %432 = vmatpush1.msra.mxu0 %v282
      %433 = vmatprep.subr.mxu0 0.0
      %434 = vmatpush1.msra.mxu0 %v283
      %435 = vmatprep.subr.mxu0 0.0
      %436 = vmatpush1.msra.mxu0 %v284
      %437 = vmatprep.subr.mxu0 0.0
      %438 = vmatpush1.msra.mxu0 %v285
      %439 = vmatprep.subr.mxu0 0.0
      %440 = vmatpush1.msra.mxu0 %v286
      %441 = vmatprep.subr.mxu0 0.0
      %442 = vmatpush1.msra.mxu0 %v287
      %443 = vmatprep.subr.mxu0 0.0
      %444 = vmatpush1.msra.mxu0 %v288
      %445 = vmatprep.subr.mxu0 0.0
      %446 = vmatpush1.msra.mxu0 %v289
      %447 = vmatprep.subr.mxu0 0.0
      %448 = vmatpush1.msra.mxu0 %v290
      %449 = vmatprep.subr.mxu0 0.0
      %450 = vmatpush1.msra.mxu0 %v291
      %451 = vmatprep.subr.mxu0 0.0
      %452 = vmatpush1.msra.mxu0 %v292
      %453 = vmatprep.subr.mxu0 0.0
      %454 = vmatpush1.msra.mxu0 %v293
      %455 = vmatprep.subr.mxu0 0.0
      %456 = vmatpush1.msra.mxu0 %v294
      %457 = vmatprep.subr.mxu0 0.0
      %458 = vmatpush1.msra.mxu0 %v295
      %459 = vmatprep.subr.mxu0 0.0
      %460 = vmatpush1.msra.mxu0 %v296
      %461 = vmatprep.subr.mxu0 0.0
      %462 = vmatpush1.msra.mxu0 %v297
      %463 = vmatprep.subr.mxu0 0.0
      %464 = vmatpush1.msra.mxu0 %v298
      %465 = vmatprep.subr.mxu0 0.0
      %466 = vmatpush1.msra.mxu0 %v299
      %467 = vmatprep.subr.mxu0 0.0
      %468 = vmatpush1.msra.mxu0 %v300
      %469 = vmatprep.subr.mxu0 0.0
      %470 = vmatpush1.msra.mxu0 %v301
      %471 = vmatprep.subr.mxu0 0.0
      %472 = vmatpush1.msra.mxu0 %v302
      %473 = vmatprep.subr.mxu0 0.0
      %474 = vmatpush1.msra.mxu0 %v303
      %475 = vmatprep.subr.mxu0 0.0
      %476 = vmatpush1.msra.mxu0 %v304
      %477 = vmatprep.mubr.f32.mxu0 %v178
      %478 = vmatmul.mubr.f32.gmra.mrb[0].mxu0 %v177
      %v479 = vpop.f32.mrb[0].mxu0
      %v480 = vadd.f32 %v314, %v479
      %v481 = vpop.f32.mrb[0].mxu0
      %482 = vmatprep.mubr.f32.mxu0 %v181
      %483 = vmatmul.mubr.f32.gmra.mrb[0].mxu0 %v180
      %v484 = vpop.f32.mrb[0].mxu0
      %v485 = vadd.f32 %v314, %v484
      %v486 = vpop.f32.mrb[0].mxu0
      %487 = vmatprep.mubr.f32.mxu0 %v184
      %488 = vmatmul.mubr.f32.gmra.mrb[0].mxu0 %v183
      %v489 = vpop.f32.mrb[0].mxu0
      %v490 = vadd.f32 %v314, %v489
      %v491 = vpop.f32.mrb[0].mxu0
      %492 = vmatprep.mubr.f32.mxu0 %v187
      %493 = vmatmul.mubr.f32.gmra.mrb[0].mxu0 %v186
      %v494 = vpop.f32.mrb[0].mxu0
      %v495 = vadd.f32 %v314, %v494
      %v496 = vpop.f32.mrb[0].mxu0
      %497 = vmatprep.mubr.f32.mxu0 %v190
      %498 = vmatmul.mubr.f32.gmra.mrb[0].mxu0 %v189
      %v499 = vpop.f32.mrb[0].mxu0
      %v500 = vadd.f32 %v314, %v499
      %v501 = vpop.f32.mrb[0].mxu0
      %502 = vmatprep.mubr.f32.mxu0 %v193
      %503 = vmatmul.mubr.f32.gmra.mrb[0].mxu0 %v192
      %v504 = vpop.f32.mrb[0].mxu0
      %v505 = vadd.f32 %v314, %v504
      %v506 = vpop.f32.mrb[0].mxu0
      %507 = vmatprep.mubr.f32.mxu0 %v196
      %508 = vmatmul.mubr.f32.gmra.mrb[0].mxu0 %v195
      %v509 = vpop.f32.mrb[0].mxu0
      %v510 = vadd.f32 %v314, %v509
      %v511 = vpop.f32.mrb[0].mxu0
      %512 = vmatprep.mubr.f32.mxu0 %v199
      %513 = vmatmul.mubr.f32.gmra.mrb[0].mxu0 %v198
      %v514 = vpop.f32.mrb[0].mxu0
      %v515 = vadd.f32 %v314, %v514
      %v516 = vpop.f32.mrb[0].mxu0
      %517 = vmatprep.mubr.f32.mxu0 %v202
      %518 = vmatmul.mubr.f32.gmra.mrb[0].mxu0 %v201
      %v519 = vpop.f32.mrb[0].mxu0
      %v520 = vadd.f32 %v314, %v519
      %v521 = vpop.f32.mrb[0].mxu0
      %522 = vmatprep.mubr.f32.mxu0 %v205
      %523 = vmatmul.mubr.f32.gmra.mrb[0].mxu0 %v204
      %v524 = vpop.f32.mrb[0].mxu0
      %v525 = vadd.f32 %v314, %v524
      %v526 = vpop.f32.mrb[0].mxu0
      %527 = vmatprep.mubr.f32.mxu0 %v208
      %528 = vmatmul.mubr.f32.gmra.mrb[0].mxu0 %v207
      %v529 = vpop.f32.mrb[0].mxu0
      %v530 = vadd.f32 %v314, %v529
      %v531 = vpop.f32.mrb[0].mxu0
      %532 = vmatprep.mubr.f32.mxu0 %v211
      %533 = vmatmul.mubr.f32.gmra.mrb[0].mxu0 %v210
      %v534 = vpop.f32.mrb[0].mxu0
      %v535 = vadd.f32 %v314, %v534
      %v536 = vpop.f32.mrb[0].mxu0
      %537 = vmatprep.mubr.f32.mxu0 %v214
      %538 = vmatmul.mubr.f32.gmra.mrb[0].mxu0 %v213
      %v539 = vpop.f32.mrb[0].mxu0
      %v540 = vadd.f32 %v314, %v539
      %v541 = vpop.f32.mrb[0].mxu0
      %542 = vmatprep.mubr.f32.mxu0 %v217
      %543 = vmatmul.mubr.f32.gmra.mrb[0].mxu0 %v216
      %v544 = vpop.f32.mrb[0].mxu0
      %v545 = vadd.f32 %v314, %v544
      %v546 = vpop.f32.mrb[0].mxu0
      %547 = vmatprep.mubr.f32.mxu0 %v220
      %548 = vmatmul.mubr.f32.gmra.mrb[0].mxu0 %v219
      %v549 = vpop.f32.mrb[0].mxu0
      %v550 = vadd.f32 %v314, %v549
      %v551 = vpop.f32.mrb[0].mxu0
      %552 = vmatprep.mubr.f32.mxu0 %v223
      %553 = vmatmul.mubr.f32.gmra.mrb[0].mxu0 %v222
      %v554 = vpop.f32.mrb[0].mxu0
      %v555 = vadd.f32 %v314, %v554
      %v556 = vpop.f32.mrb[0].mxu0
      %557 = vmatprep.mubr.f32.mxu0 %v226
      %558 = vmatmul.mubr.f32.gmra.mrb[0].mxu0 %v225
      %v559 = vpop.f32.mrb[0].mxu0
      %v560 = vadd.f32 %v314, %v559
      %v561 = vpop.f32.mrb[0].mxu0
      %562 = vmatprep.mubr.f32.mxu0 %v229
      %563 = vmatmul.mubr.f32.gmra.mrb[0].mxu0 %v228
      %v564 = vpop.f32.mrb[0].mxu0
      %v565 = vadd.f32 %v314, %v564
      %v566 = vpop.f32.mrb[0].mxu0
      %567 = vmatprep.mubr.f32.mxu0 %v232
      %568 = vmatmul.mubr.f32.gmra.mrb[0].mxu0 %v231
      %v569 = vpop.f32.mrb[0].mxu0
      %v570 = vadd.f32 %v314, %v569
      %v571 = vpop.f32.mrb[0].mxu0
      %572 = vmatprep.mubr.f32.mxu0 %v235
      %573 = vmatmul.mubr.f32.gmra.mrb[0].mxu0 %v234
      %v574 = vpop.f32.mrb[0].mxu0
      %v575 = vadd.f32 %v314, %v574
      %v576 = vpop.f32.mrb[0].mxu0
      %577 = vmatprep.mubr.f32.mxu0 %v238
      %578 = vmatmul.mubr.f32.gmra.mrb[0].mxu0 %v237
      %v579 = vpop.f32.mrb[0].mxu0
      %v580 = vadd.f32 %v314, %v579
      %v581 = vpop.f32.mrb[0].mxu0
      %582 = vmatprep.mubr.f32.mxu0 %v241
      %583 = vmatmul.mubr.f32.gmra.mrb[0].mxu0 %v240
      %v584 = vpop.f32.mrb[0].mxu0
      %v585 = vadd.f32 %v314, %v584
      %v586 = vpop.f32.mrb[0].mxu0
      %587 = vmatprep.mubr.f32.mxu0 %v244
      %588 = vmatmul.mubr.f32.gmra.mrb[0].mxu0 %v243
      %v589 = vpop.f32.mrb[0].mxu0
      %v590 = vadd.f32 %v314, %v589
      %v591 = vpop.f32.mrb[0].mxu0
      %592 = vmatprep.mubr.f32.mxu0 %v247
      %593 = vmatmul.mubr.f32.gmra.mrb[0].mxu0 %v246
      %v594 = vpop.f32.mrb[0].mxu0
      %v595 = vadd.f32 %v314, %v594
      %v596 = vpop.f32.mrb[0].mxu0
      %597 = vmatprep.mubr.f32.mxu0 %v250
      %598 = vmatmul.mubr.f32.gmra.mrb[0].mxu0 %v249
      %v599 = vpop.f32.mrb[0].mxu0
      %v600 = vadd.f32 %v314, %v599
      %v601 = vpop.f32.mrb[0].mxu0
      %602 = vmatprep.mubr.f32.mxu0 %v253
      %603 = vmatmul.mubr.f32.gmra.mrb[0].mxu0 %v252
      %v604 = vpop.f32.mrb[0].mxu0
      %v605 = vadd.f32 %v314, %v604
      %v606 = vpop.f32.mrb[0].mxu0
      %607 = vmatprep.mubr.f32.mxu0 %v256
      %608 = vmatmul.mubr.f32.gmra.mrb[0].mxu0 %v255
      %v609 = vpop.f32.mrb[0].mxu0
      %v610 = vadd.f32 %v314, %v609
      %v611 = vpop.f32.mrb[0].mxu0
      %612 = vmatprep.mubr.f32.mxu0 %v259
      %613 = vmatmul.mubr.f32.gmra.mrb[0].mxu0 %v258
      %v614 = vpop.f32.mrb[0].mxu0
      %v615 = vadd.f32 %v314, %v614
      %v616 = vpop.f32.mrb[0].mxu0
      %617 = vmatprep.mubr.f32.mxu0 %v262
      %618 = vmatmul.mubr.f32.gmra.mrb[0].mxu0 %v261
      %v619 = vpop.f32.mrb[0].mxu0
      %v620 = vadd.f32 %v314, %v619
      %v621 = vpop.f32.mrb[0].mxu0
      %622 = vmatprep.mubr.f32.mxu0 %v265
      %623 = vmatmul.mubr.f32.gmra.mrb[0].mxu0 %v264
      %v624 = vpop.f32.mrb[0].mxu0
      %v625 = vadd.f32 %v314, %v624
      %v626 = vpop.f32.mrb[0].mxu0
      %627 = vmatprep.mubr.f32.mxu0 %v268
      %628 = vmatmul.mubr.f32.gmra.mrb[0].mxu0 %v267
      %v629 = vpop.f32.mrb[0].mxu0
      %v630 = vadd.f32 %v314, %v629
      %v631 = vpop.f32.mrb[0].mxu0
      %632 = vmatprep.mubr.f32.mxu0 %v271
      %633 = vmatmul.mubr.f32.gmra.mrb[0].mxu0 %v270
      %v634 = vpop.f32.mrb[0].mxu0
      %v635 = vadd.f32 %v314, %v634
      %v636 = vpop.f32.mrb[0].mxu0
      %637 = vdwg.mxu0
      %638 = vmatprep.subr.mxu0 0.0
      %639 = vmatpush1.msra.mxu0 %v305
      %640 = vmatprep.subr.mxu0 0.0
      %641 = vmatpush1.msra.mxu0 %v306
      %642 = vmatprep.subr.mxu0 0.0
      %643 = vmatpush1.msra.mxu0 %v307
      %644 = vmatprep.subr.mxu0 0.0
      %645 = vmatpush1.msra.mxu0 %v308
      %646 = vmatprep.subr.mxu0 0.0
      %647 = vmatpush1.msra.mxu0 0.0
      %648 = vmatprep.subr.mxu0 0.0
      %649 = vmatpush1.msra.mxu0 0.0
      %650 = vmatprep.subr.mxu0 0.0
      %651 = vmatpush1.msra.mxu0 0.0
      %652 = vmatprep.subr.mxu0 0.0
      %653 = vmatpush1.msra.mxu0 0.0
      %654 = vmatprep.subr.mxu0 0.0
      %655 = vmatpush1.msra.mxu0 0.0
      %656 = vmatprep.subr.mxu0 0.0
      %657 = vmatpush1.msra.mxu0 0.0
      %658 = vmatprep.subr.mxu0 0.0
      %659 = vmatpush1.msra.mxu0 0.0
      %660 = vmatprep.subr.mxu0 0.0
      %661 = vmatpush1.msra.mxu0 0.0
      %662 = vmatprep.subr.mxu0 0.0
      %663 = vmatpush1.msra.mxu0 0.0
      %664 = vmatprep.subr.mxu0 0.0
      %665 = vmatpush1.msra.mxu0 0.0
      %666 = vmatprep.subr.mxu0 0.0
      %667 = vmatpush1.msra.mxu0 0.0
      %668 = vmatprep.subr.mxu0 0.0
      %669 = vmatpush1.msra.mxu0 0.0
      %670 = vmatprep.subr.mxu0 0.0
      %671 = vmatpush1.msra.mxu0 0.0
      %672 = vmatprep.subr.mxu0 0.0
      %673 = vmatpush1.msra.mxu0 0.0
      %674 = vmatprep.subr.mxu0 0.0
      %675 = vmatpush1.msra.mxu0 0.0
      %676 = vmatprep.subr.mxu0 0.0
      %677 = vmatpush1.msra.mxu0 0.0
      %678 = vmatprep.subr.mxu0 0.0
      %679 = vmatpush1.msra.mxu0 0.0
      %680 = vmatprep.subr.mxu0 0.0
      %681 = vmatpush1.msra.mxu0 0.0
      %682 = vmatprep.subr.mxu0 0.0
      %683 = vmatpush1.msra.mxu0 0.0
      %684 = vmatprep.subr.mxu0 0.0
      %685 = vmatpush1.msra.mxu0 0.0
      %686 = vmatprep.subr.mxu0 0.0
      %687 = vmatpush1.msra.mxu0 0.0
      %688 = vmatprep.subr.mxu0 0.0
      %689 = vmatpush1.msra.mxu0 0.0
      %690 = vmatprep.subr.mxu0 0.0
      %691 = vmatpush1.msra.mxu0 0.0
      %692 = vmatprep.subr.mxu0 0.0
      %693 = vmatpush1.msra.mxu0 0.0
      %694 = vmatprep.subr.mxu0 0.0
      %695 = vmatpush1.msra.mxu0 0.0
      %696 = vmatprep.subr.mxu0 0.0
      %697 = vmatpush1.msra.mxu0 0.0
      %698 = vmatprep.subr.mxu0 0.0
      %699 = vmatpush1.msra.mxu0 0.0
      %700 = vmatprep.subr.mxu0 0.0
      %701 = vmatpush1.msra.mxu0 0.0
      %702 = vmatprep.mubr.f32.mxu0 0.0
      %703 = vmatmul.mubr.f32.gmra.mrb[0].mxu0 %v318
      %v704 = vpop.f32.mrb[0].mxu0
      %v705 = vadd.f32 %v480, %v704
      %v706 = vpop.f32.mrb[0].mxu0
      %707 = vmatprep.mubr.f32.mxu0 0.0
      %708 = vmatmul.mubr.f32.gmra.mrb[0].mxu0 %v321
      %v709 = vpop.f32.mrb[0].mxu0
      %v710 = vadd.f32 %v485, %v709
      %v711 = vpop.f32.mrb[0].mxu0
      %712 = vmatprep.mubr.f32.mxu0 0.0
      %713 = vmatmul.mubr.f32.gmra.mrb[0].mxu0 %v324
      %v714 = vpop.f32.mrb[0].mxu0
      %v715 = vadd.f32 %v490, %v714
      %v716 = vpop.f32.mrb[0].mxu0
      %717 = vmatprep.mubr.f32.mxu0 0.0
      %718 = vmatmul.mubr.f32.gmra.mrb[0].mxu0 %v327
      %v719 = vpop.f32.mrb[0].mxu0
      %v720 = vadd.f32 %v495, %v719
      %v721 = vpop.f32.mrb[0].mxu0
      %722 = vmatprep.mubr.f32.mxu0 0.0
      %723 = vmatmul.mubr.f32.gmra.mrb[0].mxu0 %v330
      %v724 = vpop.f32.mrb[0].mxu0
      %v725 = vadd.f32 %v500, %v724
      %v726 = vpop.f32.mrb[0].mxu0
      %727 = vmatprep.mubr.f32.mxu0 0.0
      %728 = vmatmul.mubr.f32.gmra.mrb[0].mxu0 %v333
      %v729 = vpop.f32.mrb[0].mxu0
      %v730 = vadd.f32 %v505, %v729
      %v731 = vpop.f32.mrb[0].mxu0
      %732 = vmatprep.mubr.f32.mxu0 0.0
      %733 = vmatmul.mubr.f32.gmra.mrb[0].mxu0 %v336
      %v734 = vpop.f32.mrb[0].mxu0
      %v735 = vadd.f32 %v510, %v734
      %v736 = vpop.f32.mrb[0].mxu0
      %737 = vmatprep.mubr.f32.mxu0 0.0
      %738 = vmatmul.mubr.f32.gmra.mrb[0].mxu0 %v339
      %v739 = vpop.f32.mrb[0].mxu0
      %v740 = vadd.f32 %v515, %v739
      %v741 = vpop.f32.mrb[0].mxu0
      %742 = vmatprep.mubr.f32.mxu0 0.0
      %743 = vmatmul.mubr.f32.gmra.mrb[0].mxu0 %v342
      %v744 = vpop.f32.mrb[0].mxu0
      %v745 = vadd.f32 %v520, %v744
      %v746 = vpop.f32.mrb[0].mxu0
      %747 = vmatprep.mubr.f32.mxu0 0.0
      %748 = vmatmul.mubr.f32.gmra.mrb[0].mxu0 %v345
      %v749 = vpop.f32.mrb[0].mxu0
      %v750 = vadd.f32 %v525, %v749
      %v751 = vpop.f32.mrb[0].mxu0
      %752 = vmatprep.mubr.f32.mxu0 0.0
      %753 = vmatmul.mubr.f32.gmra.mrb[0].mxu0 %v348
      %v754 = vpop.f32.mrb[0].mxu0
      %v755 = vadd.f32 %v530, %v754
      %v756 = vpop.f32.mrb[0].mxu0
      %757 = vmatprep.mubr.f32.mxu0 0.0
      %758 = vmatmul.mubr.f32.gmra.mrb[0].mxu0 %v351
      %v759 = vpop.f32.mrb[0].mxu0
      %v760 = vadd.f32 %v535, %v759
      %v761 = vpop.f32.mrb[0].mxu0
      %762 = vmatprep.mubr.f32.mxu0 0.0
      %763 = vmatmul.mubr.f32.gmra.mrb[0].mxu0 %v354
      %v764 = vpop.f32.mrb[0].mxu0
      %v765 = vadd.f32 %v540, %v764
      %v766 = vpop.f32.mrb[0].mxu0
      %767 = vmatprep.mubr.f32.mxu0 0.0
      %768 = vmatmul.mubr.f32.gmra.mrb[0].mxu0 %v357
      %v769 = vpop.f32.mrb[0].mxu0
      %v770 = vadd.f32 %v545, %v769
      %v771 = vpop.f32.mrb[0].mxu0
      %772 = vmatprep.mubr.f32.mxu0 0.0
      %773 = vmatmul.mubr.f32.gmra.mrb[0].mxu0 %v360
      %v774 = vpop.f32.mrb[0].mxu0
      %v775 = vadd.f32 %v550, %v774
      %v776 = vpop.f32.mrb[0].mxu0
      %777 = vmatprep.mubr.f32.mxu0 0.0
      %778 = vmatmul.mubr.f32.gmra.mrb[0].mxu0 %v363
      %v779 = vpop.f32.mrb[0].mxu0
      %v780 = vadd.f32 %v555, %v779
      %v781 = vpop.f32.mrb[0].mxu0
      %782 = vmatprep.mubr.f32.mxu0 0.0
      %783 = vmatmul.mubr.f32.gmra.mrb[0].mxu0 %v366
      %v784 = vpop.f32.mrb[0].mxu0
      %v785 = vadd.f32 %v560, %v784
      %v786 = vpop.f32.mrb[0].mxu0
      %787 = vmatprep.mubr.f32.mxu0 0.0
      %788 = vmatmul.mubr.f32.gmra.mrb[0].mxu0 %v369
      %v789 = vpop.f32.mrb[0].mxu0
      %v790 = vadd.f32 %v565, %v789
      %v791 = vpop.f32.mrb[0].mxu0
      %792 = vmatprep.mubr.f32.mxu0 0.0
      %793 = vmatmul.mubr.f32.gmra.mrb[0].mxu0 %v372
      %v794 = vpop.f32.mrb[0].mxu0
      %v795 = vadd.f32 %v570, %v794
      %v796 = vpop.f32.mrb[0].mxu0
      %797 = vmatprep.mubr.f32.mxu0 0.0
      %798 = vmatmul.mubr.f32.gmra.mrb[0].mxu0 %v375
      %v799 = vpop.f32.mrb[0].mxu0
      %v800 = vadd.f32 %v575, %v799
      %v801 = vpop.f32.mrb[0].mxu0
      %802 = vmatprep.mubr.f32.mxu0 0.0
      %803 = vmatmul.mubr.f32.gmra.mrb[0].mxu0 %v378
      %v804 = vpop.f32.mrb[0].mxu0
      %v805 = vadd.f32 %v580, %v804
      %v806 = vpop.f32.mrb[0].mxu0
      %807 = vmatprep.mubr.f32.mxu0 0.0
      %808 = vmatmul.mubr.f32.gmra.mrb[0].mxu0 %v381
      %v809 = vpop.f32.mrb[0].mxu0
      %v810 = vadd.f32 %v585, %v809
      %v811 = vpop.f32.mrb[0].mxu0
      %812 = vmatprep.mubr.f32.mxu0 0.0
      %813 = vmatmul.mubr.f32.gmra.mrb[0].mxu0 %v384
      %v814 = vpop.f32.mrb[0].mxu0
      %v815 = vadd.f32 %v590, %v814
      %v816 = vpop.f32.mrb[0].mxu0
      %817 = vmatprep.mubr.f32.mxu0 0.0
      %818 = vmatmul.mubr.f32.gmra.mrb[0].mxu0 %v387
      %v819 = vpop.f32.mrb[0].mxu0
      %v820 = vadd.f32 %v595, %v819
      %v821 = vpop.f32.mrb[0].mxu0
      %822 = vmatprep.mubr.f32.mxu0 0.0
      %823 = vmatmul.mubr.f32.gmra.mrb[0].mxu0 %v390
      %v824 = vpop.f32.mrb[0].mxu0
      %v825 = vadd.f32 %v600, %v824
      %v826 = vpop.f32.mrb[0].mxu0
      %827 = vmatprep.mubr.f32.mxu0 0.0
      %828 = vmatmul.mubr.f32.gmra.mrb[0].mxu0 %v393
      %v829 = vpop.f32.mrb[0].mxu0
      %v830 = vadd.f32 %v605, %v829
      %v831 = vpop.f32.mrb[0].mxu0
      %832 = vmatprep.mubr.f32.mxu0 0.0
      %833 = vmatmul.mubr.f32.gmra.mrb[0].mxu0 %v396
      %v834 = vpop.f32.mrb[0].mxu0
      %v835 = vadd.f32 %v610, %v834
      %v836 = vpop.f32.mrb[0].mxu0
      %837 = vmatprep.mubr.f32.mxu0 0.0
      %838 = vmatmul.mubr.f32.gmra.mrb[0].mxu0 %v399
      %v839 = vpop.f32.mrb[0].mxu0
      %v840 = vadd.f32 %v615, %v839
      %v841 = vpop.f32.mrb[0].mxu0
      %842 = vmatprep.mubr.f32.mxu0 0.0
      %843 = vmatmul.mubr.f32.gmra.mrb[0].mxu0 %v402
      %v844 = vpop.f32.mrb[0].mxu0
      %v845 = vadd.f32 %v620, %v844
      %v846 = vpop.f32.mrb[0].mxu0
      %847 = vmatprep.mubr.f32.mxu0 0.0
      %848 = vmatmul.mubr.f32.gmra.mrb[0].mxu0 %v405
      %v849 = vpop.f32.mrb[0].mxu0
      %v850 = vadd.f32 %v625, %v849
      %v851 = vpop.f32.mrb[0].mxu0
      %852 = vmatprep.mubr.f32.mxu0 0.0
      %853 = vmatmul.mubr.f32.gmra.mrb[0].mxu0 %v408
      %v854 = vpop.f32.mrb[0].mxu0
      %v855 = vadd.f32 %v630, %v854
      %v856 = vpop.f32.mrb[0].mxu0
      %857 = vmatprep.mubr.f32.mxu0 0.0
      %858 = vmatmul.mubr.f32.gmra.mrb[0].mxu0 %v411
      %v859 = vpop.f32.mrb[0].mxu0
      %v860 = vadd.f32 %v635, %v859
      %v861 = vpop.f32.mrb[0].mxu0
      %862 = vdwg.mxu0
      %v863 = vmax.f32 %v705, 0.0
      %v864 = vmax.f32 %v710, 0.0
      %v865 = vmax.f32 %v715, 0.0
      %v866 = vmax.f32 %v720, 0.0
      %v867 = vmax.f32 %v725, 0.0
      %v868 = vmax.f32 %v730, 0.0
      %v869 = vmax.f32 %v735, 0.0
      %v870 = vmax.f32 %v740, 0.0
      %v871 = vmax.f32 %v745, 0.0
      %v872 = vmax.f32 %v750, 0.0
      %v873 = vmax.f32 %v755, 0.0
      %v874 = vmax.f32 %v760, 0.0
      %v875 = vmax.f32 %v765, 0.0
      %v876 = vmax.f32 %v770, 0.0
      %v877 = vmax.f32 %v775, 0.0
      %v878 = vmax.f32 %v780, 0.0
      %v879 = vmax.f32 %v785, 0.0
      %v880 = vmax.f32 %v790, 0.0
      %v881 = vmax.f32 %v795, 0.0
      %v882 = vmax.f32 %v800, 0.0
      %v883 = vmax.f32 %v805, 0.0
      %v884 = vmax.f32 %v810, 0.0
      %v885 = vmax.f32 %v815, 0.0
      %v886 = vmax.f32 %v820, 0.0
      %v887 = vmax.f32 %v825, 0.0
      %v888 = vmax.f32 %v830, 0.0
      %v889 = vmax.f32 %v835, 0.0
      %v890 = vmax.f32 %v840, 0.0
      %v891 = vmax.f32 %v845, 0.0
      %v892 = vmax.f32 %v850, 0.0
      %v893 = vmax.f32 %v855, 0.0
      %v894 = vmax.f32 %v860, 0.0
      %895 = vst.msk [vmem:[%s175] sm:$0xff] %vm316, %v863
      %896 = vst.msk [vmem:[%s175 + $0x8] sm:$0xff] %vm316, %v864
      %897 = vst.msk [vmem:[%s175 + $0x10] sm:$0xff] %vm316, %v865
      %898 = vst.msk [vmem:[%s175 + $0x18] sm:$0xff] %vm316, %v866
      %899 = vst.msk [vmem:[%s175 + $0x20] sm:$0xff] %vm316, %v867
      %900 = vst.msk [vmem:[%s175 + $0x28] sm:$0xff] %vm316, %v868
      %901 = vst.msk [vmem:[%s175 + $0x30] sm:$0xff] %vm316, %v869
      %902 = vst.msk [vmem:[%s175 + $0x38] sm:$0xff] %vm316, %v870
      %903 = vst.msk [vmem:[%s175 + $0x40] sm:$0xff] %vm316, %v871
      %904 = vst.msk [vmem:[%s175 + $0x48] sm:$0xff] %vm316, %v872
      %905 = vst.msk [vmem:[%s175 + $0x50] sm:$0xff] %vm316, %v873
      %906 = vst.msk [vmem:[%s175 + $0x58] sm:$0xff] %vm316, %v874
      %907 = vst.msk [vmem:[%s175 + $0x60] sm:$0xff] %vm316, %v875
      %908 = vst.msk [vmem:[%s175 + $0x68] sm:$0xff] %vm316, %v876
      %909 = vst.msk [vmem:[%s175 + $0x70] sm:$0xff] %vm316, %v877
      %910 = vst.msk [vmem:[%s175 + $0x78] sm:$0xff] %vm316, %v878
      %911 = vst.msk [vmem:[%s175 + $0x80] sm:$0xff] %vm316, %v879
      %912 = vst.msk [vmem:[%s175 + $0x88] sm:$0xff] %vm316, %v880
      %913 = vst.msk [vmem:[%s175 + $0x90] sm:$0xff] %vm316, %v881
      %914 = vst.msk [vmem:[%s175 + $0x98] sm:$0xff] %vm316, %v882
      %915 = vst.msk [vmem:[%s175 + $0xa0] sm:$0xff] %vm316, %v883
      %916 = vst.msk [vmem:[%s175 + $0xa8] sm:$0xff] %vm316, %v884
      %917 = vst.msk [vmem:[%s175 + $0xb0] sm:$0xff] %vm316, %v885
      %918 = vst.msk [vmem:[%s175 + $0xb8] sm:$0xff] %vm316, %v886
      %919 = vst.msk [vmem:[%s175 + $0xc0] sm:$0xff] %vm316, %v887
      %920 = vst.msk [vmem:[%s175 + $0xc8] sm:$0xff] %vm316, %v888
      %921 = vst.msk [vmem:[%s175 + $0xd0] sm:$0xff] %vm316, %v889
      %922 = vst.msk [vmem:[%s175 + $0xd8] sm:$0xff] %vm316, %v890
      %923 = vst.msk [vmem:[%s175 + $0xe0] sm:$0xff] %vm316, %v891
      %924 = vst.msk [vmem:[%s175 + $0xe8] sm:$0xff] %vm316, %v892
      %925 = vst.msk [vmem:[%s175 + $0xf0] sm:$0xff] %vm316, %v893
      %926 = vst.msk [vmem:[%s175 + $0xf8] sm:$0xff] %vm316, %v894
      %s927 = smul.u32 32, %s14
      %p928 = scmp.lt.s32.totalorder %s927, 223
      %s929 = scalar_select %p928, %s927, 223
      %s930 = smul.addr %s929, 8
      %s931 = scalar_lea.vmem %s3, %s930
      // Predicated region
      $region33: #{encoder_forward.4} parent=31 // pred_check
        %p932 = pneg %p100
      $region34: #{encoder_forward.4} parent=31 // pred_check_branch
        %934 = sbr.rel (%p932) target = $region36
      $region35: #{encoder_forward.4} parent=31 // pred_region
        %s935 = smul.u32 32, %s14
      $region36: #{encoder_forward.4} parent=31 // pred_fallthru
        _
    $region32: #{encoder_forward.4} parent=5 // pred_fallthru
      _
    %p936 = scmp.le.s32.totalorder 2, %s9
    // Predicated region
    $region37: #{encoder_forward.4} parent=5 // pred_check
      %p937 = pneg %p936
    $region38: #{encoder_forward.4} parent=5 // pred_check_branch
      %939 = sbr.rel (%p937) target = $region40
    $region39: #{encoder_forward.4} parent=5 // pred_region
      %s940 = ssub.s32 %s9, 2
      // Predicated region
      $region41: #{encoder_forward.4} parent=39 // pred_check
        %p941 = pneg %p106
      $region42: #{encoder_forward.4} parent=39 // pred_check_branch
        %943 = sbr.rel (%p941) target = $region44
      $region43: #{encoder_forward.4} parent=39 // pred_region
        %s944 = smul.u32 32, %s15
        %p945 = scmp.lt.s32.totalorder %s944, 223
        %s946 = scalar_select %p945, %s944, 223
        %s947 = smul.addr %s946, 8
        %s948 = scalar_lea.vmem %s3, %s947
      $region44: #{encoder_forward.4} parent=39 // pred_fallthru
        _
    $region40: #{encoder_forward.4} parent=5 // pred_fallthru
      _
  $region6: #{encoder_forward.4} parent=0 // loop_footer
    %s13 = sadd.s32 1, %s9
  $region7: #{encoder_forward.4} parent=0 // loop_footer_branch
    %8 = sbr.rel target = $region3
  $region8: #{encoder_forward.4} parent=0 // loop_exit
    _

// kernel: encoder_forward.5
$region0: #{encoder_forward.5}
  #allocation0 [shape = 'u32[]', space=smem, size = 0x4, offset = 0x4, fixed_abs, tag = 'smem constant byte address 0x4 - core index']
  #allocation1 [shape = 'u32[144,128]{1,0:T(1,128)}', space=vmem, size = 0x12000, scoped, tag = 'internal scratch']
  #allocation2 [shape = 'f32[2,50]{1,0:T(2,128)}', space=vmem, size = 0x400, scoped, tag = 'scratch operand']
  %s0 = inlined_call_operand.vmem [shape: f32[2,27648], index: 0, kind: input, shape index: {}]
  %s1 = inlined_call_operand.vmem [shape: f32[27648,50], index: 1, kind: input, shape index: {}]
  %s2 = inlined_call_operand.vmem [shape: f32[1,50], index: 2, kind: input, shape index: {}]
  %s3 = inlined_call_operand.vmem [shape: f32[1,50], index: 3, kind: input, shape index: {}]
  %s4 = inlined_call_operand.vmem [shape: f32[1,50], index: 4, kind: input, shape index: {}]
  %s5 = inlined_call_operand.hbm [shape: f32[2,50], index: 5, kind: output, shape index: {}]
  %s6 = sld [smem:[#allocation0]]
  $region61: #{encoder_forward.5} parent=0
    _
  %s8 = ssub.s32 1, %s6
  %s9 = scalar_select 0, %s8, %s6
  $region1: #{encoder_forward.5} parent=0
    #allocation3 [shape = 'u8[1024]{0}', space=vmem, size = 0x400, scoped, tag = 'output window, operand 0, single buffered']
    #allocation4 [shape = 's32[2]{0}', space=sflag, size = 0x8, scoped, tag = 'scoped memory for encoder_forward.5']
    %10 = vsyncpa [#allocation4], 0
    loop: start=0, step=1, limit=10
    $region2: #{encoder_forward.5} parent=1 // loop_pre_header
      _
    $region3: #{encoder_forward.5} parent=1 // loop_header
      %s12 = sphi 0, %s16
      %p13 = scmp.ge.s32.totalorder %s12, 10
      %s22 = sphi 0, %s24
      %s25 = sphi 0, %s22
      %s26 = sphi 0, %s25
      %s42 = sphi 0, %s26
      %s48 = sphi 0, %s50
      %s51 = sphi 0, %s48
      %s52 = sphi 0, %s51
      %s68 = sphi 0, %s52
      %s72 = sphi 0, %s72
      %s74 = sphi 0, %s72
      %s75 = sphi 0, %s74
      %s89 = sphi 0, %s75
      %s93 = sphi 0, %s93
      %s95 = sphi 0, %s93
      %s96 = sphi 0, %s95
      %s110 = sphi 0, %s96
      %s114 = sphi 0, %s114
      %s116 = sphi 0, %s114
      %s117 = sphi 0, %s116
      %s131 = sphi 0, %s117
      %s135 = sphi 0, %s135
      %s137 = sphi 0, %s135
      %s138 = sphi 0, %s137
      %s152 = sphi 0, %s138
    $region4: #{encoder_forward.5} parent=1 // loop_header_branch
      %15 = sbr.rel (%p13) target = $region8
    $region5: #{encoder_forward.5} parent=1 // loop_body
      %s17 = ssub.s32 %s12, 1
      %s18 = ssub.s32 %s12, 2
      %s19 = sadd.s32 %s12, 1
      %s20 = ssub.s32 %s12, %s19
      %p21 = scmp.eq.s32.totalorder %s20, 0
      %s23 = sadd.s32 %s22, 1
      %s24 = scalar_select %p21, %s22, %s23
      %p27 = pneg %p21
      %p28 = scmp.eq.s32.totalorder %s12, 7
      %p29 = por %p27, %p28
      %p30 = scmp.ne.s32.totalorder %s22, %s25
      %p31 = scmp.eq.s32.totalorder %s12, 0
      %p32 = por %p30, %p31
      %p33 = scmp.ne.s32.totalorder %s22, %s25
      %p34 = scmp.eq.s32.totalorder %s17, 7
      %p35 = por %p33, %p34
      %p36 = scmp.ne.s32.totalorder %s25, %s26
      %p37 = scmp.eq.s32.totalorder %s17, 0
      %p38 = por %p36, %p37
      %p39 = scmp.ne.s32.totalorder %s25, %s26
      %p40 = scmp.eq.s32.totalorder %s18, 7
      %p41 = por %p39, %p40
      %p43 = scmp.ne.s32.totalorder %s26, %s42
      %p44 = scmp.eq.s32.totalorder %s18, 0
      %p45 = por %p43, %p44
      %s46 = ssub.s32 %s12, %s19
      %p47 = scmp.eq.s32.totalorder %s46, 0
      %s49 = sadd.s32 %s48, 1
      %s50 = scalar_select %p47, %s48, %s49
      %p53 = pneg %p47
      %p54 = scmp.eq.s32.totalorder %s12, 7
      %p55 = por %p53, %p54
      %p56 = scmp.ne.s32.totalorder %s48, %s51
      %p57 = scmp.eq.s32.totalorder %s12, 0
      %p58 = por %p56, %p57
      %p59 = scmp.ne.s32.totalorder %s48, %s51
      %p60 = scmp.eq.s32.totalorder %s17, 7
      %p61 = por %p59, %p60
      %p62 = scmp.ne.s32.totalorder %s51, %s52
      %p63 = scmp.eq.s32.totalorder %s17, 0
      %p64 = por %p62, %p63
      %p65 = scmp.ne.s32.totalorder %s51, %s52
      %p66 = scmp.eq.s32.totalorder %s18, 7
      %p67 = por %p65, %p66
      %p69 = scmp.ne.s32.totalorder %s52, %s68
      %p70 = scmp.eq.s32.totalorder %s18, 0
      %p71 = por %p69, %p70
      %s73 = sadd.s32 %s72, 1
      %p76 = scmp.eq.s32.totalorder %s12, 7
      %p77 = scmp.ne.s32.totalorder %s72, %s74
      %p78 = scmp.eq.s32.totalorder %s12, 0
      %p79 = por %p77, %p78
      %p80 = scmp.ne.s32.totalorder %s72, %s74
      %p81 = scmp.eq.s32.totalorder %s17, 7
      %p82 = por %p80, %p81
      %p83 = scmp.ne.s32.totalorder %s74, %s75
      %p84 = scmp.eq.s32.totalorder %s17, 0
      %p85 = por %p83, %p84
      %p86 = scmp.ne.s32.totalorder %s74, %s75
      %p87 = scmp.eq.s32.totalorder %s18, 7
      %p88 = por %p86, %p87
      %p90 = scmp.ne.s32.totalorder %s75, %s89
      %p91 = scmp.eq.s32.totalorder %s18, 0
      %p92 = por %p90, %p91
      %s94 = sadd.s32 %s93, 1
      %p97 = scmp.eq.s32.totalorder %s12, 7
      %p98 = scmp.ne.s32.totalorder %s93, %s95
      %p99 = scmp.eq.s32.totalorder %s12, 0
      %p100 = por %p98, %p99
      %p101 = scmp.ne.s32.totalorder %s93, %s95
      %p102 = scmp.eq.s32.totalorder %s17, 7
      %p103 = por %p101, %p102
      %p104 = scmp.ne.s32.totalorder %s95, %s96
      %p105 = scmp.eq.s32.totalorder %s17, 0
      %p106 = por %p104, %p105
      %p107 = scmp.ne.s32.totalorder %s95, %s96
      %p108 = scmp.eq.s32.totalorder %s18, 7
      %p109 = por %p107, %p108
      %p111 = scmp.ne.s32.totalorder %s96, %s110
      %p112 = scmp.eq.s32.totalorder %s18, 0
      %p113 = por %p111, %p112
      %s115 = sadd.s32 %s114, 1
      %p118 = scmp.eq.s32.totalorder %s12, 7
      %p119 = scmp.ne.s32.totalorder %s114, %s116
      %p120 = scmp.eq.s32.totalorder %s12, 0
      %p121 = por %p119, %p120
      %p122 = scmp.ne.s32.totalorder %s114, %s116
      %p123 = scmp.eq.s32.totalorder %s17, 7
      %p124 = por %p122, %p123
      %p125 = scmp.ne.s32.totalorder %s116, %s117
      %p126 = scmp.eq.s32.totalorder %s17, 0
      %p127 = por %p125, %p126
      %p128 = scmp.ne.s32.totalorder %s116, %s117
      %p129 = scmp.eq.s32.totalorder %s18, 7
      %p130 = por %p128, %p129
      %p132 = scmp.ne.s32.totalorder %s117, %s131
      %p133 = scmp.eq.s32.totalorder %s18, 0
      %p134 = por %p132, %p133
      %s136 = sadd.s32 %s135, 1
      %p139 = scmp.eq.s32.totalorder %s12, 7
      %p140 = scmp.ne.s32.totalorder %s135, %s137
      %p141 = scmp.eq.s32.totalorder %s12, 0
      %p142 = por %p140, %p141
      %p143 = scmp.ne.s32.totalorder %s135, %s137
      %p144 = scmp.eq.s32.totalorder %s17, 7
      %p145 = por %p143, %p144
      %p146 = scmp.ne.s32.totalorder %s137, %s138
      %p147 = scmp.eq.s32.totalorder %s17, 0
      %p148 = por %p146, %p147
      %p149 = scmp.ne.s32.totalorder %s137, %s138
      %p150 = scmp.eq.s32.totalorder %s18, 7
      %p151 = por %p149, %p150
      %p153 = scmp.ne.s32.totalorder %s138, %s152
      %p154 = scmp.eq.s32.totalorder %s18, 0
      %p155 = por %p153, %p154
      %p156 = scmp.le.s32.totalorder 1, %s12
      %p157 = scmp.lt.s32.totalorder %s12, 9
      %p158 = pnand %p156, %p157
      %p159 = pneg %p158
      // Predicated region
      $region9: #{encoder_forward.5} parent=5 // pred_check
        _
      $region10: #{encoder_forward.5} parent=5 // pred_check_branch
        %161 = sbr.rel (%p158) target = $region12
      $region11: #{encoder_forward.5} parent=5 // pred_region
        %s162 = ssub.s32 %s12, 1
        // Predicated region
        $region13: #{encoder_forward.5} parent=11 // pred_check
          %p163 = pneg %p85
        $region14: #{encoder_forward.5} parent=11 // pred_check_branch
          %165 = sbr.rel (%p163) target = $region16
        $region15: #{encoder_forward.5} parent=11 // pred_region
          _
        $region16: #{encoder_forward.5} parent=11 // pred_fallthru
          _
        // Predicated region
        $region17: #{encoder_forward.5} parent=11 // pred_check
          %p166 = pneg %p106
        $region18: #{encoder_forward.5} parent=11 // pred_check_branch
          %168 = sbr.rel (%p166) target = $region20
        $region19: #{encoder_forward.5} parent=11 // pred_region
          _
        $region20: #{encoder_forward.5} parent=11 // pred_fallthru
          _
        // Predicated region
        $region21: #{encoder_forward.5} parent=11 // pred_check
          %p169 = pneg %p127
        $region22: #{encoder_forward.5} parent=11 // pred_check_branch
          %171 = sbr.rel (%p169) target = $region24
        $region23: #{encoder_forward.5} parent=11 // pred_region
          _
        $region24: #{encoder_forward.5} parent=11 // pred_fallthru
          _
      $region12: #{encoder_forward.5} parent=5 // pred_fallthru
        _
      %p172 = scmp.lt.s32.totalorder %s12, 8
      // Predicated region
      $region25: #{encoder_forward.5} parent=5 // pred_check
        %p173 = pneg %p172
      $region26: #{encoder_forward.5} parent=5 // pred_check_branch
        %175 = sbr.rel (%p173) target = $region28
      $region27: #{encoder_forward.5} parent=5 // pred_region
        // Predicated region
        $region29: #{encoder_forward.5} parent=27 // pred_check
          %p176 = pneg %p32
        $region30: #{encoder_forward.5} parent=27 // pred_check_branch
          %178 = sbr.rel (%p176) target = $region32
        $region31: #{encoder_forward.5} parent=27 // pred_region
          %s179 = smul.u32 27, %s12
          %p180 = scmp.lt.s32.totalorder %s179, 215
          %s181 = scalar_select %p180, %s179, 215
          %s182 = smul.addr %s181, 2
          %s183 = scalar_lea.vmem %s0, %s182
          %s184 = smul.u32 27, %s12
        $region32: #{encoder_forward.5} parent=27 // pred_fallthru
          _
        // Predicated region
        $region33: #{encoder_forward.5} parent=27 // pred_check
          %p185 = pneg %p58
        $region34: #{encoder_forward.5} parent=27 // pred_check_branch
          %187 = sbr.rel (%p185) target = $region36
        $region35: #{encoder_forward.5} parent=27 // pred_region
          %s188 = smul.u32 432, %s12
          %p189 = scmp.lt.s32.totalorder %s188, 3455
          %s190 = scalar_select %p189, %s188, 3455
          %s191 = smul.addr %s190, 8
          %s192 = scalar_lea.vmem %s1, %s191
          %s193 = smul.u32 432, %s12
        $region36: #{encoder_forward.5} parent=27 // pred_fallthru
          _
      $region28: #{encoder_forward.5} parent=5 // pred_fallthru
        _
      %p194 = scmp.le.s32.totalorder 1, %s12
      %p195 = scmp.lt.s32.totalorder %s12, 9
      %p196 = pnand %p194, %p195
      %p197 = pneg %p196
      // Predicated region
      $region37: #{encoder_forward.5} parent=5 // pred_check
        _
      $region38: #{encoder_forward.5} parent=5 // pred_check_branch
        %199 = sbr.rel (%p196) target = $region40
      $region39: #{encoder_forward.5} parent=5 // pred_region
        %s200 = ssub.s32 %s12, 1
        %s201 = smul.u32 27, %s17
        %p202 = scmp.lt.s32.totalorder %s201, 215
        %s203 = scalar_select %p202, %s201, 215
        %s204 = smul.addr %s203, 2
        %s205 = scalar_lea.vmem %s0, %s204
        %p206 = pneg %p38
        %p207 = pneg %p35
        %s208 = smul.u32 432, %s17
        %p209 = scmp.lt.s32.totalorder %s208, 3455
        %s210 = scalar_select %p209, %s208, 3455
        %s211 = smul.addr %s210, 8
        %s212 = scalar_lea.vmem %s1, %s211
        %p213 = pneg %p64
        %p214 = pneg %p61
        %p215 = pneg %p85
        %p216 = pneg %p82
        %p217 = pneg %p106
        %p218 = pneg %p103
        %p219 = pneg %p127
        %p220 = pneg %p124
        %p221 = pneg %p148
        %p222 = pneg %p145
        %s223 = smul.u32 27, %s17
        %p224 = scmp.lt.s32.totalorder %s223, 215
        %s225 = scalar_select %p224, %s223, 215
        %s226 = smul.addr %s225, 2
        %s227 = scalar_lea.vmem %s0, %s226
        %s228 = smul.u32 27, %s17
        %s229 = smul.u32 432, %s17
        %p230 = scmp.lt.s32.totalorder %s229, 3455
        %s231 = scalar_select %p230, %s229, 3455
        %s232 = smul.addr %s231, 8
        %s233 = scalar_lea.vmem %s1, %s232
        %s234 = smul.u32 432, %s17
        %p235 = scmp.eq.s32.totalorder %s17, 0
        // Predicated region
        $region41: #{encoder_forward.5} parent=39 // pred_check
          %p236 = pneg %p235
        $region42: #{encoder_forward.5} parent=39 // pred_check_branch
          %238 = sbr.rel (%p236) target = $region44
        $region43: #{encoder_forward.5} parent=39 // pred_region
          %vm239 = vcmask 402432
          %240 = vst.msk [vmem:[#allocation2] sm:$0x3] %vm239, 0.0
        $region44: #{encoder_forward.5} parent=39 // pred_fallthru
          _
        %v241 = vld [vmem:[#allocation2] sm:$0x3]
        %v242 = vld [vmem:[%s227] sm:$0xff]
        %v243 = vld [vmem:[%s227 + $0x8] sm:$0xff]
        %v244 = vld [vmem:[%s227 + $0x10] sm:$0xff]
        %v245 = vld [vmem:[%s227 + $0x18] sm:$0xff]
        %v246 = vld [vmem:[%s227 + $0x20] sm:$0xff]
        %v247 = vld [vmem:[%s227 + $0x28] sm:$0xff]
        %v248 = vld [vmem:[%s227 + $0x30] sm:$0x3f]
        %v249 = vld [vmem:[%s233] sm:$0xff]
        %v250 = vld [vmem:[%s233 + $0x8] sm:$0xff]
        %v251 = vld [vmem:[%s233 + $0x10] sm:$0xff]
        %v252 = vld [vmem:[%s233 + $0x18] sm:$0xff]
        %v253 = vld [vmem:[%s233 + $0x20] sm:$0xff]
        %v254 = vld [vmem:[%s233 + $0x28] sm:$0xff]
        %v255 = vld [vmem:[%s233 + $0x30] sm:$0xff]
        %v256 = vld [vmem:[%s233 + $0x38] sm:$0xff]
        %v257 = vld [vmem:[%s233 + $0x40] sm:$0xff]
        %v258 = vld [vmem:[%s233 + $0x48] sm:$0xff]
        %v259 = vld [vmem:[%s233 + $0x50] sm:$0xff]
        %v260 = vld [vmem:[%s233 + $0x58] sm:$0xff]
        %v261 = vld [vmem:[%s233 + $0x60] sm:$0xff]
        %v262 = vld [vmem:[%s233 + $0x68] sm:$0xff]
        %v263 = vld [vmem:[%s233 + $0x70] sm:$0xff]
        %v264 = vld [vmem:[%s233 + $0x78] sm:$0xff]
        %v265 = vld [vmem:[%s233 + $0x80] sm:$0xff]
        %v266 = vld [vmem:[%s233 + $0x88] sm:$0xff]
        %v267 = vld [vmem:[%s233 + $0x90] sm:$0xff]
        %v268 = vld [vmem:[%s233 + $0x98] sm:$0xff]
        %v269 = vld [vmem:[%s233 + $0xa0] sm:$0xff]
        %v270 = vld [vmem:[%s233 + $0xa8] sm:$0xff]
        %v271 = vld [vmem:[%s233 + $0xb0] sm:$0xff]
        %v272 = vld [vmem:[%s233 + $0xb8] sm:$0xff]
        %v273 = vld [vmem:[%s233 + $0xc0] sm:$0xff]
        %v274 = vld [vmem:[%s233 + $0xc8] sm:$0xff]
        %v275 = vld [vmem:[%s233 + $0xd0] sm:$0xff]
        %v276 = vld [vmem:[%s233 + $0xd8] sm:$0xff]
        %v277 = vld [vmem:[%s233 + $0xe0] sm:$0xff]
        %v278 = vld [vmem:[%s233 + $0xe8] sm:$0xff]
        %v279 = vld [vmem:[%s233 + $0xf0] sm:$0xff]
        %v280 = vld [vmem:[%s233 + $0xf8] sm:$0xff]
        %v281 = vld [vmem:[%s233 + $0x100] sm:$0xff]
        %v282 = vld [vmem:[%s233 + $0x108] sm:$0xff]
        %v283 = vld [vmem:[%s233 + $0x110] sm:$0xff]
        %v284 = vld [vmem:[%s233 + $0x118] sm:$0xff]
        %v285 = vld [vmem:[%s233 + $0x120] sm:$0xff]
        %v286 = vld [vmem:[%s233 + $0x128] sm:$0xff]
        %v287 = vld [vmem:[%s233 + $0x130] sm:$0xff]
        %v288 = vld [vmem:[%s233 + $0x138] sm:$0xff]
        %v289 = vld [vmem:[%s233 + $0x140] sm:$0xff]
        %v290 = vld [vmem:[%s233 + $0x148] sm:$0xff]
        %v291 = vld [vmem:[%s233 + $0x150] sm:$0xff]
        %v292 = vld [vmem:[%s233 + $0x158] sm:$0xff]
        %v293 = vld [vmem:[%s233 + $0x160] sm:$0xff]
        %v294 = vld [vmem:[%s233 + $0x168] sm:$0xff]
        %v295 = vld [vmem:[%s233 + $0x170] sm:$0xff]
        %v296 = vld [vmem:[%s233 + $0x178] sm:$0xff]
        %v297 = vld [vmem:[%s233 + $0x180] sm:$0xff]
        %v298 = vld [vmem:[%s233 + $0x188] sm:$0xff]
        %v299 = vld [vmem:[%s233 + $0x190] sm:$0xff]
        %v300 = vld [vmem:[%s233 + $0x198] sm:$0xff]
        %v301 = vld [vmem:[%s233 + $0x1a0] sm:$0xff]
        %v302 = vld [vmem:[%s233 + $0x1a8] sm:$0xff]
        %v303 = vld [vmem:[%s233 + $0x1b0] sm:$0xff]
        %v304 = vld [vmem:[%s233 + $0x1b8] sm:$0xff]
        %v305 = vld [vmem:[%s233 + $0x1c0] sm:$0xff]
        %v306 = vld [vmem:[%s233 + $0x1c8] sm:$0xff]
        %v307 = vld [vmem:[%s233 + $0x1d0] sm:$0xff]
        %v308 = vld [vmem:[%s233 + $0x1d8] sm:$0xff]
        %v309 = vld [vmem:[%s233 + $0x1e0] sm:$0xff]
        %v310 = vld [vmem:[%s233 + $0x1e8] sm:$0xff]
        %v311 = vld [vmem:[%s233 + $0x1f0] sm:$0xff]
        %v312 = vld [vmem:[%s233 + $0x1f8] sm:$0xff]
        %v313 = vld [vmem:[%s233 + $0x200] sm:$0xff]
        %v314 = vld [vmem:[%s233 + $0x208] sm:$0xff]
        %v315 = vld [vmem:[%s233 + $0x210] sm:$0xff]
        %v316 = vld [vmem:[%s233 + $0x218] sm:$0xff]
        %v317 = vld [vmem:[%s233 + $0x220] sm:$0xff]
        %v318 = vld [vmem:[%s233 + $0x228] sm:$0xff]
        %v319 = vld [vmem:[%s233 + $0x230] sm:$0xff]
        %v320 = vld [vmem:[%s233 + $0x238] sm:$0xff]
        %v321 = vld [vmem:[%s233 + $0x240] sm:$0xff]
        %v322 = vld [vmem:[%s233 + $0x248] sm:$0xff]
        %v323 = vld [vmem:[%s233 + $0x250] sm:$0xff]
        %v324 = vld [vmem:[%s233 + $0x258] sm:$0xff]
        %v325 = vld [vmem:[%s233 + $0x260] sm:$0xff]
        %v326 = vld [vmem:[%s233 + $0x268] sm:$0xff]
        %v327 = vld [vmem:[%s233 + $0x270] sm:$0xff]
        %v328 = vld [vmem:[%s233 + $0x278] sm:$0xff]
        %v329 = vld [vmem:[%s233 + $0x280] sm:$0xff]
        %v330 = vld [vmem:[%s233 + $0x288] sm:$0xff]
        %v331 = vld [vmem:[%s233 + $0x290] sm:$0xff]
        %v332 = vld [vmem:[%s233 + $0x298] sm:$0xff]
        %v333 = vld [vmem:[%s233 + $0x2a0] sm:$0xff]
        %v334 = vld [vmem:[%s233 + $0x2a8] sm:$0xff]
        %v335 = vld [vmem:[%s233 + $0x2b0] sm:$0xff]
        %v336 = vld [vmem:[%s233 + $0x2b8] sm:$0xff]
        %v337 = vld [vmem:[%s233 + $0x2c0] sm:$0xff]
        %v338 = vld [vmem:[%s233 + $0x2c8] sm:$0xff]
        %v339 = vld [vmem:[%s233 + $0x2d0] sm:$0xff]
        %v340 = vld [vmem:[%s233 + $0x2d8] sm:$0xff]
        %v341 = vld [vmem:[%s233 + $0x2e0] sm:$0xff]
        %v342 = vld [vmem:[%s233 + $0x2e8] sm:$0xff]
        %v343 = vld [vmem:[%s233 + $0x2f0] sm:$0xff]
        %v344 = vld [vmem:[%s233 + $0x2f8] sm:$0xff]
        %v345 = vld [vmem:[%s233 + $0x300] sm:$0xff]
        %v346 = vld [vmem:[%s233 + $0x308] sm:$0xff]
        %v347 = vld [vmem:[%s233 + $0x310] sm:$0xff]
        %v348 = vld [vmem:[%s233 + $0x318] sm:$0xff]
        %v349 = vld [vmem:[%s233 + $0x320] sm:$0xff]
        %v350 = vld [vmem:[%s233 + $0x328] sm:$0xff]
        %v351 = vld [vmem:[%s233 + $0x330] sm:$0xff]
        %v352 = vld [vmem:[%s233 + $0x338] sm:$0xff]
        %v353 = vld [vmem:[%s233 + $0x340] sm:$0xff]
        %v354 = vld [vmem:[%s233 + $0x348] sm:$0xff]
        %v355 = vld [vmem:[%s233 + $0x350] sm:$0xff]
        %v356 = vld [vmem:[%s233 + $0x358] sm:$0xff]
        %v357 = vld [vmem:[%s233 + $0x360] sm:$0xff]
        %v358 = vld [vmem:[%s233 + $0x368] sm:$0xff]
        %v359 = vld [vmem:[%s233 + $0x370] sm:$0xff]
        %v360 = vld [vmem:[%s233 + $0x378] sm:$0xff]
        %v361 = vld [vmem:[%s233 + $0x380] sm:$0xff]
        %v362 = vld [vmem:[%s233 + $0x388] sm:$0xff]
        %v363 = vld [vmem:[%s233 + $0x390] sm:$0xff]
        %v364 = vld [vmem:[%s233 + $0x398] sm:$0xff]
        %v365 = vld [vmem:[%s233 + $0x3a0] sm:$0xff]
        %v366 = vld [vmem:[%s233 + $0x3a8] sm:$0xff]
        %v367 = vld [vmem:[%s233 + $0x3b0] sm:$0xff]
        %v368 = vld [vmem:[%s233 + $0x3b8] sm:$0xff]
        %v369 = vld [vmem:[%s233 + $0x3c0] sm:$0xff]
        %v370 = vld [vmem:[%s233 + $0x3c8] sm:$0xff]
        %v371 = vld [vmem:[%s233 + $0x3d0] sm:$0xff]
        %v372 = vld [vmem:[%s233 + $0x3d8] sm:$0xff]
        %v373 = vld [vmem:[%s233 + $0x3e0] sm:$0xff]
        %v374 = vld [vmem:[%s233 + $0x3e8] sm:$0xff]
        %v375 = vld [vmem:[%s233 + $0x3f0] sm:$0xff]
        %v376 = vld [vmem:[%s233 + $0x3f8] sm:$0xff]
        %v377 = vld [vmem:[%s233 + $0x400] sm:$0xff]
        %v378 = vld [vmem:[%s233 + $0x408] sm:$0xff]
        %v379 = vld [vmem:[%s233 + $0x410] sm:$0xff]
        %v380 = vld [vmem:[%s233 + $0x418] sm:$0xff]
        %v381 = vld [vmem:[%s233 + $0x420] sm:$0xff]
        %v382 = vld [vmem:[%s233 + $0x428] sm:$0xff]
        %v383 = vld [vmem:[%s233 + $0x430] sm:$0xff]
        %v384 = vld [vmem:[%s233 + $0x438] sm:$0xff]
        %v385 = vld [vmem:[%s233 + $0x440] sm:$0xff]
        %v386 = vld [vmem:[%s233 + $0x448] sm:$0xff]
        %v387 = vld [vmem:[%s233 + $0x450] sm:$0xff]
        %v388 = vld [vmem:[%s233 + $0x458] sm:$0xff]
        %v389 = vld [vmem:[%s233 + $0x460] sm:$0xff]
        %v390 = vld [vmem:[%s233 + $0x468] sm:$0xff]
        %v391 = vld [vmem:[%s233 + $0x470] sm:$0xff]
        %v392 = vld [vmem:[%s233 + $0x478] sm:$0xff]
        %v393 = vld [vmem:[%s233 + $0x480] sm:$0xff]
        %v394 = vld [vmem:[%s233 + $0x488] sm:$0xff]
        %v395 = vld [vmem:[%s233 + $0x490] sm:$0xff]
        %v396 = vld [vmem:[%s233 + $0x498] sm:$0xff]
        %v397 = vld [vmem:[%s233 + $0x4a0] sm:$0xff]
        %v398 = vld [vmem:[%s233 + $0x4a8] sm:$0xff]
        %v399 = vld [vmem:[%s233 + $0x4b0] sm:$0xff]
        %v400 = vld [vmem:[%s233 + $0x4b8] sm:$0xff]
        %v401 = vld [vmem:[%s233 + $0x4c0] sm:$0xff]
        %v402 = vld [vmem:[%s233 + $0x4c8] sm:$0xff]
        %v403 = vld [vmem:[%s233 + $0x4d0] sm:$0xff]
        %v404 = vld [vmem:[%s233 + $0x4d8] sm:$0xff]
        %v405 = vld [vmem:[%s233 + $0x4e0] sm:$0xff]
        %v406 = vld [vmem:[%s233 + $0x4e8] sm:$0xff]
        %v407 = vld [vmem:[%s233 + $0x4f0] sm:$0xff]
        %v408 = vld [vmem:[%s233 + $0x4f8] sm:$0xff]
        %v409 = vld [vmem:[%s233 + $0x500] sm:$0xff]
        %v410 = vld [vmem:[%s233 + $0x508] sm:$0xff]
        %v411 = vld [vmem:[%s233 + $0x510] sm:$0xff]
        %v412 = vld [vmem:[%s233 + $0x518] sm:$0xff]
        %v413 = vld [vmem:[%s233 + $0x520] sm:$0xff]
        %v414 = vld [vmem:[%s233 + $0x528] sm:$0xff]
        %v415 = vld [vmem:[%s233 + $0x530] sm:$0xff]
        %v416 = vld [vmem:[%s233 + $0x538] sm:$0xff]
        %v417 = vld [vmem:[%s233 + $0x540] sm:$0xff]
        %v418 = vld [vmem:[%s233 + $0x548] sm:$0xff]
        %v419 = vld [vmem:[%s233 + $0x550] sm:$0xff]
        %v420 = vld [vmem:[%s233 + $0x558] sm:$0xff]
        %v421 = vld [vmem:[%s233 + $0x560] sm:$0xff]
        %v422 = vld [vmem:[%s233 + $0x568] sm:$0xff]
        %v423 = vld [vmem:[%s233 + $0x570] sm:$0xff]
        %v424 = vld [vmem:[%s233 + $0x578] sm:$0xff]
        %v425 = vld [vmem:[%s233 + $0x580] sm:$0xff]
        %v426 = vld [vmem:[%s233 + $0x588] sm:$0xff]
        %v427 = vld [vmem:[%s233 + $0x590] sm:$0xff]
        %v428 = vld [vmem:[%s233 + $0x598] sm:$0xff]
        %v429 = vld [vmem:[%s233 + $0x5a0] sm:$0xff]
        %v430 = vld [vmem:[%s233 + $0x5a8] sm:$0xff]
        %v431 = vld [vmem:[%s233 + $0x5b0] sm:$0xff]
        %v432 = vld [vmem:[%s233 + $0x5b8] sm:$0xff]
        %v433 = vld [vmem:[%s233 + $0x5c0] sm:$0xff]
        %v434 = vld [vmem:[%s233 + $0x5c8] sm:$0xff]
        %v435 = vld [vmem:[%s233 + $0x5d0] sm:$0xff]
        %v436 = vld [vmem:[%s233 + $0x5d8] sm:$0xff]
        %v437 = vld [vmem:[%s233 + $0x5e0] sm:$0xff]
        %v438 = vld [vmem:[%s233 + $0x5e8] sm:$0xff]
        %v439 = vld [vmem:[%s233 + $0x5f0] sm:$0xff]
        %v440 = vld [vmem:[%s233 + $0x5f8] sm:$0xff]
        %v441 = vld [vmem:[%s233 + $0x600] sm:$0xff]
        %v442 = vld [vmem:[%s233 + $0x608] sm:$0xff]
        %v443 = vld [vmem:[%s233 + $0x610] sm:$0xff]
        %v444 = vld [vmem:[%s233 + $0x618] sm:$0xff]
        %v445 = vld [vmem:[%s233 + $0x620] sm:$0xff]
        %v446 = vld [vmem:[%s233 + $0x628] sm:$0xff]
        %v447 = vld [vmem:[%s233 + $0x630] sm:$0xff]
        %v448 = vld [vmem:[%s233 + $0x638] sm:$0xff]
        %v449 = vld [vmem:[%s233 + $0x640] sm:$0xff]
        %v450 = vld [vmem:[%s233 + $0x648] sm:$0xff]
        %v451 = vld [vmem:[%s233 + $0x650] sm:$0xff]
        %v452 = vld [vmem:[%s233 + $0x658] sm:$0xff]
        %v453 = vld [vmem:[%s233 + $0x660] sm:$0xff]
        %v454 = vld [vmem:[%s233 + $0x668] sm:$0xff]
        %v455 = vld [vmem:[%s233 + $0x670] sm:$0xff]
        %v456 = vld [vmem:[%s233 + $0x678] sm:$0xff]
        %v457 = vld [vmem:[%s233 + $0x680] sm:$0xff]
        %v458 = vld [vmem:[%s233 + $0x688] sm:$0xff]
        %v459 = vld [vmem:[%s233 + $0x690] sm:$0xff]
        %v460 = vld [vmem:[%s233 + $0x698] sm:$0xff]
        %v461 = vld [vmem:[%s233 + $0x6a0] sm:$0xff]
        %v462 = vld [vmem:[%s233 + $0x6a8] sm:$0xff]
        %v463 = vld [vmem:[%s233 + $0x6b0] sm:$0xff]
        %v464 = vld [vmem:[%s233 + $0x6b8] sm:$0xff]
        %v465 = vld [vmem:[%s233 + $0x6c0] sm:$0xff]
        %v466 = vld [vmem:[%s233 + $0x6c8] sm:$0xff]
        %v467 = vld [vmem:[%s233 + $0x6d0] sm:$0xff]
        %v468 = vld [vmem:[%s233 + $0x6d8] sm:$0xff]
        %v469 = vld [vmem:[%s233 + $0x6e0] sm:$0xff]
        %v470 = vld [vmem:[%s233 + $0x6e8] sm:$0xff]
        %v471 = vld [vmem:[%s233 + $0x6f0] sm:$0xff]
        %v472 = vld [vmem:[%s233 + $0x6f8] sm:$0xff]
        %v473 = vld [vmem:[%s233 + $0x700] sm:$0xff]
        %v474 = vld [vmem:[%s233 + $0x708] sm:$0xff]
        %v475 = vld [vmem:[%s233 + $0x710] sm:$0xff]
        %v476 = vld [vmem:[%s233 + $0x718] sm:$0xff]
        %v477 = vld [vmem:[%s233 + $0x720] sm:$0xff]
        %v478 = vld [vmem:[%s233 + $0x728] sm:$0xff]
        %v479 = vld [vmem:[%s233 + $0x730] sm:$0xff]
        %v480 = vld [vmem:[%s233 + $0x738] sm:$0xff]
        %v481 = vld [vmem:[%s233 + $0x740] sm:$0xff]
        %v482 = vld [vmem:[%s233 + $0x748] sm:$0xff]
        %v483 = vld [vmem:[%s233 + $0x750] sm:$0xff]
        %v484 = vld [vmem:[%s233 + $0x758] sm:$0xff]
        %v485 = vld [vmem:[%s233 + $0x760] sm:$0xff]
        %v486 = vld [vmem:[%s233 + $0x768] sm:$0xff]
        %v487 = vld [vmem:[%s233 + $0x770] sm:$0xff]
        %v488 = vld [vmem:[%s233 + $0x778] sm:$0xff]
        %v489 = vld [vmem:[%s233 + $0x780] sm:$0xff]
        %v490 = vld [vmem:[%s233 + $0x788] sm:$0xff]
        %v491 = vld [vmem:[%s233 + $0x790] sm:$0xff]
        %v492 = vld [vmem:[%s233 + $0x798] sm:$0xff]
        %v493 = vld [vmem:[%s233 + $0x7a0] sm:$0xff]
        %v494 = vld [vmem:[%s233 + $0x7a8] sm:$0xff]
        %v495 = vld [vmem:[%s233 + $0x7b0] sm:$0xff]
        %v496 = vld [vmem:[%s233 + $0x7b8] sm:$0xff]
        %v497 = vld [vmem:[%s233 + $0x7c0] sm:$0xff]
        %v498 = vld [vmem:[%s233 + $0x7c8] sm:$0xff]
        %v499 = vld [vmem:[%s233 + $0x7d0] sm:$0xff]
        %v500 = vld [vmem:[%s233 + $0x7d8] sm:$0xff]
        %v501 = vld [vmem:[%s233 + $0x7e0] sm:$0xff]
        %v502 = vld [vmem:[%s233 + $0x7e8] sm:$0xff]
        %v503 = vld [vmem:[%s233 + $0x7f0] sm:$0xff]
        %v504 = vld [vmem:[%s233 + $0x7f8] sm:$0xff]
        %v505 = vld [vmem:[%s233 + $0x800] sm:$0xff]
        %v506 = vld [vmem:[%s233 + $0x808] sm:$0xff]
        %v507 = vld [vmem:[%s233 + $0x810] sm:$0xff]
        %v508 = vld [vmem:[%s233 + $0x818] sm:$0xff]
        %v509 = vld [vmem:[%s233 + $0x820] sm:$0xff]
        %v510 = vld [vmem:[%s233 + $0x828] sm:$0xff]
        %v511 = vld [vmem:[%s233 + $0x830] sm:$0xff]
        %v512 = vld [vmem:[%s233 + $0x838] sm:$0xff]
        %v513 = vld [vmem:[%s233 + $0x840] sm:$0xff]
        %v514 = vld [vmem:[%s233 + $0x848] sm:$0xff]
        %v515 = vld [vmem:[%s233 + $0x850] sm:$0xff]
        %v516 = vld [vmem:[%s233 + $0x858] sm:$0xff]
        %v517 = vld [vmem:[%s233 + $0x860] sm:$0xff]
        %v518 = vld [vmem:[%s233 + $0x868] sm:$0xff]
        %v519 = vld [vmem:[%s233 + $0x870] sm:$0xff]
        %v520 = vld [vmem:[%s233 + $0x878] sm:$0xff]
        %v521 = vld [vmem:[%s233 + $0x880] sm:$0xff]
        %v522 = vld [vmem:[%s233 + $0x888] sm:$0xff]
        %v523 = vld [vmem:[%s233 + $0x890] sm:$0xff]
        %v524 = vld [vmem:[%s233 + $0x898] sm:$0xff]
        %v525 = vld [vmem:[%s233 + $0x8a0] sm:$0xff]
        %v526 = vld [vmem:[%s233 + $0x8a8] sm:$0xff]
        %v527 = vld [vmem:[%s233 + $0x8b0] sm:$0xff]
        %v528 = vld [vmem:[%s233 + $0x8b8] sm:$0xff]
        %v529 = vld [vmem:[%s233 + $0x8c0] sm:$0xff]
        %v530 = vld [vmem:[%s233 + $0x8c8] sm:$0xff]
        %v531 = vld [vmem:[%s233 + $0x8d0] sm:$0xff]
        %v532 = vld [vmem:[%s233 + $0x8d8] sm:$0xff]
        %v533 = vld [vmem:[%s233 + $0x8e0] sm:$0xff]
        %v534 = vld [vmem:[%s233 + $0x8e8] sm:$0xff]
        %v535 = vld [vmem:[%s233 + $0x8f0] sm:$0xff]
        %v536 = vld [vmem:[%s233 + $0x8f8] sm:$0xff]
        %v537 = vld [vmem:[%s233 + $0x900] sm:$0xff]
        %v538 = vld [vmem:[%s233 + $0x908] sm:$0xff]
        %v539 = vld [vmem:[%s233 + $0x910] sm:$0xff]
        %v540 = vld [vmem:[%s233 + $0x918] sm:$0xff]
        %v541 = vld [vmem:[%s233 + $0x920] sm:$0xff]
        %v542 = vld [vmem:[%s233 + $0x928] sm:$0xff]
        %v543 = vld [vmem:[%s233 + $0x930] sm:$0xff]
        %v544 = vld [vmem:[%s233 + $0x938] sm:$0xff]
        %v545 = vld [vmem:[%s233 + $0x940] sm:$0xff]
        %v546 = vld [vmem:[%s233 + $0x948] sm:$0xff]
        %v547 = vld [vmem:[%s233 + $0x950] sm:$0xff]
        %v548 = vld [vmem:[%s233 + $0x958] sm:$0xff]
        %v549 = vld [vmem:[%s233 + $0x960] sm:$0xff]
        %v550 = vld [vmem:[%s233 + $0x968] sm:$0xff]
        %v551 = vld [vmem:[%s233 + $0x970] sm:$0xff]
        %v552 = vld [vmem:[%s233 + $0x978] sm:$0xff]
        %v553 = vld [vmem:[%s233 + $0x980] sm:$0xff]
        %v554 = vld [vmem:[%s233 + $0x988] sm:$0xff]
        %v555 = vld [vmem:[%s233 + $0x990] sm:$0xff]
        %v556 = vld [vmem:[%s233 + $0x998] sm:$0xff]
        %v557 = vld [vmem:[%s233 + $0x9a0] sm:$0xff]
        %v558 = vld [vmem:[%s233 + $0x9a8] sm:$0xff]
        %v559 = vld [vmem:[%s233 + $0x9b0] sm:$0xff]
        %v560 = vld [vmem:[%s233 + $0x9b8] sm:$0xff]
        %v561 = vld [vmem:[%s233 + $0x9c0] sm:$0xff]
        %v562 = vld [vmem:[%s233 + $0x9c8] sm:$0xff]
        %v563 = vld [vmem:[%s233 + $0x9d0] sm:$0xff]
        %v564 = vld [vmem:[%s233 + $0x9d8] sm:$0xff]
        %v565 = vld [vmem:[%s233 + $0x9e0] sm:$0xff]
        %v566 = vld [vmem:[%s233 + $0x9e8] sm:$0xff]
        %v567 = vld [vmem:[%s233 + $0x9f0] sm:$0xff]
        %v568 = vld [vmem:[%s233 + $0x9f8] sm:$0xff]
        %v569 = vld [vmem:[%s233 + $0xa00] sm:$0xff]
        %v570 = vld [vmem:[%s233 + $0xa08] sm:$0xff]
        %v571 = vld [vmem:[%s233 + $0xa10] sm:$0xff]
        %v572 = vld [vmem:[%s233 + $0xa18] sm:$0xff]
        %v573 = vld [vmem:[%s233 + $0xa20] sm:$0xff]
        %v574 = vld [vmem:[%s233 + $0xa28] sm:$0xff]
        %v575 = vld [vmem:[%s233 + $0xa30] sm:$0xff]
        %v576 = vld [vmem:[%s233 + $0xa38] sm:$0xff]
        %v577 = vld [vmem:[%s233 + $0xa40] sm:$0xff]
        %v578 = vld [vmem:[%s233 + $0xa48] sm:$0xff]
        %v579 = vld [vmem:[%s233 + $0xa50] sm:$0xff]
        %v580 = vld [vmem:[%s233 + $0xa58] sm:$0xff]
        %v581 = vld [vmem:[%s233 + $0xa60] sm:$0xff]
        %v582 = vld [vmem:[%s233 + $0xa68] sm:$0xff]
        %v583 = vld [vmem:[%s233 + $0xa70] sm:$0xff]
        %v584 = vld [vmem:[%s233 + $0xa78] sm:$0xff]
        %v585 = vld [vmem:[%s233 + $0xa80] sm:$0xff]
        %v586 = vld [vmem:[%s233 + $0xa88] sm:$0xff]
        %v587 = vld [vmem:[%s233 + $0xa90] sm:$0xff]
        %v588 = vld [vmem:[%s233 + $0xa98] sm:$0xff]
        %v589 = vld [vmem:[%s233 + $0xaa0] sm:$0xff]
        %v590 = vld [vmem:[%s233 + $0xaa8] sm:$0xff]
        %v591 = vld [vmem:[%s233 + $0xab0] sm:$0xff]
        %v592 = vld [vmem:[%s233 + $0xab8] sm:$0xff]
        %v593 = vld [vmem:[%s233 + $0xac0] sm:$0xff]
        %v594 = vld [vmem:[%s233 + $0xac8] sm:$0xff]
        %v595 = vld [vmem:[%s233 + $0xad0] sm:$0xff]
        %v596 = vld [vmem:[%s233 + $0xad8] sm:$0xff]
        %v597 = vld [vmem:[%s233 + $0xae0] sm:$0xff]
        %v598 = vld [vmem:[%s233 + $0xae8] sm:$0xff]
        %v599 = vld [vmem:[%s233 + $0xaf0] sm:$0xff]
        %v600 = vld [vmem:[%s233 + $0xaf8] sm:$0xff]
        %v601 = vld [vmem:[%s233 + $0xb00] sm:$0xff]
        %v602 = vld [vmem:[%s233 + $0xb08] sm:$0xff]
        %v603 = vld [vmem:[%s233 + $0xb10] sm:$0xff]
        %v604 = vld [vmem:[%s233 + $0xb18] sm:$0xff]
        %v605 = vld [vmem:[%s233 + $0xb20] sm:$0xff]
        %v606 = vld [vmem:[%s233 + $0xb28] sm:$0xff]
        %v607 = vld [vmem:[%s233 + $0xb30] sm:$0xff]
        %v608 = vld [vmem:[%s233 + $0xb38] sm:$0xff]
        %v609 = vld [vmem:[%s233 + $0xb40] sm:$0xff]
        %v610 = vld [vmem:[%s233 + $0xb48] sm:$0xff]
        %v611 = vld [vmem:[%s233 + $0xb50] sm:$0xff]
        %v612 = vld [vmem:[%s233 + $0xb58] sm:$0xff]
        %v613 = vld [vmem:[%s233 + $0xb60] sm:$0xff]
        %v614 = vld [vmem:[%s233 + $0xb68] sm:$0xff]
        %v615 = vld [vmem:[%s233 + $0xb70] sm:$0xff]
        %v616 = vld [vmem:[%s233 + $0xb78] sm:$0xff]
        %v617 = vld [vmem:[%s233 + $0xb80] sm:$0xff]
        %v618 = vld [vmem:[%s233 + $0xb88] sm:$0xff]
        %v619 = vld [vmem:[%s233 + $0xb90] sm:$0xff]
        %v620 = vld [vmem:[%s233 + $0xb98] sm:$0xff]
        %v621 = vld [vmem:[%s233 + $0xba0] sm:$0xff]
        %v622 = vld [vmem:[%s233 + $0xba8] sm:$0xff]
        %v623 = vld [vmem:[%s233 + $0xbb0] sm:$0xff]
        %v624 = vld [vmem:[%s233 + $0xbb8] sm:$0xff]
        %v625 = vld [vmem:[%s233 + $0xbc0] sm:$0xff]
        %v626 = vld [vmem:[%s233 + $0xbc8] sm:$0xff]
        %v627 = vld [vmem:[%s233 + $0xbd0] sm:$0xff]
        %v628 = vld [vmem:[%s233 + $0xbd8] sm:$0xff]
        %v629 = vld [vmem:[%s233 + $0xbe0] sm:$0xff]
        %v630 = vld [vmem:[%s233 + $0xbe8] sm:$0xff]
        %v631 = vld [vmem:[%s233 + $0xbf0] sm:$0xff]
        %v632 = vld [vmem:[%s233 + $0xbf8] sm:$0xff]
        %v633 = vld [vmem:[%s233 + $0xc00] sm:$0xff]
        %v634 = vld [vmem:[%s233 + $0xc08] sm:$0xff]
        %v635 = vld [vmem:[%s233 + $0xc10] sm:$0xff]
        %v636 = vld [vmem:[%s233 + $0xc18] sm:$0xff]
        %v637 = vld [vmem:[%s233 + $0xc20] sm:$0xff]
        %v638 = vld [vmem:[%s233 + $0xc28] sm:$0xff]
        %v639 = vld [vmem:[%s233 + $0xc30] sm:$0xff]
        %v640 = vld [vmem:[%s233 + $0xc38] sm:$0xff]
        %v641 = vld [vmem:[%s233 + $0xc40] sm:$0xff]
        %v642 = vld [vmem:[%s233 + $0xc48] sm:$0xff]
        %v643 = vld [vmem:[%s233 + $0xc50] sm:$0xff]
        %v644 = vld [vmem:[%s233 + $0xc58] sm:$0xff]
        %v645 = vld [vmem:[%s233 + $0xc60] sm:$0xff]
        %v646 = vld [vmem:[%s233 + $0xc68] sm:$0xff]
        %v647 = vld [vmem:[%s233 + $0xc70] sm:$0xff]
        %v648 = vld [vmem:[%s233 + $0xc78] sm:$0xff]
        %v649 = vld [vmem:[%s233 + $0xc80] sm:$0xff]
        %v650 = vld [vmem:[%s233 + $0xc88] sm:$0xff]
        %v651 = vld [vmem:[%s233 + $0xc90] sm:$0xff]
        %v652 = vld [vmem:[%s233 + $0xc98] sm:$0xff]
        %v653 = vld [vmem:[%s233 + $0xca0] sm:$0xff]
        %v654 = vld [vmem:[%s233 + $0xca8] sm:$0xff]
        %v655 = vld [vmem:[%s233 + $0xcb0] sm:$0xff]
        %v656 = vld [vmem:[%s233 + $0xcb8] sm:$0xff]
        %v657 = vld [vmem:[%s233 + $0xcc0] sm:$0xff]
        %v658 = vld [vmem:[%s233 + $0xcc8] sm:$0xff]
        %v659 = vld [vmem:[%s233 + $0xcd0] sm:$0xff]
        %v660 = vld [vmem:[%s233 + $0xcd8] sm:$0xff]
        %v661 = vld [vmem:[%s233 + $0xce0] sm:$0xff]
        %v662 = vld [vmem:[%s233 + $0xce8] sm:$0xff]
        %v663 = vld [vmem:[%s233 + $0xcf0] sm:$0xff]
        %v664 = vld [vmem:[%s233 + $0xcf8] sm:$0xff]
        %v665 = vld [vmem:[%s233 + $0xd00] sm:$0xff]
        %v666 = vld [vmem:[%s233 + $0xd08] sm:$0xff]
        %v667 = vld [vmem:[%s233 + $0xd10] sm:$0xff]
        %v668 = vld [vmem:[%s233 + $0xd18] sm:$0xff]
        %v669 = vld [vmem:[%s233 + $0xd20] sm:$0xff]
        %v670 = vld [vmem:[%s233 + $0xd28] sm:$0xff]
        %v671 = vld [vmem:[%s233 + $0xd30] sm:$0xff]
        %v672 = vld [vmem:[%s233 + $0xd38] sm:$0xff]
        %v673 = vld [vmem:[%s233 + $0xd40] sm:$0xff]
        %v674 = vld [vmem:[%s233 + $0xd48] sm:$0xff]
        %v675 = vld [vmem:[%s233 + $0xd50] sm:$0xff]
        %v676 = vld [vmem:[%s233 + $0xd58] sm:$0xff]
        %v677 = vld [vmem:[%s233 + $0xd60] sm:$0xff]
        %v678 = vld [vmem:[%s233 + $0xd68] sm:$0xff]
        %v679 = vld [vmem:[%s233 + $0xd70] sm:$0xff]
        %v680 = vld [vmem:[%s233 + $0xd78] sm:$0xff]
        %v688 = vcombine.high %v242, %v242
        %v690 = vunpack.c.l.s4 1983009808
        %v691 = vunpack.c.0.s8 %v690
        %v692 = vlaneseq
        %v693 = vshrl.u32 %v692, 7
        %v694 = vsub.s32 %v691, %v693
        %v695 = vrot.slane %v242, %v694
        %v697 = vunpack.c.l.s4 1983009808
        %v698 = vunpack.c.0.s8 %v697
        %v699 = vlaneseq
        %v700 = vshrl.u32 %v699, 7
        %v701 = vsub.s32 %v698, %v700
        %v702 = vrot.slane %v688, %v701
        %v703 = vcombine.high %v695, %v695
        %v704 = vcombine.high %v702, %v702
        %v705 = vcombine.high %v243, %v243
        %v707 = vunpack.c.l.s4 1983009808
        %v708 = vunpack.c.0.s8 %v707
        %v709 = vlaneseq
        %v710 = vshrl.u32 %v709, 7
        %v711 = vsub.s32 %v708, %v710
        %v712 = vrot.slane %v243, %v711
        %v714 = vunpack.c.l.s4 1983009808
        %v715 = vunpack.c.0.s8 %v714
        %v716 = vlaneseq
        %v717 = vshrl.u32 %v716, 7
        %v718 = vsub.s32 %v715, %v717
        %v719 = vrot.slane %v705, %v718
        %v720 = vcombine.high %v712, %v712
        %v721 = vcombine.high %v719, %v719
        %v722 = vcombine.high %v244, %v244
        %v724 = vunpack.c.l.s4 1983009808
        %v725 = vunpack.c.0.s8 %v724
        %v726 = vlaneseq
        %v727 = vshrl.u32 %v726, 7
        %v728 = vsub.s32 %v725, %v727
        %v729 = vrot.slane %v244, %v728
        %v731 = vunpack.c.l.s4 1983009808
        %v732 = vunpack.c.0.s8 %v731
        %v733 = vlaneseq
        %v734 = vshrl.u32 %v733, 7
        %v735 = vsub.s32 %v732, %v734
        %v736 = vrot.slane %v722, %v735
        %v737 = vcombine.high %v729, %v729
        %v738 = vcombine.high %v736, %v736
        %v739 = vcombine.high %v245, %v245
        %v741 = vunpack.c.l.s4 1983009808
        %v742 = vunpack.c.0.s8 %v741
        %v743 = vlaneseq
        %v744 = vshrl.u32 %v743, 7
        %v745 = vsub.s32 %v742, %v744
        %v746 = vrot.slane %v245, %v745
        %v748 = vunpack.c.l.s4 1983009808
        %v749 = vunpack.c.0.s8 %v748
        %v750 = vlaneseq
        %v751 = vshrl.u32 %v750, 7
        %v752 = vsub.s32 %v749, %v751
        %v753 = vrot.slane %v739, %v752
        %v754 = vcombine.high %v746, %v746
        %v755 = vcombine.high %v753, %v753
        %v756 = vcombine.high %v246, %v246
        %v758 = vunpack.c.l.s4 1983009808
        %v759 = vunpack.c.0.s8 %v758
        %v760 = vlaneseq
        %v761 = vshrl.u32 %v760, 7
        %v762 = vsub.s32 %v759, %v761
        %v763 = vrot.slane %v246, %v762
        %v765 = vunpack.c.l.s4 1983009808
        %v766 = vunpack.c.0.s8 %v765
        %v767 = vlaneseq
        %v768 = vshrl.u32 %v767, 7
        %v769 = vsub.s32 %v766, %v768
        %v770 = vrot.slane %v756, %v769
        %v771 = vcombine.high %v763, %v763
        %v772 = vcombine.high %v770, %v770
        %v773 = vcombine.high %v247, %v247
        %v775 = vunpack.c.l.s4 1983009808
        %v776 = vunpack.c.0.s8 %v775
        %v777 = vlaneseq
        %v778 = vshrl.u32 %v777, 7
        %v779 = vsub.s32 %v776, %v778
        %v780 = vrot.slane %v247, %v779
        %v782 = vunpack.c.l.s4 1983009808
        %v783 = vunpack.c.0.s8 %v782
        %v784 = vlaneseq
        %v785 = vshrl.u32 %v784, 7
        %v786 = vsub.s32 %v783, %v785
        %v787 = vrot.slane %v773, %v786
        %v788 = vcombine.high %v780, %v780
        %v789 = vcombine.high %v787, %v787
        %v790 = vcombine.high %v248, %v248
        %v792 = vunpack.c.l.s4 1983009808
        %v793 = vunpack.c.0.s8 %v792
        %v794 = vlaneseq
        %v795 = vshrl.u32 %v794, 7
        %v796 = vsub.s32 %v793, %v795
        %v797 = vrot.slane %v248, %v796
        %v799 = vunpack.c.l.s4 1983009808
        %v800 = vunpack.c.0.s8 %v799
        %v801 = vlaneseq
        %v802 = vshrl.u32 %v801, 7
        %v803 = vsub.s32 %v800, %v802
        %v804 = vrot.slane %v790, %v803
        %v805 = vcombine.high %v797, %v797
        %833 = vmatprep.subr.mxu0 0.0
        %834 = vmatpush1.msra.mxu0 %v249
        %835 = vmatprep.subr.mxu0 0.0
        %836 = vmatpush1.msra.mxu0 %v250
        %837 = vmatprep.subr.mxu0 0.0
        %838 = vmatpush1.msra.mxu0 %v251
        %839 = vmatprep.subr.mxu0 0.0
        %840 = vmatpush1.msra.mxu0 %v252
        %841 = vmatprep.subr.mxu0 0.0
        %842 = vmatpush1.msra.mxu0 %v253
        %843 = vmatprep.subr.mxu0 0.0
        %844 = vmatpush1.msra.mxu0 %v254
        %845 = vmatprep.subr.mxu0 0.0
        %846 = vmatpush1.msra.mxu0 %v255
        %847 = vmatprep.subr.mxu0 0.0
        %848 = vmatpush1.msra.mxu0 %v256
        %849 = vmatprep.subr.mxu0 0.0
        %850 = vmatpush1.msra.mxu0 %v257
        %851 = vmatprep.subr.mxu0 0.0
        %852 = vmatpush1.msra.mxu0 %v258
        %853 = vmatprep.subr.mxu0 0.0
        %854 = vmatpush1.msra.mxu0 %v259
        %855 = vmatprep.subr.mxu0 0.0
        %856 = vmatpush1.msra.mxu0 %v260
        %857 = vmatprep.subr.mxu0 0.0
        %858 = vmatpush1.msra.mxu0 %v261
        %859 = vmatprep.subr.mxu0 0.0
        %860 = vmatpush1.msra.mxu0 %v262
        %861 = vmatprep.subr.mxu0 0.0
        %862 = vmatpush1.msra.mxu0 %v263
        %863 = vmatprep.subr.mxu0 0.0
        %864 = vmatpush1.msra.mxu0 %v264
        %865 = vmatprep.subr.mxu0 0.0
        %866 = vmatpush1.msra.mxu0 %v265
        %867 = vmatprep.subr.mxu0 0.0
        %868 = vmatpush1.msra.mxu0 %v266
        %869 = vmatprep.subr.mxu0 0.0
        %870 = vmatpush1.msra.mxu0 %v267
        %871 = vmatprep.subr.mxu0 0.0
        %872 = vmatpush1.msra.mxu0 %v268
        %873 = vmatprep.subr.mxu0 0.0
        %874 = vmatpush1.msra.mxu0 %v269
        %875 = vmatprep.subr.mxu0 0.0
        %876 = vmatpush1.msra.mxu0 %v270
        %877 = vmatprep.subr.mxu0 0.0
        %878 = vmatpush1.msra.mxu0 %v271
        %879 = vmatprep.subr.mxu0 0.0
        %880 = vmatpush1.msra.mxu0 %v272
        %881 = vmatprep.subr.mxu0 0.0
        %882 = vmatpush1.msra.mxu0 %v273
        %883 = vmatprep.subr.mxu0 0.0
        %884 = vmatpush1.msra.mxu0 %v274
        %885 = vmatprep.subr.mxu0 0.0
        %886 = vmatpush1.msra.mxu0 %v275
        %887 = vmatprep.subr.mxu0 0.0
        %888 = vmatpush1.msra.mxu0 %v276
        %889 = vmatprep.subr.mxu0 0.0
        %890 = vmatpush1.msra.mxu0 %v277
        %891 = vmatprep.subr.mxu0 0.0
        %892 = vmatpush1.msra.mxu0 %v278
        %893 = vmatprep.subr.mxu0 0.0
        %894 = vmatpush1.msra.mxu0 %v279
        %895 = vmatprep.subr.mxu0 0.0
        %896 = vmatpush1.msra.mxu0 %v280
        %897 = vmatprep.mubr.f32.mxu0 %v703
        %898 = vmatmul.mubr.f32.gmra.mrb[0].mxu0 %v695
        %v899 = vpop.f32.mrb[0].mxu0
        %v900 = vadd.f32 0.0, %v899
        %v901 = vpop.f32.mrb[0].mxu0
        %902 = vdwg.mxu0
        %903 = vmatprep.subr.mxu0 0.0
        %904 = vmatpush1.msra.mxu0 %v281
        %905 = vmatprep.subr.mxu0 0.0
        %906 = vmatpush1.msra.mxu0 %v282
        %907 = vmatprep.subr.mxu0 0.0
        %908 = vmatpush1.msra.mxu0 %v283
        %909 = vmatprep.subr.mxu0 0.0
        %910 = vmatpush1.msra.mxu0 %v284
        %911 = vmatprep.subr.mxu0 0.0
        %912 = vmatpush1.msra.mxu0 %v285
        %913 = vmatprep.subr.mxu0 0.0
        %914 = vmatpush1.msra.mxu0 %v286
        %915 = vmatprep.subr.mxu0 0.0
        %916 = vmatpush1.msra.mxu0 %v287
        %917 = vmatprep.subr.mxu0 0.0
        %918 = vmatpush1.msra.mxu0 %v288
        %919 = vmatprep.subr.mxu0 0.0
        %920 = vmatpush1.msra.mxu0 %v289
        %921 = vmatprep.subr.mxu0 0.0
        %922 = vmatpush1.msra.mxu0 %v290
        %923 = vmatprep.subr.mxu0 0.0
        %924 = vmatpush1.msra.mxu0 %v291
        %925 = vmatprep.subr.mxu0 0.0
        %926 = vmatpush1.msra.mxu0 %v292
        %927 = vmatprep.subr.mxu0 0.0
        %928 = vmatpush1.msra.mxu0 %v293
        %929 = vmatprep.subr.mxu0 0.0
        %930 = vmatpush1.msra.mxu0 %v294
        %931 = vmatprep.subr.mxu0 0.0
        %932 = vmatpush1.msra.mxu0 %v295
        %933 = vmatprep.subr.mxu0 0.0
        %934 = vmatpush1.msra.mxu0 %v296
        %935 = vmatprep.subr.mxu0 0.0
        %936 = vmatpush1.msra.mxu0 %v297
        %937 = vmatprep.subr.mxu0 0.0
        %938 = vmatpush1.msra.mxu0 %v298
        %939 = vmatprep.subr.mxu0 0.0
        %940 = vmatpush1.msra.mxu0 %v299
        %941 = vmatprep.subr.mxu0 0.0
        %942 = vmatpush1.msra.mxu0 %v300
        %943 = vmatprep.subr.mxu0 0.0
        %944 = vmatpush1.msra.mxu0 %v301
        %945 = vmatprep.subr.mxu0 0.0
        %946 = vmatpush1.msra.mxu0 %v302
        %947 = vmatprep.subr.mxu0 0.0
        %948 = vmatpush1.msra.mxu0 %v303
        %949 = vmatprep.subr.mxu0 0.0
        %950 = vmatpush1.msra.mxu0 %v304
        %951 = vmatprep.subr.mxu0 0.0
        %952 = vmatpush1.msra.mxu0 %v305
        %953 = vmatprep.subr.mxu0 0.0
        %954 = vmatpush1.msra.mxu0 %v306
        %955 = vmatprep.subr.mxu0 0.0
        %956 = vmatpush1.msra.mxu0 %v307
        %957 = vmatprep.subr.mxu0 0.0
        %958 = vmatpush1.msra.mxu0 %v308
        %959 = vmatprep.subr.mxu0 0.0
        %960 = vmatpush1.msra.mxu0 %v309
        %961 = vmatprep.subr.mxu0 0.0
        %962 = vmatpush1.msra.mxu0 %v310
        %963 = vmatprep.subr.mxu0 0.0
        %964 = vmatpush1.msra.mxu0 %v311
        %965 = vmatprep.subr.mxu0 0.0
        %966 = vmatpush1.msra.mxu0 %v312
        %967 = vmatprep.mubr.f32.mxu0 %v704
        %968 = vmatmul.mubr.f32.gmra.mrb[0].mxu0 %v702
        %v969 = vpop.f32.mrb[0].mxu0
        %v970 = vadd.f32 %v900, %v969
        %v971 = vpop.f32.mrb[0].mxu0
        %972 = vdwg.mxu0
        %973 = vmatprep.subr.mxu0 0.0
        %974 = vmatpush1.msra.mxu0 %v313
        %975 = vmatprep.subr.mxu0 0.0
        %976 = vmatpush1.msra.mxu0 %v314
        %977 = vmatprep.subr.mxu0 0.0
        %978 = vmatpush1.msra.mxu0 %v315
        %979 = vmatprep.subr.mxu0 0.0
        %980 = vmatpush1.msra.mxu0 %v316
        %981 = vmatprep.subr.mxu0 0.0
        %982 = vmatpush1.msra.mxu0 %v317
        %983 = vmatprep.subr.mxu0 0.0
        %984 = vmatpush1.msra.mxu0 %v318
        %985 = vmatprep.subr.mxu0 0.0
        %986 = vmatpush1.msra.mxu0 %v319
        %987 = vmatprep.subr.mxu0 0.0
        %988 = vmatpush1.msra.mxu0 %v320
        %989 = vmatprep.subr.mxu0 0.0
        %990 = vmatpush1.msra.mxu0 %v321
        %991 = vmatprep.subr.mxu0 0.0
        %992 = vmatpush1.msra.mxu0 %v322
        %993 = vmatprep.subr.mxu0 0.0
        %994 = vmatpush1.msra.mxu0 %v323
        %995 = vmatprep.subr.mxu0 0.0
        %996 = vmatpush1.msra.mxu0 %v324
        %997 = vmatprep.subr.mxu0 0.0
        %998 = vmatpush1.msra.mxu0 %v325
        %999 = vmatprep.subr.mxu0 0.0
        %1000 = vmatpush1.msra.mxu0 %v326
        %1001 = vmatprep.subr.mxu0 0.0
        %1002 = vmatpush1.msra.mxu0 %v327
        %1003 = vmatprep.subr.mxu0 0.0
        %1004 = vmatpush1.msra.mxu0 %v328
        %1005 = vmatprep.subr.mxu0 0.0
        %1006 = vmatpush1.msra.mxu0 %v329
        %1007 = vmatprep.subr.mxu0 0.0
        %1008 = vmatpush1.msra.mxu0 %v330
        %1009 = vmatprep.subr.mxu0 0.0
        %1010 = vmatpush1.msra.mxu0 %v331
        %1011 = vmatprep.subr.mxu0 0.0
        %1012 = vmatpush1.msra.mxu0 %v332
        %1013 = vmatprep.subr.mxu0 0.0
        %1014 = vmatpush1.msra.mxu0 %v333
        %1015 = vmatprep.subr.mxu0 0.0
        %1016 = vmatpush1.msra.mxu0 %v334
        %1017 = vmatprep.subr.mxu0 0.0
        %1018 = vmatpush1.msra.mxu0 %v335
        %1019 = vmatprep.subr.mxu0 0.0
        %1020 = vmatpush1.msra.mxu0 %v336
        %1021 = vmatprep.subr.mxu0 0.0
        %1022 = vmatpush1.msra.mxu0 %v337
        %1023 = vmatprep.subr.mxu0 0.0
        %1024 = vmatpush1.msra.mxu0 %v338
        %1025 = vmatprep.subr.mxu0 0.0
        %1026 = vmatpush1.msra.mxu0 %v339
        %1027 = vmatprep.subr.mxu0 0.0
        %1028 = vmatpush1.msra.mxu0 %v340
        %1029 = vmatprep.subr.mxu0 0.0
        %1030 = vmatpush1.msra.mxu0 %v341
        %1031 = vmatprep.subr.mxu0 0.0
        %1032 = vmatpush1.msra.mxu0 %v342
        %1033 = vmatprep.subr.mxu0 0.0
        %1034 = vmatpush1.msra.mxu0 %v343
        %1035 = vmatprep.subr.mxu0 0.0
        %1036 = vmatpush1.msra.mxu0 %v344
        %1037 = vmatprep.mubr.f32.mxu0 %v720
        %1038 = vmatmul.mubr.f32.gmra.mrb[0].mxu0 %v712
        %v1039 = vpop.f32.mrb[0].mxu0
        %v1040 = vadd.f32 %v970, %v1039
        %v1041 = vpop.f32.mrb[0].mxu0
        %1042 = vdwg.mxu0
        %1043 = vmatprep.subr.mxu0 0.0
        %1044 = vmatpush1.msra.mxu0 %v345
        %1045 = vmatprep.subr.mxu0 0.0
        %1046 = vmatpush1.msra.mxu0 %v346
        %1047 = vmatprep.subr.mxu0 0.0
        %1048 = vmatpush1.msra.mxu0 %v347
        %1049 = vmatprep.subr.mxu0 0.0
        %1050 = vmatpush1.msra.mxu0 %v348
        %1051 = vmatprep.subr.mxu0 0.0
        %1052 = vmatpush1.msra.mxu0 %v349
        %1053 = vmatprep.subr.mxu0 0.0
        %1054 = vmatpush1.msra.mxu0 %v350
        %1055 = vmatprep.subr.mxu0 0.0
        %1056 = vmatpush1.msra.mxu0 %v351
        %1057 = vmatprep.subr.mxu0 0.0
        %1058 = vmatpush1.msra.mxu0 %v352
        %1059 = vmatprep.subr.mxu0 0.0
        %1060 = vmatpush1.msra.mxu0 %v353
        %1061 = vmatprep.subr.mxu0 0.0
        %1062 = vmatpush1.msra.mxu0 %v354
        %1063 = vmatprep.subr.mxu0 0.0
        %1064 = vmatpush1.msra.mxu0 %v355
        %1065 = vmatprep.subr.mxu0 0.0
        %1066 = vmatpush1.msra.mxu0 %v356
        %1067 = vmatprep.subr.mxu0 0.0
        %1068 = vmatpush1.msra.mxu0 %v357
        %1069 = vmatprep.subr.mxu0 0.0
        %1070 = vmatpush1.msra.mxu0 %v358
        %1071 = vmatprep.subr.mxu0 0.0
        %1072 = vmatpush1.msra.mxu0 %v359
        %1073 = vmatprep.subr.mxu0 0.0
        %1074 = vmatpush1.msra.mxu0 %v360
        %1075 = vmatprep.subr.mxu0 0.0
        %1076 = vmatpush1.msra.mxu0 %v361
        %1077 = vmatprep.subr.mxu0 0.0
        %1078 = vmatpush1.msra.mxu0 %v362
        %1079 = vmatprep.subr.mxu0 0.0
        %1080 = vmatpush1.msra.mxu0 %v363
        %1081 = vmatprep.subr.mxu0 0.0
        %1082 = vmatpush1.msra.mxu0 %v364
        %1083 = vmatprep.subr.mxu0 0.0
        %1084 = vmatpush1.msra.mxu0 %v365
        %1085 = vmatprep.subr.mxu0 0.0
        %1086 = vmatpush1.msra.mxu0 %v366
        %1087 = vmatprep.subr.mxu0 0.0
        %1088 = vmatpush1.msra.mxu0 %v367
        %1089 = vmatprep.subr.mxu0 0.0
        %1090 = vmatpush1.msra.mxu0 %v368
        %1091 = vmatprep.subr.mxu0 0.0
        %1092 = vmatpush1.msra.mxu0 %v369
        %1093 = vmatprep.subr.mxu0 0.0
        %1094 = vmatpush1.msra.mxu0 %v370
        %1095 = vmatprep.subr.mxu0 0.0
        %1096 = vmatpush1.msra.mxu0 %v371
        %1097 = vmatprep.subr.mxu0 0.0
        %1098 = vmatpush1.msra.mxu0 %v372
        %1099 = vmatprep.subr.mxu0 0.0
        %1100 = vmatpush1.msra.mxu0 %v373
        %1101 = vmatprep.subr.mxu0 0.0
        %1102 = vmatpush1.msra.mxu0 %v374
        %1103 = vmatprep.subr.mxu0 0.0
        %1104 = vmatpush1.msra.mxu0 %v375
        %1105 = vmatprep.subr.mxu0 0.0
        %1106 = vmatpush1.msra.mxu0 %v376
        %1107 = vmatprep.mubr.f32.mxu0 %v721
        %1108 = vmatmul.mubr.f32.gmra.mrb[0].mxu0 %v719
        %v1109 = vpop.f32.mrb[0].mxu0
        %v1110 = vadd.f32 %v1040, %v1109
        %v1111 = vpop.f32.mrb[0].mxu0
        %1112 = vdwg.mxu0
        %1113 = vmatprep.subr.mxu0 0.0
        %1114 = vmatpush1.msra.mxu0 %v377
        %1115 = vmatprep.subr.mxu0 0.0
        %1116 = vmatpush1.msra.mxu0 %v378
        %1117 = vmatprep.subr.mxu0 0.0
        %1118 = vmatpush1.msra.mxu0 %v379
        %1119 = vmatprep.subr.mxu0 0.0
        %1120 = vmatpush1.msra.mxu0 %v380
        %1121 = vmatprep.subr.mxu0 0.0
        %1122 = vmatpush1.msra.mxu0 %v381
        %1123 = vmatprep.subr.mxu0 0.0
        %1124 = vmatpush1.msra.mxu0 %v382
        %1125 = vmatprep.subr.mxu0 0.0
        %1126 = vmatpush1.msra.mxu0 %v383
        %1127 = vmatprep.subr.mxu0 0.0
        %1128 = vmatpush1.msra.mxu0 %v384
        %1129 = vmatprep.subr.mxu0 0.0
        %1130 = vmatpush1.msra.mxu0 %v385
        %1131 = vmatprep.subr.mxu0 0.0
        %1132 = vmatpush1.msra.mxu0 %v386
        %1133 = vmatprep.subr.mxu0 0.0
        %1134 = vmatpush1.msra.mxu0 %v387
        %1135 = vmatprep.subr.mxu0 0.0
        %1136 = vmatpush1.msra.mxu0 %v388
        %1137 = vmatprep.subr.mxu0 0.0
        %1138 = vmatpush1.msra.mxu0 %v389
        %1139 = vmatprep.subr.mxu0 0.0
        %1140 = vmatpush1.msra.mxu0 %v390
        %1141 = vmatprep.subr.mxu0 0.0
        %1142 = vmatpush1.msra.mxu0 %v391
        %1143 = vmatprep.subr.mxu0 0.0
        %1144 = vmatpush1.msra.mxu0 %v392
        %1145 = vmatprep.subr.mxu0 0.0
        %1146 = vmatpush1.msra.mxu0 %v393
        %1147 = vmatprep.subr.mxu0 0.0
        %1148 = vmatpush1.msra.mxu0 %v394
        %1149 = vmatprep.subr.mxu0 0.0
        %1150 = vmatpush1.msra.mxu0 %v395
        %1151 = vmatprep.subr.mxu0 0.0
        %1152 = vmatpush1.msra.mxu0 %v396
        %1153 = vmatprep.subr.mxu0 0.0
        %1154 = vmatpush1.msra.mxu0 %v397
        %1155 = vmatprep.subr.mxu0 0.0
        %1156 = vmatpush1.msra.mxu0 %v398
        %1157 = vmatprep.subr.mxu0 0.0
        %1158 = vmatpush1.msra.mxu0 %v399
        %1159 = vmatprep.subr.mxu0 0.0
        %1160 = vmatpush1.msra.mxu0 %v400
        %1161 = vmatprep.subr.mxu0 0.0
        %1162 = vmatpush1.msra.mxu0 %v401
        %1163 = vmatprep.subr.mxu0 0.0
        %1164 = vmatpush1.msra.mxu0 %v402
        %1165 = vmatprep.subr.mxu0 0.0
        %1166 = vmatpush1.msra.mxu0 %v403
        %1167 = vmatprep.subr.mxu0 0.0
        %1168 = vmatpush1.msra.mxu0 %v404
        %1169 = vmatprep.subr.mxu0 0.0
        %1170 = vmatpush1.msra.mxu0 %v405
        %1171 = vmatprep.subr.mxu0 0.0
        %1172 = vmatpush1.msra.mxu0 %v406
        %1173 = vmatprep.subr.mxu0 0.0
        %1174 = vmatpush1.msra.mxu0 %v407
        %1175 = vmatprep.subr.mxu0 0.0
        %1176 = vmatpush1.msra.mxu0 %v408
        %1177 = vmatprep.mubr.f32.mxu0 %v737
        %1178 = vmatmul.mubr.f32.gmra.mrb[0].mxu0 %v729
        %v1179 = vpop.f32.mrb[0].mxu0
        %v1180 = vadd.f32 %v1110, %v1179
        %v1181 = vpop.f32.mrb[0].mxu0
        %1182 = vdwg.mxu0
        %1183 = vmatprep.subr.mxu0 0.0
        %1184 = vmatpush1.msra.mxu0 %v409
        %1185 = vmatprep.subr.mxu0 0.0
        %1186 = vmatpush1.msra.mxu0 %v410
        %1187 = vmatprep.subr.mxu0 0.0
        %1188 = vmatpush1.msra.mxu0 %v411
        %1189 = vmatprep.subr.mxu0 0.0
        %1190 = vmatpush1.msra.mxu0 %v412
        %1191 = vmatprep.subr.mxu0 0.0
        %1192 = vmatpush1.msra.mxu0 %v413
        %1193 = vmatprep.subr.mxu0 0.0
        %1194 = vmatpush1.msra.mxu0 %v414
        %1195 = vmatprep.subr.mxu0 0.0
        %1196 = vmatpush1.msra.mxu0 %v415
        %1197 = vmatprep.subr.mxu0 0.0
        %1198 = vmatpush1.msra.mxu0 %v416
        %1199 = vmatprep.subr.mxu0 0.0
        %1200 = vmatpush1.msra.mxu0 %v417
        %1201 = vmatprep.subr.mxu0 0.0
        %1202 = vmatpush1.msra.mxu0 %v418
        %1203 = vmatprep.subr.mxu0 0.0
        %1204 = vmatpush1.msra.mxu0 %v419
        %1205 = vmatprep.subr.mxu0 0.0
        %1206 = vmatpush1.msra.mxu0 %v420
        %1207 = vmatprep.subr.mxu0 0.0
        %1208 = vmatpush1.msra.mxu0 %v421
        %1209 = vmatprep.subr.mxu0 0.0
        %1210 = vmatpush1.msra.mxu0 %v422
        %1211 = vmatprep.subr.mxu0 0.0
        %1212 = vmatpush1.msra.mxu0 %v423
        %1213 = vmatprep.subr.mxu0 0.0
        %1214 = vmatpush1.msra.mxu0 %v424
        %1215 = vmatprep.subr.mxu0 0.0
        %1216 = vmatpush1.msra.mxu0 %v425
        %1217 = vmatprep.subr.mxu0 0.0
        %1218 = vmatpush1.msra.mxu0 %v426
        %1219 = vmatprep.subr.mxu0 0.0
        %1220 = vmatpush1.msra.mxu0 %v427
        %1221 = vmatprep.subr.mxu0 0.0
        %1222 = vmatpush1.msra.mxu0 %v428
        %1223 = vmatprep.subr.mxu0 0.0
        %1224 = vmatpush1.msra.mxu0 %v429
        %1225 = vmatprep.subr.mxu0 0.0
        %1226 = vmatpush1.msra.mxu0 %v430
        %1227 = vmatprep.subr.mxu0 0.0
        %1228 = vmatpush1.msra.mxu0 %v431
        %1229 = vmatprep.subr.mxu0 0.0
        %1230 = vmatpush1.msra.mxu0 %v432
        %1231 = vmatprep.subr.mxu0 0.0
        %1232 = vmatpush1.msra.mxu0 %v433
        %1233 = vmatprep.subr.mxu0 0.0
        %1234 = vmatpush1.msra.mxu0 %v434
        %1235 = vmatprep.subr.mxu0 0.0
        %1236 = vmatpush1.msra.mxu0 %v435
        %1237 = vmatprep.subr.mxu0 0.0
        %1238 = vmatpush1.msra.mxu0 %v436
        %1239 = vmatprep.subr.mxu0 0.0
        %1240 = vmatpush1.msra.mxu0 %v437
        %1241 = vmatprep.subr.mxu0 0.0
        %1242 = vmatpush1.msra.mxu0 %v438
        %1243 = vmatprep.subr.mxu0 0.0
        %1244 = vmatpush1.msra.mxu0 %v439
        %1245 = vmatprep.subr.mxu0 0.0
        %1246 = vmatpush1.msra.mxu0 %v440
        %1247 = vmatprep.mubr.f32.mxu0 %v738
        %1248 = vmatmul.mubr.f32.gmra.mrb[0].mxu0 %v736
        %v1249 = vpop.f32.mrb[0].mxu0
        %v1250 = vadd.f32 %v1180, %v1249
        %v1251 = vpop.f32.mrb[0].mxu0
        %1252 = vdwg.mxu0
        %1253 = vmatprep.subr.mxu0 0.0
        %1254 = vmatpush1.msra.mxu0 %v441
        %1255 = vmatprep.subr.mxu0 0.0
        %1256 = vmatpush1.msra.mxu0 %v442
        %1257 = vmatprep.subr.mxu0 0.0
        %1258 = vmatpush1.msra.mxu0 %v443
        %1259 = vmatprep.subr.mxu0 0.0
        %1260 = vmatpush1.msra.mxu0 %v444
        %1261 = vmatprep.subr.mxu0 0.0
        %1262 = vmatpush1.msra.mxu0 %v445
        %1263 = vmatprep.subr.mxu0 0.0
        %1264 = vmatpush1.msra.mxu0 %v446
        %1265 = vmatprep.subr.mxu0 0.0
        %1266 = vmatpush1.msra.mxu0 %v447
        %1267 = vmatprep.subr.mxu0 0.0
        %1268 = vmatpush1.msra.mxu0 %v448
        %1269 = vmatprep.subr.mxu0 0.0
        %1270 = vmatpush1.msra.mxu0 %v449
        %1271 = vmatprep.subr.mxu0 0.0
        %1272 = vmatpush1.msra.mxu0 %v450
        %1273 = vmatprep.subr.mxu0 0.0
        %1274 = vmatpush1.msra.mxu0 %v451
        %1275 = vmatprep.subr.mxu0 0.0
        %1276 = vmatpush1.msra.mxu0 %v452
        %1277 = vmatprep.subr.mxu0 0.0
        %1278 = vmatpush1.msra.mxu0 %v453
        %1279 = vmatprep.subr.mxu0 0.0
        %1280 = vmatpush1.msra.mxu0 %v454
        %1281 = vmatprep.subr.mxu0 0.0
        %1282 = vmatpush1.msra.mxu0 %v455
        %1283 = vmatprep.subr.mxu0 0.0
        %1284 = vmatpush1.msra.mxu0 %v456
        %1285 = vmatprep.subr.mxu0 0.0
        %1286 = vmatpush1.msra.mxu0 %v457
        %1287 = vmatprep.subr.mxu0 0.0
        %1288 = vmatpush1.msra.mxu0 %v458
        %1289 = vmatprep.subr.mxu0 0.0
        %1290 = vmatpush1.msra.mxu0 %v459
        %1291 = vmatprep.subr.mxu0 0.0
        %1292 = vmatpush1.msra.mxu0 %v460
        %1293 = vmatprep.subr.mxu0 0.0
        %1294 = vmatpush1.msra.mxu0 %v461
        %1295 = vmatprep.subr.mxu0 0.0
        %1296 = vmatpush1.msra.mxu0 %v462
        %1297 = vmatprep.subr.mxu0 0.0
        %1298 = vmatpush1.msra.mxu0 %v463
        %1299 = vmatprep.subr.mxu0 0.0
        %1300 = vmatpush1.msra.mxu0 %v464
        %1301 = vmatprep.subr.mxu0 0.0
        %1302 = vmatpush1.msra.mxu0 %v465
        %1303 = vmatprep.subr.mxu0 0.0
        %1304 = vmatpush1.msra.mxu0 %v466
        %1305 = vmatprep.subr.mxu0 0.0
        %1306 = vmatpush1.msra.mxu0 %v467
        %1307 = vmatprep.subr.mxu0 0.0
        %1308 = vmatpush1.msra.mxu0 %v468
        %1309 = vmatprep.subr.mxu0 0.0
        %1310 = vmatpush1.msra.mxu0 %v469
        %1311 = vmatprep.subr.mxu0 0.0
        %1312 = vmatpush1.msra.mxu0 %v470
        %1313 = vmatprep.subr.mxu0 0.0
        %1314 = vmatpush1.msra.mxu0 %v471
        %1315 = vmatprep.subr.mxu0 0.0
        %1316 = vmatpush1.msra.mxu0 %v472
        %1317 = vmatprep.mubr.f32.mxu0 %v754
        %1318 = vmatmul.mubr.f32.gmra.mrb[0].mxu0 %v746
        %v1319 = vpop.f32.mrb[0].mxu0
        %v1320 = vadd.f32 %v1250, %v1319
        %v1321 = vpop.f32.mrb[0].mxu0
        %1322 = vdwg.mxu0
        %1323 = vmatprep.subr.mxu0 0.0
        %1324 = vmatpush1.msra.mxu0 %v473
        %1325 = vmatprep.subr.mxu0 0.0
        %1326 = vmatpush1.msra.mxu0 %v474
        %1327 = vmatprep.subr.mxu0 0.0
        %1328 = vmatpush1.msra.mxu0 %v475
        %1329 = vmatprep.subr.mxu0 0.0
        %1330 = vmatpush1.msra.mxu0 %v476
        %1331 = vmatprep.subr.mxu0 0.0
        %1332 = vmatpush1.msra.mxu0 %v477
        %1333 = vmatprep.subr.mxu0 0.0
        %1334 = vmatpush1.msra.mxu0 %v478
        %1335 = vmatprep.subr.mxu0 0.0
        %1336 = vmatpush1.msra.mxu0 %v479
        %1337 = vmatprep.subr.mxu0 0.0
        %1338 = vmatpush1.msra.mxu0 %v480
        %1339 = vmatprep.subr.mxu0 0.0
        %1340 = vmatpush1.msra.mxu0 %v481
        %1341 = vmatprep.subr.mxu0 0.0
        %1342 = vmatpush1.msra.mxu0 %v482
        %1343 = vmatprep.subr.mxu0 0.0
        %1344 = vmatpush1.msra.mxu0 %v483
        %1345 = vmatprep.subr.mxu0 0.0
        %1346 = vmatpush1.msra.mxu0 %v484
        %1347 = vmatprep.subr.mxu0 0.0
        %1348 = vmatpush1.msra.mxu0 %v485
        %1349 = vmatprep.subr.mxu0 0.0
        %1350 = vmatpush1.msra.mxu0 %v486
        %1351 = vmatprep.subr.mxu0 0.0
        %1352 = vmatpush1.msra.mxu0 %v487
        %1353 = vmatprep.subr.mxu0 0.0
        %1354 = vmatpush1.msra.mxu0 %v488
        %1355 = vmatprep.subr.mxu0 0.0
        %1356 = vmatpush1.msra.mxu0 %v489
        %1357 = vmatprep.subr.mxu0 0.0
        %1358 = vmatpush1.msra.mxu0 %v490
        %1359 = vmatprep.subr.mxu0 0.0
        %1360 = vmatpush1.msra.mxu0 %v491
        %1361 = vmatprep.subr.mxu0 0.0
        %1362 = vmatpush1.msra.mxu0 %v492
        %1363 = vmatprep.subr.mxu0 0.0
        %1364 = vmatpush1.msra.mxu0 %v493
        %1365 = vmatprep.subr.mxu0 0.0
        %1366 = vmatpush1.msra.mxu0 %v494
        %1367 = vmatprep.subr.mxu0 0.0
        %1368 = vmatpush1.msra.mxu0 %v495
        %1369 = vmatprep.subr.mxu0 0.0
        %1370 = vmatpush1.msra.mxu0 %v496
        %1371 = vmatprep.subr.mxu0 0.0
        %1372 = vmatpush1.msra.mxu0 %v497
        %1373 = vmatprep.subr.mxu0 0.0
        %1374 = vmatpush1.msra.mxu0 %v498
        %1375 = vmatprep.subr.mxu0 0.0
        %1376 = vmatpush1.msra.mxu0 %v499
        %1377 = vmatprep.subr.mxu0 0.0
        %1378 = vmatpush1.msra.mxu0 %v500
        %1379 = vmatprep.subr.mxu0 0.0
        %1380 = vmatpush1.msra.mxu0 %v501
        %1381 = vmatprep.subr.mxu0 0.0
        %1382 = vmatpush1.msra.mxu0 %v502
        %1383 = vmatprep.subr.mxu0 0.0
        %1384 = vmatpush1.msra.mxu0 %v503
        %1385 = vmatprep.subr.mxu0 0.0
        %1386 = vmatpush1.msra.mxu0 %v504
        %1387 = vmatprep.mubr.f32.mxu0 %v755
        %1388 = vmatmul.mubr.f32.gmra.mrb[0].mxu0 %v753
        %v1389 = vpop.f32.mrb[0].mxu0
        %v1390 = vadd.f32 %v1320, %v1389
        %v1391 = vpop.f32.mrb[0].mxu0
        %1392 = vdwg.mxu0
        %1393 = vmatprep.subr.mxu0 0.0
        %1394 = vmatpush1.msra.mxu0 %v505
        %1395 = vmatprep.subr.mxu0 0.0
        %1396 = vmatpush1.msra.mxu0 %v506
        %1397 = vmatprep.subr.mxu0 0.0
        %1398 = vmatpush1.msra.mxu0 %v507
        %1399 = vmatprep.subr.mxu0 0.0
        %1400 = vmatpush1.msra.mxu0 %v508
        %1401 = vmatprep.subr.mxu0 0.0
        %1402 = vmatpush1.msra.mxu0 %v509
        %1403 = vmatprep.subr.mxu0 0.0
        %1404 = vmatpush1.msra.mxu0 %v510
        %1405 = vmatprep.subr.mxu0 0.0
        %1406 = vmatpush1.msra.mxu0 %v511
        %1407 = vmatprep.subr.mxu0 0.0
        %1408 = vmatpush1.msra.mxu0 %v512
        %1409 = vmatprep.subr.mxu0 0.0
        %1410 = vmatpush1.msra.mxu0 %v513
        %1411 = vmatprep.subr.mxu0 0.0
        %1412 = vmatpush1.msra.mxu0 %v514
        %1413 = vmatprep.subr.mxu0 0.0
        %1414 = vmatpush1.msra.mxu0 %v515
        %1415 = vmatprep.subr.mxu0 0.0
        %1416 = vmatpush1.msra.mxu0 %v516
        %1417 = vmatprep.subr.mxu0 0.0
        %1418 = vmatpush1.msra.mxu0 %v517
        %1419 = vmatprep.subr.mxu0 0.0
        %1420 = vmatpush1.msra.mxu0 %v518
        %1421 = vmatprep.subr.mxu0 0.0
        %1422 = vmatpush1.msra.mxu0 %v519
        %1423 = vmatprep.subr.mxu0 0.0
        %1424 = vmatpush1.msra.mxu0 %v520
        %1425 = vmatprep.subr.mxu0 0.0
        %1426 = vmatpush1.msra.mxu0 %v521
        %1427 = vmatprep.subr.mxu0 0.0
        %1428 = vmatpush1.msra.mxu0 %v522
        %1429 = vmatprep.subr.mxu0 0.0
        %1430 = vmatpush1.msra.mxu0 %v523
        %1431 = vmatprep.subr.mxu0 0.0
        %1432 = vmatpush1.msra.mxu0 %v524
        %1433 = vmatprep.subr.mxu0 0.0
        %1434 = vmatpush1.msra.mxu0 %v525
        %1435 = vmatprep.subr.mxu0 0.0
        %1436 = vmatpush1.msra.mxu0 %v526
        %1437 = vmatprep.subr.mxu0 0.0
        %1438 = vmatpush1.msra.mxu0 %v527
        %1439 = vmatprep.subr.mxu0 0.0
        %1440 = vmatpush1.msra.mxu0 %v528
        %1441 = vmatprep.subr.mxu0 0.0
        %1442 = vmatpush1.msra.mxu0 %v529
        %1443 = vmatprep.subr.mxu0 0.0
        %1444 = vmatpush1.msra.mxu0 %v530
        %1445 = vmatprep.subr.mxu0 0.0
        %1446 = vmatpush1.msra.mxu0 %v531
        %1447 = vmatprep.subr.mxu0 0.0
        %1448 = vmatpush1.msra.mxu0 %v532
        %1449 = vmatprep.subr.mxu0 0.0
        %1450 = vmatpush1.msra.mxu0 %v533
        %1451 = vmatprep.subr.mxu0 0.0
        %1452 = vmatpush1.msra.mxu0 %v534
        %1453 = vmatprep.subr.mxu0 0.0
        %1454 = vmatpush1.msra.mxu0 %v535
        %1455 = vmatprep.subr.mxu0 0.0
        %1456 = vmatpush1.msra.mxu0 %v536
        %1457 = vmatprep.mubr.f32.mxu0 %v771
        %1458 = vmatmul.mubr.f32.gmra.mrb[0].mxu0 %v763
        %v1459 = vpop.f32.mrb[0].mxu0
        %v1460 = vadd.f32 %v1390, %v1459
        %v1461 = vpop.f32.mrb[0].mxu0
        %1462 = vdwg.mxu0
        %1463 = vmatprep.subr.mxu0 0.0
        %1464 = vmatpush1.msra.mxu0 %v537
        %1465 = vmatprep.subr.mxu0 0.0
        %1466 = vmatpush1.msra.mxu0 %v538
        %1467 = vmatprep.subr.mxu0 0.0
        %1468 = vmatpush1.msra.mxu0 %v539
        %1469 = vmatprep.subr.mxu0 0.0
        %1470 = vmatpush1.msra.mxu0 %v540
        %1471 = vmatprep.subr.mxu0 0.0
        %1472 = vmatpush1.msra.mxu0 %v541
        %1473 = vmatprep.subr.mxu0 0.0
        %1474 = vmatpush1.msra.mxu0 %v542
        %1475 = vmatprep.subr.mxu0 0.0
        %1476 = vmatpush1.msra.mxu0 %v543
        %1477 = vmatprep.subr.mxu0 0.0
        %1478 = vmatpush1.msra.mxu0 %v544
        %1479 = vmatprep.subr.mxu0 0.0
        %1480 = vmatpush1.msra.mxu0 %v545
        %1481 = vmatprep.subr.mxu0 0.0
        %1482 = vmatpush1.msra.mxu0 %v546
        %1483 = vmatprep.subr.mxu0 0.0
        %1484 = vmatpush1.msra.mxu0 %v547
        %1485 = vmatprep.subr.mxu0 0.0
        %1486 = vmatpush1.msra.mxu0 %v548
        %1487 = vmatprep.subr.mxu0 0.0
        %1488 = vmatpush1.msra.mxu0 %v549
        %1489 = vmatprep.subr.mxu0 0.0
        %1490 = vmatpush1.msra.mxu0 %v550
        %1491 = vmatprep.subr.mxu0 0.0
        %1492 = vmatpush1.msra.mxu0 %v551
        %1493 = vmatprep.subr.mxu0 0.0
        %1494 = vmatpush1.msra.mxu0 %v552
        %1495 = vmatprep.subr.mxu0 0.0
        %1496 = vmatpush1.msra.mxu0 %v553
        %1497 = vmatprep.subr.mxu0 0.0
        %1498 = vmatpush1.msra.mxu0 %v554
        %1499 = vmatprep.subr.mxu0 0.0
        %1500 = vmatpush1.msra.mxu0 %v555
        %1501 = vmatprep.subr.mxu0 0.0
        %1502 = vmatpush1.msra.mxu0 %v556
        %1503 = vmatprep.subr.mxu0 0.0
        %1504 = vmatpush1.msra.mxu0 %v557
        %1505 = vmatprep.subr.mxu0 0.0
        %1506 = vmatpush1.msra.mxu0 %v558
        %1507 = vmatprep.subr.mxu0 0.0
        %1508 = vmatpush1.msra.mxu0 %v559
        %1509 = vmatprep.subr.mxu0 0.0
        %1510 = vmatpush1.msra.mxu0 %v560
        %1511 = vmatprep.subr.mxu0 0.0
        %1512 = vmatpush1.msra.mxu0 %v561
        %1513 = vmatprep.subr.mxu0 0.0
        %1514 = vmatpush1.msra.mxu0 %v562
        %1515 = vmatprep.subr.mxu0 0.0
        %1516 = vmatpush1.msra.mxu0 %v563
        %1517 = vmatprep.subr.mxu0 0.0
        %1518 = vmatpush1.msra.mxu0 %v564
        %1519 = vmatprep.subr.mxu0 0.0
        %1520 = vmatpush1.msra.mxu0 %v565
        %1521 = vmatprep.subr.mxu0 0.0
        %1522 = vmatpush1.msra.mxu0 %v566
        %1523 = vmatprep.subr.mxu0 0.0
        %1524 = vmatpush1.msra.mxu0 %v567
        %1525 = vmatprep.subr.mxu0 0.0
        %1526 = vmatpush1.msra.mxu0 %v568
        %1527 = vmatprep.mubr.f32.mxu0 %v772
        %1528 = vmatmul.mubr.f32.gmra.mrb[0].mxu0 %v770
        %v1529 = vpop.f32.mrb[0].mxu0
        %v1530 = vadd.f32 %v1460, %v1529
        %v1531 = vpop.f32.mrb[0].mxu0
        %1532 = vdwg.mxu0
        %1533 = vmatprep.subr.mxu0 0.0
        %1534 = vmatpush1.msra.mxu0 %v569
        %1535 = vmatprep.subr.mxu0 0.0
        %1536 = vmatpush1.msra.mxu0 %v570
        %1537 = vmatprep.subr.mxu0 0.0
        %1538 = vmatpush1.msra.mxu0 %v571
        %1539 = vmatprep.subr.mxu0 0.0
        %1540 = vmatpush1.msra.mxu0 %v572
        %1541 = vmatprep.subr.mxu0 0.0
        %1542 = vmatpush1.msra.mxu0 %v573
        %1543 = vmatprep.subr.mxu0 0.0
        %1544 = vmatpush1.msra.mxu0 %v574
        %1545 = vmatprep.subr.mxu0 0.0
        %1546 = vmatpush1.msra.mxu0 %v575
        %1547 = vmatprep.subr.mxu0 0.0
        %1548 = vmatpush1.msra.mxu0 %v576
        %1549 = vmatprep.subr.mxu0 0.0
        %1550 = vmatpush1.msra.mxu0 %v577
        %1551 = vmatprep.subr.mxu0 0.0
        %1552 = vmatpush1.msra.mxu0 %v578
        %1553 = vmatprep.subr.mxu0 0.0
        %1554 = vmatpush1.msra.mxu0 %v579
        %1555 = vmatprep.subr.mxu0 0.0
        %1556 = vmatpush1.msra.mxu0 %v580
        %1557 = vmatprep.subr.mxu0 0.0
        %1558 = vmatpush1.msra.mxu0 %v581
        %1559 = vmatprep.subr.mxu0 0.0
        %1560 = vmatpush1.msra.mxu0 %v582
        %1561 = vmatprep.subr.mxu0 0.0
        %1562 = vmatpush1.msra.mxu0 %v583
        %1563 = vmatprep.subr.mxu0 0.0
        %1564 = vmatpush1.msra.mxu0 %v584
        %1565 = vmatprep.subr.mxu0 0.0
        %1566 = vmatpush1.msra.mxu0 %v585
        %1567 = vmatprep.subr.mxu0 0.0
        %1568 = vmatpush1.msra.mxu0 %v586
        %1569 = vmatprep.subr.mxu0 0.0
        %1570 = vmatpush1.msra.mxu0 %v587
        %1571 = vmatprep.subr.mxu0 0.0
        %1572 = vmatpush1.msra.mxu0 %v588
        %1573 = vmatprep.subr.mxu0 0.0
        %1574 = vmatpush1.msra.mxu0 %v589
        %1575 = vmatprep.subr.mxu0 0.0
        %1576 = vmatpush1.msra.mxu0 %v590
        %1577 = vmatprep.subr.mxu0 0.0
        %1578 = vmatpush1.msra.mxu0 %v591
        %1579 = vmatprep.subr.mxu0 0.0
        %1580 = vmatpush1.msra.mxu0 %v592
        %1581 = vmatprep.subr.mxu0 0.0
        %1582 = vmatpush1.msra.mxu0 %v593
        %1583 = vmatprep.subr.mxu0 0.0
        %1584 = vmatpush1.msra.mxu0 %v594
        %1585 = vmatprep.subr.mxu0 0.0
        %1586 = vmatpush1.msra.mxu0 %v595
        %1587 = vmatprep.subr.mxu0 0.0
        %1588 = vmatpush1.msra.mxu0 %v596
        %1589 = vmatprep.subr.mxu0 0.0
        %1590 = vmatpush1.msra.mxu0 %v597
        %1591 = vmatprep.subr.mxu0 0.0
        %1592 = vmatpush1.msra.mxu0 %v598
        %1593 = vmatprep.subr.mxu0 0.0
        %1594 = vmatpush1.msra.mxu0 %v599
        %1595 = vmatprep.subr.mxu0 0.0
        %1596 = vmatpush1.msra.mxu0 %v600
        %1597 = vmatprep.mubr.f32.mxu0 %v788
        %1598 = vmatmul.mubr.f32.gmra.mrb[0].mxu0 %v780
        %v1599 = vpop.f32.mrb[0].mxu0
        %v1600 = vadd.f32 %v1530, %v1599
        %v1601 = vpop.f32.mrb[0].mxu0
        %1602 = vdwg.mxu0
        %1603 = vmatprep.subr.mxu0 0.0
        %1604 = vmatpush1.msra.mxu0 %v601
        %1605 = vmatprep.subr.mxu0 0.0
        %1606 = vmatpush1.msra.mxu0 %v602
        %1607 = vmatprep.subr.mxu0 0.0
        %1608 = vmatpush1.msra.mxu0 %v603
        %1609 = vmatprep.subr.mxu0 0.0
        %1610 = vmatpush1.msra.mxu0 %v604
        %1611 = vmatprep.subr.mxu0 0.0
        %1612 = vmatpush1.msra.mxu0 %v605
        %1613 = vmatprep.subr.mxu0 0.0
        %1614 = vmatpush1.msra.mxu0 %v606
        %1615 = vmatprep.subr.mxu0 0.0
        %1616 = vmatpush1.msra.mxu0 %v607
        %1617 = vmatprep.subr.mxu0 0.0
        %1618 = vmatpush1.msra.mxu0 %v608
        %1619 = vmatprep.subr.mxu0 0.0
        %1620 = vmatpush1.msra.mxu0 %v609
        %1621 = vmatprep.subr.mxu0 0.0
        %1622 = vmatpush1.msra.mxu0 %v610
        %1623 = vmatprep.subr.mxu0 0.0
        %1624 = vmatpush1.msra.mxu0 %v611
        %1625 = vmatprep.subr.mxu0 0.0
        %1626 = vmatpush1.msra.mxu0 %v612
        %1627 = vmatprep.subr.mxu0 0.0
        %1628 = vmatpush1.msra.mxu0 %v613
        %1629 = vmatprep.subr.mxu0 0.0
        %1630 = vmatpush1.msra.mxu0 %v614
        %1631 = vmatprep.subr.mxu0 0.0
        %1632 = vmatpush1.msra.mxu0 %v615
        %1633 = vmatprep.subr.mxu0 0.0
        %1634 = vmatpush1.msra.mxu0 %v616
        %1635 = vmatprep.subr.mxu0 0.0
        %1636 = vmatpush1.msra.mxu0 %v617
        %1637 = vmatprep.subr.mxu0 0.0
        %1638 = vmatpush1.msra.mxu0 %v618
        %1639 = vmatprep.subr.mxu0 0.0
        %1640 = vmatpush1.msra.mxu0 %v619
        %1641 = vmatprep.subr.mxu0 0.0
        %1642 = vmatpush1.msra.mxu0 %v620
        %1643 = vmatprep.subr.mxu0 0.0
        %1644 = vmatpush1.msra.mxu0 %v621
        %1645 = vmatprep.subr.mxu0 0.0
        %1646 = vmatpush1.msra.mxu0 %v622
        %1647 = vmatprep.subr.mxu0 0.0
        %1648 = vmatpush1.msra.mxu0 %v623
        %1649 = vmatprep.subr.mxu0 0.0
        %1650 = vmatpush1.msra.mxu0 %v624
        %1651 = vmatprep.subr.mxu0 0.0
        %1652 = vmatpush1.msra.mxu0 %v625
        %1653 = vmatprep.subr.mxu0 0.0
        %1654 = vmatpush1.msra.mxu0 %v626
        %1655 = vmatprep.subr.mxu0 0.0
        %1656 = vmatpush1.msra.mxu0 %v627
        %1657 = vmatprep.subr.mxu0 0.0
        %1658 = vmatpush1.msra.mxu0 %v628
        %1659 = vmatprep.subr.mxu0 0.0
        %1660 = vmatpush1.msra.mxu0 %v629
        %1661 = vmatprep.subr.mxu0 0.0
        %1662 = vmatpush1.msra.mxu0 %v630
        %1663 = vmatprep.subr.mxu0 0.0
        %1664 = vmatpush1.msra.mxu0 %v631
        %1665 = vmatprep.subr.mxu0 0.0
        %1666 = vmatpush1.msra.mxu0 %v632
        %1667 = vmatprep.mubr.f32.mxu0 %v789
        %1668 = vmatmul.mubr.f32.gmra.mrb[0].mxu0 %v787
        %v1669 = vpop.f32.mrb[0].mxu0
        %v1670 = vadd.f32 %v1600, %v1669
        %v1671 = vpop.f32.mrb[0].mxu0
        %1672 = vdwg.mxu0
        %1673 = vmatprep.subr.mxu0 0.0
        %1674 = vmatpush1.msra.mxu0 %v633
        %1675 = vmatprep.subr.mxu0 0.0
        %1676 = vmatpush1.msra.mxu0 %v634
        %1677 = vmatprep.subr.mxu0 0.0
        %1678 = vmatpush1.msra.mxu0 %v635
        %1679 = vmatprep.subr.mxu0 0.0
        %1680 = vmatpush1.msra.mxu0 %v636
        %1681 = vmatprep.subr.mxu0 0.0
        %1682 = vmatpush1.msra.mxu0 %v637
        %1683 = vmatprep.subr.mxu0 0.0
        %1684 = vmatpush1.msra.mxu0 %v638
        %1685 = vmatprep.subr.mxu0 0.0
        %1686 = vmatpush1.msra.mxu0 %v639
        %1687 = vmatprep.subr.mxu0 0.0
        %1688 = vmatpush1.msra.mxu0 %v640
        %1689 = vmatprep.subr.mxu0 0.0
        %1690 = vmatpush1.msra.mxu0 %v641
        %1691 = vmatprep.subr.mxu0 0.0
        %1692 = vmatpush1.msra.mxu0 %v642
        %1693 = vmatprep.subr.mxu0 0.0
        %1694 = vmatpush1.msra.mxu0 %v643
        %1695 = vmatprep.subr.mxu0 0.0
        %1696 = vmatpush1.msra.mxu0 %v644
        %1697 = vmatprep.subr.mxu0 0.0
        %1698 = vmatpush1.msra.mxu0 %v645
        %1699 = vmatprep.subr.mxu0 0.0
        %1700 = vmatpush1.msra.mxu0 %v646
        %1701 = vmatprep.subr.mxu0 0.0
        %1702 = vmatpush1.msra.mxu0 %v647
        %1703 = vmatprep.subr.mxu0 0.0
        %1704 = vmatpush1.msra.mxu0 %v648
        %1705 = vmatprep.subr.mxu0 0.0
        %1706 = vmatpush1.msra.mxu0 %v649
        %1707 = vmatprep.subr.mxu0 0.0
        %1708 = vmatpush1.msra.mxu0 %v650
        %1709 = vmatprep.subr.mxu0 0.0
        %1710 = vmatpush1.msra.mxu0 %v651
        %1711 = vmatprep.subr.mxu0 0.0
        %1712 = vmatpush1.msra.mxu0 %v652
        %1713 = vmatprep.subr.mxu0 0.0
        %1714 = vmatpush1.msra.mxu0 %v653
        %1715 = vmatprep.subr.mxu0 0.0
        %1716 = vmatpush1.msra.mxu0 %v654
        %1717 = vmatprep.subr.mxu0 0.0
        %1718 = vmatpush1.msra.mxu0 %v655
        %1719 = vmatprep.subr.mxu0 0.0
        %1720 = vmatpush1.msra.mxu0 %v656
        %1721 = vmatprep.subr.mxu0 0.0
        %1722 = vmatpush1.msra.mxu0 %v657
        %1723 = vmatprep.subr.mxu0 0.0
        %1724 = vmatpush1.msra.mxu0 %v658
        %1725 = vmatprep.subr.mxu0 0.0
        %1726 = vmatpush1.msra.mxu0 %v659
        %1727 = vmatprep.subr.mxu0 0.0
        %1728 = vmatpush1.msra.mxu0 %v660
        %1729 = vmatprep.subr.mxu0 0.0
        %1730 = vmatpush1.msra.mxu0 %v661
        %1731 = vmatprep.subr.mxu0 0.0
        %1732 = vmatpush1.msra.mxu0 %v662
        %1733 = vmatprep.subr.mxu0 0.0
        %1734 = vmatpush1.msra.mxu0 %v663
        %1735 = vmatprep.subr.mxu0 0.0
        %1736 = vmatpush1.msra.mxu0 %v664
        %1737 = vmatprep.mubr.f32.mxu0 %v805
        %1738 = vmatmul.mubr.f32.gmra.mrb[0].mxu0 %v797
        %v1739 = vpop.f32.mrb[0].mxu0
        %v1740 = vadd.f32 %v1670, %v1739
        %v1741 = vpop.f32.mrb[0].mxu0
        %1742 = vdwg.mxu0
        %1743 = vmatprep.subr.mxu0 0.0
        %1744 = vmatpush1.msra.mxu0 %v665
        %1745 = vmatprep.subr.mxu0 0.0
        %1746 = vmatpush1.msra.mxu0 %v666
        %1747 = vmatprep.subr.mxu0 0.0
        %1748 = vmatpush1.msra.mxu0 %v667
        %1749 = vmatprep.subr.mxu0 0.0
        %1750 = vmatpush1.msra.mxu0 %v668
        %1751 = vmatprep.subr.mxu0 0.0
        %1752 = vmatpush1.msra.mxu0 %v669
        %1753 = vmatprep.subr.mxu0 0.0
        %1754 = vmatpush1.msra.mxu0 %v670
        %1755 = vmatprep.subr.mxu0 0.0
        %1756 = vmatpush1.msra.mxu0 %v671
        %1757 = vmatprep.subr.mxu0 0.0
        %1758 = vmatpush1.msra.mxu0 %v672
        %1759 = vmatprep.subr.mxu0 0.0
        %1760 = vmatpush1.msra.mxu0 %v673
        %1761 = vmatprep.subr.mxu0 0.0
        %1762 = vmatpush1.msra.mxu0 %v674
        %1763 = vmatprep.subr.mxu0 0.0
        %1764 = vmatpush1.msra.mxu0 %v675
        %1765 = vmatprep.subr.mxu0 0.0
        %1766 = vmatpush1.msra.mxu0 %v676
        %1767 = vmatprep.subr.mxu0 0.0
        %1768 = vmatpush1.msra.mxu0 %v677
        %1769 = vmatprep.subr.mxu0 0.0
        %1770 = vmatpush1.msra.mxu0 %v678
        %1771 = vmatprep.subr.mxu0 0.0
        %1772 = vmatpush1.msra.mxu0 %v679
        %1773 = vmatprep.subr.mxu0 0.0
        %1774 = vmatpush1.msra.mxu0 %v680
        %1775 = vmatprep.subr.mxu0 0.0
        %1776 = vmatpush1.msra.mxu0 0.0
        %1777 = vmatprep.subr.mxu0 0.0
        %1778 = vmatpush1.msra.mxu0 0.0
        %1779 = vmatprep.subr.mxu0 0.0
        %1780 = vmatpush1.msra.mxu0 0.0
        %1781 = vmatprep.subr.mxu0 0.0
        %1782 = vmatpush1.msra.mxu0 0.0
        %1783 = vmatprep.subr.mxu0 0.0
        %1784 = vmatpush1.msra.mxu0 0.0
        %1785 = vmatprep.subr.mxu0 0.0
        %1786 = vmatpush1.msra.mxu0 0.0
        %1787 = vmatprep.subr.mxu0 0.0
        %1788 = vmatpush1.msra.mxu0 0.0
        %1789 = vmatprep.subr.mxu0 0.0
        %1790 = vmatpush1.msra.mxu0 0.0
        %1791 = vmatprep.subr.mxu0 0.0
        %1792 = vmatpush1.msra.mxu0 0.0
        %1793 = vmatprep.subr.mxu0 0.0
        %1794 = vmatpush1.msra.mxu0 0.0
        %1795 = vmatprep.subr.mxu0 0.0
        %1796 = vmatpush1.msra.mxu0 0.0
        %1797 = vmatprep.subr.mxu0 0.0
        %1798 = vmatpush1.msra.mxu0 0.0
        %1799 = vmatprep.subr.mxu0 0.0
        %1800 = vmatpush1.msra.mxu0 0.0
        %1801 = vmatprep.subr.mxu0 0.0
        %1802 = vmatpush1.msra.mxu0 0.0
        %1803 = vmatprep.subr.mxu0 0.0
        %1804 = vmatpush1.msra.mxu0 0.0
        %1805 = vmatprep.subr.mxu0 0.0
        %1806 = vmatpush1.msra.mxu0 0.0
        %1807 = vmatprep.mubr.f32.mxu0 0.0
        %1808 = vmatmul.mubr.f32.gmra.mrb[0].mxu0 %v804
        %v1809 = vpop.f32.mrb[0].mxu0
        %v1810 = vadd.f32 %v1740, %v1809
        %v1811 = vpop.f32.mrb[0].mxu0
        %1812 = vdwg.mxu0
        %v1813 = vadd.f32 %v241, %v1810
        %vm1814 = vcmask 402432
        %1815 = vst.msk [vmem:[#allocation2] sm:$0x3] %vm1814, %v1813
        %p1816 = scmp.eq.s32.totalorder %s17, 7
        // Predicated region
        $region45: #{encoder_forward.5} parent=39 // pred_check
          %p1817 = pneg %p1816
        $region46: #{encoder_forward.5} parent=39 // pred_check_branch
          %1819 = sbr.rel (%p1817) target = $region48
        $region47: #{encoder_forward.5} parent=39 // pred_region
          %v1820 = vld [vmem:[#allocation2] sm:$0x3]
          %v1821 = vld [vmem:[%s2] sm:$0x1]
          %v1823 = vlaneseq
          %v1824 = vshrl.u32 %v1823, 7
          %v1825 = vsub.s32 0, %v1824
          %v1826 = vrot.slane %v1821, %v1825
          %v1828 = vadd.f32 %v1820, %v1826
          %v1829 = vsel %vm1814, %v1828, 0.0
          %1830 = vadd.xlane.f32.xlu0 %v1829
          %v1831 = vpop.xlane.xlu0 %1830
          %v1832 = vrcp.pop 50.0
          %v1833 = vmul.f32 %v1831, %v1832
          %v1834 = vsub.f32 %v1828, %v1833
          %v1835 = vmul.f32 %v1834, %v1834
          %v1836 = vsel %vm1814, %v1835, 0.0
          %1837 = vadd.xlane.f32.xlu0 %v1836
          %v1838 = vpop.xlane.xlu0 %1837
          %v1839 = vmul.f32 %v1838, %v1832
          %v1840 = vadd.f32 %v1839, 1e-05
          %v1841 = vrsqrt.pop %v1840
          %v1842 = vmul.f32 %v1834, %v1841
          %v1843 = vld [vmem:[%s3] sm:$0x1]
          %v1845 = vlaneseq
          %v1846 = vshrl.u32 %v1845, 7
          %v1847 = vsub.s32 0, %v1846
          %v1848 = vrot.slane %v1843, %v1847
          %v1850 = vmul.f32 %v1842, %v1848
          %v1851 = vld [vmem:[%s4] sm:$0x1]
          %v1853 = vlaneseq
          %v1854 = vshrl.u32 %v1853, 7
          %v1855 = vsub.s32 0, %v1854
          %v1856 = vrot.slane %v1851, %v1855
          %v1858 = vadd.f32 %v1850, %v1856
          %v1859 = vtanh.pop %v1858
          %1860 = vst.msk [vmem:[#allocation3] sm:$0x3] %vm1814, %v1859
        $region48: #{encoder_forward.5} parent=39 // pred_fallthru
          _
        // Predicated region
        $region49: #{encoder_forward.5} parent=39 // pred_check
          %p1861 = pneg %p145
        $region50: #{encoder_forward.5} parent=39 // pred_check_branch
          %1863 = sbr.rel (%p1861) target = $region52
        $region51: #{encoder_forward.5} parent=39 // pred_region
          %s1865 = ssub.s32 32, 32
          %1866 = vsyncadd [#allocation4], %s1865
          %s1868 = sshll.u32 [#allocation3], 4
          %s1869 = int_to_ptr.vmem [resolvable:$true] %s1868
          %1871 = dma.vmem_to_hbm [thread:$0]  %s1869, 32, %s5, [#allocation4]
        $region52: #{encoder_forward.5} parent=39 // pred_fallthru
          _
        // Predicated region
        $region53: #{encoder_forward.5} parent=39 // pred_check
          %p1872 = pneg %p145
        $region54: #{encoder_forward.5} parent=39 // pred_check_branch
          %1874 = sbr.rel (%p1872) target = $region56
        $region55: #{encoder_forward.5} parent=39 // pred_region
          %1875 = dma.done [#allocation4], 32
        $region56: #{encoder_forward.5} parent=39 // pred_fallthru
          _
      $region40: #{encoder_forward.5} parent=5 // pred_fallthru
        _
      %p1876 = scmp.le.s32.totalorder 2, %s12
      // Predicated region
      $region57: #{encoder_forward.5} parent=5 // pred_check
        %p1877 = pneg %p1876
      $region58: #{encoder_forward.5} parent=5 // pred_check_branch
        %1879 = sbr.rel (%p1877) target = $region60
      $region59: #{encoder_forward.5} parent=5 // pred_region
        %s1880 = ssub.s32 %s12, 2
      $region60: #{encoder_forward.5} parent=5 // pred_fallthru
        _
    $region6: #{encoder_forward.5} parent=1 // loop_footer
      %s16 = sadd.s32 1, %s12
    $region7: #{encoder_forward.5} parent=1 // loop_footer_branch
      %11 = sbr.rel target = $region3
    $region8: #{encoder_forward.5} parent=1 // loop_exit
      _
    %1881 = vsyncpa [#allocation4], 1
    %s1882 = scalar_lea.sflag [#allocation4], 1
    %1883 = vsyncpa %s1882, 1

</llo_original>
